<compile_context>
chip_gen: v6e
topology: v6e:2x2x1
jax: 0.10.0
libtpu: 0.0.40
codegen_flags: <defaults>
</compile_context>

<pallas_src>
import functools

import jax
import jax.numpy as jnp
from jax import lax
from jax.experimental import pallas as pl
from jax.experimental.pallas import tpu as pltpu


def _fused_lstm_kernel(x_ref, w_ih_ref, w_hh_ref, b_ref, h0_ref, c0_ref,
                       wlin_ref, blin_ref, out_ref, seq_ref, xp_ref, *, unroll):
    """Fused multi-layer LSTM + Linear(last timestep). Single invocation, no grid.

    x_ref   : (S, B, F)   time-major input, features zero-padded to F = max(I, H), bf16
    w_ih_ref: (L, F, 4H)  W_ih^T per layer (zero rows on padded features), bf16
    w_hh_ref: (L, H, 4H)  W_hh^T per layer, bf16
    b_ref   : (L, 1, 4H)  combined bias (b_ih + b_hh), f32
    h0_ref  : (L, B, H)   initial hidden states, f32
    c0_ref  : (L, B, H)   initial cell states, f32
    wlin_ref: (H, O)      final Linear weight^T, f32
    blin_ref: (1, O)      final Linear bias, f32
    out_ref : (B, O)      prediction (Linear on last timestep of top layer)
    seq_ref : (S, B, F)   VMEM scratch: inter-layer hidden sequence (bf16)
    xp_ref  : (S, B, 4H)  VMEM scratch: per-layer time-parallel input projection (f32)
    """
    S, B, F = x_ref.shape
    L = w_ih_ref.shape[0]
    H = h0_ref.shape[-1]

    # Hoisted lane constants (computed once). sigmoid(x) = 0.5*tanh(0.5*x) + 0.5,
    # so ONE full-width tanh pass covers all four gates [i, f, g, o]:
    #   act = tanh(gates * half) * half + off
    lane = lax.broadcasted_iota(jnp.int32, (B, 4 * H), 1)
    is_g = (lane >= 2 * H) & (lane < 3 * H)
    half = jnp.where(is_g, jnp.float32(1.0), jnp.float32(0.5))
    off = jnp.where(is_g, jnp.float32(0.0), jnp.float32(0.5))

    h_last = h0_ref[0]
    for l in range(L):                        # static, small layer loop
        w_ih_l = w_ih_ref[l]                  # (F, 4H) bf16, hoisted out of time loop
        w_hh_l = w_hh_ref[l]                  # (H, 4H) bf16, vreg-resident
        b_l = b_ref[l]                        # (1, 4H) f32
        src = x_ref if l == 0 else seq_ref    # layer input sequence (bf16)

        # Time-parallel input projection + bias: no loop-carried dependencies, so the
        # MXU can pipeline these matmuls back-to-back off the serial path.
        for t in range(S):                    # static loop
            xp_ref[t] = (jnp.dot(src[t], w_ih_l,
                                 preferred_element_type=jnp.float32) + b_l)

        write_seq = l < L - 1                 # top layer's per-step outputs unused

        def step(t, carry, w_hh_l=w_hh_l, write_seq=write_seq):
            h, c = carry                      # (B, H) f32 state
            # Serial path: only the recurrent matmul h @ W_hh^T (bf16 in, f32 acc).
            gates = xp_ref[t] + jnp.dot(h.astype(jnp.bfloat16), w_hh_l,
                                        preferred_element_type=jnp.float32)
            # Single EUP pass over the whole (B, 4H) vreg, then VPU scale/shift.
            act = jnp.tanh(gates * half) * half + off
            i_g = act[:, 0 * H:1 * H]
            f_g = act[:, 1 * H:2 * H]
            g_g = act[:, 2 * H:3 * H]
            o_g = act[:, 3 * H:4 * H]
            c_new = f_g * c + i_g * g_g
            h_new = o_g * jnp.tanh(c_new)
            if write_seq:
                # Layer l+1's projection at time t reads this AFTER this layer is done
                # (projection loop runs before the next recurrence), so in-place is safe.
                h_st = h_new.astype(jnp.bfloat16)
                if F > H:
                    # Zero-pad lanes [H, F); matched by zero rows in next layer's W_ih.
                    h_st = jnp.concatenate(
                        [h_st, jnp.zeros((B, F - H), jnp.bfloat16)], axis=-1)
                seq_ref[t] = h_st
            return h_new, c_new

        h_last, _ = lax.fori_loop(0, S, step, (h0_ref[l], c0_ref[l]), unroll=unroll)

    # Final Linear on the last timestep of the top layer (single tiny f32 matmul).
    out_ref[...] = (jnp.dot(h_last, wlin_ref[...],
                            preferred_element_type=jnp.float32)
                    + blin_ref[...])


def _fused_lstm(x_tm, w_ih, w_hh, bias, h0, c0, w_lin_t, b_lin):
    """x_tm: (S, B, F) time-major bf16. Returns (B, O) f32."""
    S, B, F = x_tm.shape
    H = h0.shape[-1]
    O = w_lin_t.shape[-1]
    vmem = pltpu.MemorySpace.VMEM
    unroll = True if S <= 16 else 8           # short sequences: full unroll for LLO
    kernel = functools.partial(_fused_lstm_kernel, unroll=unroll)
    return pl.pallas_call(
        kernel,
        out_shape=jax.ShapeDtypeStruct((B, O), jnp.float32),
        in_specs=[pl.BlockSpec(memory_space=vmem)] * 8,    # everything VMEM-resident
        out_specs=pl.BlockSpec(memory_space=vmem),
        scratch_shapes=[pltpu.VMEM((S, B, F), jnp.bfloat16),      # inter-layer seq
                        pltpu.VMEM((S, B, 4 * H), jnp.float32)],  # input projection
    )(x_tm, w_ih, w_hh, bias, h0, c0, w_lin_t, b_lin)


@jax.jit
def lstm_forward(input_seq, params, h_0, c_0):
    """Mirrors LSTM.forward:
       output, _ = nn.LSTM(num_layers, batch_first=True)(input_seq, (h_0, c_0))
       pred = Linear(output)[:, -1, :]
    input_seq: (B, seq, input_size) batch-first, like PyTorch.
    h_0, c_0 : (num_layers, B, hidden_size) — passed explicitly (PyTorch draws randn).
    """
    B, S, I = input_seq.shape
    H = h_0.shape[-1]
    F = max(I, H)
    x = input_seq.astype(jnp.float32)
    if I < F:
        # Zero-pad features; matched by zero rows in the layer-0 W_ih^T.
        x = jnp.pad(x, ((0, 0), (0, 0), (0, F - I)))
    x_tm = jnp.transpose(x, (1, 0, 2)).astype(jnp.bfloat16)   # (S, B, F) time-major
    return _fused_lstm(x_tm, params["w_ih"], params["w_hh"], params["bias"],
                       h_0.astype(jnp.float32), c_0.astype(jnp.float32),
                       params["lin_w_t"], params["lin_b"])


def init_params(key, input_size, hidden_size, num_layers, output_size):
    """Deterministic synthetic init (uniform(-1/sqrt(H), 1/sqrt(H)), like PyTorch),
    laid out for the fused kernel: W_ih^T padded to F rows, W_hh^T, combined bias."""
    H = hidden_size
    F = max(input_size, H)
    k = 1.0 / float(H) ** 0.5
    w_ih_all, w_hh_all, biases = [], [], []
    for layer in range(num_layers):
        in_dim = input_size if layer == 0 else H
        key, k1, k2, k3, k4 = jax.random.split(key, 5)
        w_ih = jax.random.uniform(k1, (4 * H, in_dim), jnp.float32, -k, k)
        w_hh = jax.random.uniform(k2, (4 * H, H), jnp.float32, -k, k)
        b_ih = jax.random.uniform(k3, (4 * H,), jnp.float32, -k, k)
        b_hh = jax.random.uniform(k4, (4 * H,), jnp.float32, -k, k)
        # (F, 4H) with zero rows for padded input features.
        w_ih_t = jnp.zeros((F, 4 * H), jnp.float32).at[:in_dim, :].set(w_ih.T)
        w_ih_all.append(w_ih_t)
        w_hh_all.append(w_hh.T)
        biases.append((b_ih + b_hh).reshape(1, 4 * H))
    key, k5, k6 = jax.random.split(key, 3)
    w_lin = jax.random.uniform(k5, (output_size, H), jnp.float32, -k, k)
    b_lin = jax.random.uniform(k6, (output_size,), jnp.float32, -k, k)
    params = {
        "w_ih": jnp.stack(w_ih_all).astype(jnp.bfloat16),   # (L, F, 4H) bf16 (MXU)
        "w_hh": jnp.stack(w_hh_all).astype(jnp.bfloat16),   # (L, H, 4H) bf16 (MXU)
        "bias": jnp.stack(biases),                          # (L, 1, 4H) f32
        "lin_w_t": w_lin.T,                                 # (H, O) f32
        "lin_b": b_lin.reshape(1, output_size),             # (1, O) f32
    }
    return params, key


def lstm_reference(input_seq, params, h_0, c_0):
    """Pure-JAX (XLA) reference mirroring PyTorch nn.LSTM + Linear(last step)."""
    B, S, I = input_seq.shape
    L = params["w_ih"].shape[0]
    F = params["w_ih"].shape[1]
    H = h_0.shape[-1]
    x = input_seq.astype(jnp.float32)
    if I < F:
        x = jnp.pad(x, ((0, 0), (0, 0), (0, F - I)))
    seq = x                                                  # (B, S, F)
    h = h_0[0]
    for l in range(L):
        w_ih = params["w_ih"][l].astype(jnp.float32)         # (F, 4H)
        w_hh = params["w_hh"][l].astype(jnp.float32)         # (H, 4H)
        b = params["bias"][l]                                # (1, 4H)
        h, c = h_0[l], c_0[l]
        outs = []
        for t in range(S):
            gates = seq[:, t, :] @ w_ih + h @ w_hh + b
            i_g = jax.nn.sigmoid(gates[:, 0 * H:1 * H])
            f_g = jax.nn.sigmoid(gates[:, 1 * H:2 * H])
            g_g = jnp.tanh(gates[:, 2 * H:3 * H])
            o_g = jax.nn.sigmoid(gates[:, 3 * H:4 * H])
            c = f_g * c + i_g * g_g
            h = o_g * jnp.tanh(c)
            outs.append(h)
        seq = jnp.stack(outs, axis=1)                        # (B, S, H)
        if F > H:
            seq = jnp.pad(seq, ((0, 0), (0, 0), (0, F - H)))
    return h @ params["lin_w_t"] + params["lin_b"]


if __name__ == "__main__":
    # Small shapes consistent with the module's forward.
    batch_size = 2
    seq_len = 8
    input_size = 16
    hidden_size = 32
    num_layers = 2
    output_size = 4
    num_directions = 1

    key = jax.random.PRNGKey(0)
    params, key = init_params(key, input_size, hidden_size, num_layers, output_size)

    key, kx, kh, kc = jax.random.split(key, 4)
    input_seq = jax.random.normal(kx, (batch_size, seq_len, input_size), jnp.float32)
    # PyTorch forward draws h_0/c_0 from randn each call; here: deterministic normals.
    h_0 = jax.random.normal(
        kh, (num_directions * num_layers, batch_size, hidden_size), jnp.float32)
    c_0 = jax.random.normal(
        kc, (num_directions * num_layers, batch_size, hidden_size), jnp.float32)

    pred = lstm_forward(input_seq, params, h_0, c_0)
    pred = jax.block_until_ready(pred)
    assert pred.shape == (batch_size, output_size)

    # Numerical sanity check against the pure-JAX reference (bf16 matmul operands in
    # the kernel -> loose tolerance; a real bug would be off by O(1)).
    ref = lstm_reference(input_seq, params, h_0, c_0)
    assert jnp.allclose(pred, ref, atol=5e-2, rtol=5e-2), (pred, ref)

    print("KERNEL_OK")
</pallas_src>

<mosaic_0001>
module attributes {stable_mosaic.version = 11 : i64} {
  func.func @_fused_lstm_kernel(%arg0: memref<8x2x32xbf16, #tpu.memory_space<vmem>>, %arg1: memref<2x32x128xbf16, #tpu.memory_space<vmem>>, %arg2: memref<2x32x128xbf16, #tpu.memory_space<vmem>>, %arg3: memref<2x1x128xf32, #tpu.memory_space<vmem>>, %arg4: memref<2x2x32xf32, #tpu.memory_space<vmem>>, %arg5: memref<2x2x32xf32, #tpu.memory_space<vmem>>, %arg6: memref<32x4xf32, #tpu.memory_space<vmem>>, %arg7: memref<1x4xf32, #tpu.memory_space<vmem>>, %arg8: memref<2x4xf32, #tpu.memory_space<vmem>>, %arg9: memref<8x2x32xbf16, #tpu.memory_space<vmem>>, %arg10: memref<8x2x128xf32, #tpu.memory_space<vmem>>) attributes {dimension_semantics = [], scalar_prefetch = 0 : i64, scratch_operands = 2 : i64, tpu.core_type = #tpu.core_type<tc>} {
    %0 = tpu.iota {dimensions = array<i32: 1>} : vector<2x128xi32>
    %c64_i32 = arith.constant 64 : i32
    %1 = vector.broadcast %c64_i32 : i32 to vector<2x128xi32>
    %2 = arith.cmpi sge, %0, %1 : vector<2x128xi32>
    %c96_i32 = arith.constant 96 : i32
    %3 = vector.broadcast %c96_i32 : i32 to vector<2x128xi32>
    %4 = arith.cmpi slt, %0, %3 : vector<2x128xi32>
    %5 = arith.andi %2, %4 : vector<2x128xi1>
    %cst = arith.constant 1.000000e+00 : f32
    %cst_0 = arith.constant 5.000000e-01 : f32
    %6 = vector.broadcast %cst : f32 to vector<2x128xf32>
    %7 = vector.broadcast %cst_0 : f32 to vector<2x128xf32>
    %8 = arith.select %5, %6, %7 : vector<2x128xi1>, vector<2x128xf32>
    %cst_1 = arith.constant 0.000000e+00 : f32
    %cst_2 = arith.constant 5.000000e-01 : f32
    %9 = vector.broadcast %cst_1 : f32 to vector<2x128xf32>
    %10 = vector.broadcast %cst_2 : f32 to vector<2x128xf32>
    %11 = arith.select %5, %9, %10 : vector<2x128xi1>, vector<2x128xf32>
    %c0 = arith.constant 0 : index
    %c0_3 = arith.constant 0 : index
    %c0_4 = arith.constant 0 : index
    %12 = vector.load %arg1[%c0, %c0_3, %c0_4] : memref<2x32x128xbf16, #tpu.memory_space<vmem>>, vector<1x32x128xbf16>
    %13 = vector.shape_cast %12 : vector<1x32x128xbf16> to vector<32x128xbf16>
    %c0_5 = arith.constant 0 : index
    %c0_6 = arith.constant 0 : index
    %c0_7 = arith.constant 0 : index
    %14 = vector.load %arg2[%c0_5, %c0_6, %c0_7] : memref<2x32x128xbf16, #tpu.memory_space<vmem>>, vector<1x32x128xbf16>
    %15 = vector.shape_cast %14 : vector<1x32x128xbf16> to vector<32x128xbf16>
    %c0_8 = arith.constant 0 : index
    %c0_9 = arith.constant 0 : index
    %c0_10 = arith.constant 0 : index
    %16 = vector.load %arg3[%c0_8, %c0_9, %c0_10] : memref<2x1x128xf32, #tpu.memory_space<vmem>>, vector<1x1x128xf32>
    %17 = vector.shape_cast %16 : vector<1x1x128xf32> to vector<1x128xf32>
    %c0_11 = arith.constant 0 : index
    %c0_12 = arith.constant 0 : index
    %c0_13 = arith.constant 0 : index
    %18 = vector.load %arg0[%c0_11, %c0_12, %c0_13] : memref<8x2x32xbf16, #tpu.memory_space<vmem>>, vector<1x2x32xbf16>
    %19 = vector.shape_cast %18 : vector<1x2x32xbf16> to vector<2x32xbf16>
    %cst_14 = arith.constant dense<0.000000e+00> : vector<2x128xf32>
    %20 = tpu.matmul %19, %13, %cst_14 {dimension_numbers = #tpu.dot_dimension_numbers<[1], [0], [0], [1], [0, 0, 1, 1], [], []>} : vector<2x32xbf16>, vector<32x128xbf16>, vector<2x128xf32> -> vector<2x128xf32>
    %21 = vector.broadcast %17 : vector<1x128xf32> to vector<2x128xf32>
    %22 = arith.addf %20, %21 : vector<2x128xf32>
    %c0_15 = arith.constant 0 : index
    %c0_16 = arith.constant 0 : index
    %c0_17 = arith.constant 0 : index
    %23 = vector.load %arg10[%c0_15, %c0_16, %c0_17] : memref<8x2x128xf32, #tpu.memory_space<vmem>>, vector<1x2x128xf32>
    %24 = vector.shape_cast %23 : vector<1x2x128xf32> to vector<2x128xf32>
    %25 = vector.shape_cast %22 : vector<2x128xf32> to vector<1x2x128xf32>
    tpu.vector_store %arg10[%c0_15, %c0_16, %c0_17], %25 {strides = array<i32>} : memref<8x2x128xf32, #tpu.memory_space<vmem>>, vector<1x2x128xf32>,
    %c1 = arith.constant 1 : index
    %c0_18 = arith.constant 0 : index
    %c0_19 = arith.constant 0 : index
    %26 = vector.load %arg0[%c1, %c0_18, %c0_19] : memref<8x2x32xbf16, #tpu.memory_space<vmem>>, vector<1x2x32xbf16>
    %27 = vector.shape_cast %26 : vector<1x2x32xbf16> to vector<2x32xbf16>
    %cst_20 = arith.constant dense<0.000000e+00> : vector<2x128xf32>
    %28 = tpu.matmul %27, %13, %cst_20 {dimension_numbers = #tpu.dot_dimension_numbers<[1], [0], [0], [1], [0, 0, 1, 1], [], []>} : vector<2x32xbf16>, vector<32x128xbf16>, vector<2x128xf32> -> vector<2x128xf32>
    %29 = vector.broadcast %17 : vector<1x128xf32> to vector<2x128xf32>
    %30 = arith.addf %28, %29 : vector<2x128xf32>
    %c1_21 = arith.constant 1 : index
    %c0_22 = arith.constant 0 : index
    %c0_23 = arith.constant 0 : index
    %31 = vector.load %arg10[%c1_21, %c0_22, %c0_23] : memref<8x2x128xf32, #tpu.memory_space<vmem>>, vector<1x2x128xf32>
    %32 = vector.shape_cast %31 : vector<1x2x128xf32> to vector<2x128xf32>
    %33 = vector.shape_cast %30 : vector<2x128xf32> to vector<1x2x128xf32>
    tpu.vector_store %arg10[%c1_21, %c0_22, %c0_23], %33 {strides = array<i32>} : memref<8x2x128xf32, #tpu.memory_space<vmem>>, vector<1x2x128xf32>,
    %c2 = arith.constant 2 : index
    %c0_24 = arith.constant 0 : index
    %c0_25 = arith.constant 0 : index
    %34 = vector.load %arg0[%c2, %c0_24, %c0_25] : memref<8x2x32xbf16, #tpu.memory_space<vmem>>, vector<1x2x32xbf16>
    %35 = vector.shape_cast %34 : vector<1x2x32xbf16> to vector<2x32xbf16>
    %cst_26 = arith.constant dense<0.000000e+00> : vector<2x128xf32>
    %36 = tpu.matmul %35, %13, %cst_26 {dimension_numbers = #tpu.dot_dimension_numbers<[1], [0], [0], [1], [0, 0, 1, 1], [], []>} : vector<2x32xbf16>, vector<32x128xbf16>, vector<2x128xf32> -> vector<2x128xf32>
    %37 = vector.broadcast %17 : vector<1x128xf32> to vector<2x128xf32>
    %38 = arith.addf %36, %37 : vector<2x128xf32>
    %c2_27 = arith.constant 2 : index
    %c0_28 = arith.constant 0 : index
    %c0_29 = arith.constant 0 : index
    %39 = vector.load %arg10[%c2_27, %c0_28, %c0_29] : memref<8x2x128xf32, #tpu.memory_space<vmem>>, vector<1x2x128xf32>
    %40 = vector.shape_cast %39 : vector<1x2x128xf32> to vector<2x128xf32>
    %41 = vector.shape_cast %38 : vector<2x128xf32> to vector<1x2x128xf32>
    tpu.vector_store %arg10[%c2_27, %c0_28, %c0_29], %41 {strides = array<i32>} : memref<8x2x128xf32, #tpu.memory_space<vmem>>, vector<1x2x128xf32>,
    %c3 = arith.constant 3 : index
    %c0_30 = arith.constant 0 : index
    %c0_31 = arith.constant 0 : index
    %42 = vector.load %arg0[%c3, %c0_30, %c0_31] : memref<8x2x32xbf16, #tpu.memory_space<vmem>>, vector<1x2x32xbf16>
    %43 = vector.shape_cast %42 : vector<1x2x32xbf16> to vector<2x32xbf16>
    %cst_32 = arith.constant dense<0.000000e+00> : vector<2x128xf32>
    %44 = tpu.matmul %43, %13, %cst_32 {dimension_numbers = #tpu.dot_dimension_numbers<[1], [0], [0], [1], [0, 0, 1, 1], [], []>} : vector<2x32xbf16>, vector<32x128xbf16>, vector<2x128xf32> -> vector<2x128xf32>
    %45 = vector.broadcast %17 : vector<1x128xf32> to vector<2x128xf32>
    %46 = arith.addf %44, %45 : vector<2x128xf32>
    %c3_33 = arith.constant 3 : index
    %c0_34 = arith.constant 0 : index
    %c0_35 = arith.constant 0 : index
    %47 = vector.load %arg10[%c3_33, %c0_34, %c0_35] : memref<8x2x128xf32, #tpu.memory_space<vmem>>, vector<1x2x128xf32>
    %48 = vector.shape_cast %47 : vector<1x2x128xf32> to vector<2x128xf32>
    %49 = vector.shape_cast %46 : vector<2x128xf32> to vector<1x2x128xf32>
    tpu.vector_store %arg10[%c3_33, %c0_34, %c0_35], %49 {strides = array<i32>} : memref<8x2x128xf32, #tpu.memory_space<vmem>>, vector<1x2x128xf32>,
    %c4 = arith.constant 4 : index
    %c0_36 = arith.constant 0 : index
    %c0_37 = arith.constant 0 : index
    %50 = vector.load %arg0[%c4, %c0_36, %c0_37] : memref<8x2x32xbf16, #tpu.memory_space<vmem>>, vector<1x2x32xbf16>
    %51 = vector.shape_cast %50 : vector<1x2x32xbf16> to vector<2x32xbf16>
    %cst_38 = arith.constant dense<0.000000e+00> : vector<2x128xf32>
    %52 = tpu.matmul %51, %13, %cst_38 {dimension_numbers = #tpu.dot_dimension_numbers<[1], [0], [0], [1], [0, 0, 1, 1], [], []>} : vector<2x32xbf16>, vector<32x128xbf16>, vector<2x128xf32> -> vector<2x128xf32>
    %53 = vector.broadcast %17 : vector<1x128xf32> to vector<2x128xf32>
    %54 = arith.addf %52, %53 : vector<2x128xf32>
    %c4_39 = arith.constant 4 : index
    %c0_40 = arith.constant 0 : index
    %c0_41 = arith.constant 0 : index
    %55 = vector.load %arg10[%c4_39, %c0_40, %c0_41] : memref<8x2x128xf32, #tpu.memory_space<vmem>>, vector<1x2x128xf32>
    %56 = vector.shape_cast %55 : vector<1x2x128xf32> to vector<2x128xf32>
    %57 = vector.shape_cast %54 : vector<2x128xf32> to vector<1x2x128xf32>
    tpu.vector_store %arg10[%c4_39, %c0_40, %c0_41], %57 {strides = array<i32>} : memref<8x2x128xf32, #tpu.memory_space<vmem>>, vector<1x2x128xf32>,
    %c5 = arith.constant 5 : index
    %c0_42 = arith.constant 0 : index
    %c0_43 = arith.constant 0 : index
    %58 = vector.load %arg0[%c5, %c0_42, %c0_43] : memref<8x2x32xbf16, #tpu.memory_space<vmem>>, vector<1x2x32xbf16>
    %59 = vector.shape_cast %58 : vector<1x2x32xbf16> to vector<2x32xbf16>
    %cst_44 = arith.constant dense<0.000000e+00> : vector<2x128xf32>
    %60 = tpu.matmul %59, %13, %cst_44 {dimension_numbers = #tpu.dot_dimension_numbers<[1], [0], [0], [1], [0, 0, 1, 1], [], []>} : vector<2x32xbf16>, vector<32x128xbf16>, vector<2x128xf32> -> vector<2x128xf32>
    %61 = vector.broadcast %17 : vector<1x128xf32> to vector<2x128xf32>
    %62 = arith.addf %60, %61 : vector<2x128xf32>
    %c5_45 = arith.constant 5 : index
    %c0_46 = arith.constant 0 : index
    %c0_47 = arith.constant 0 : index
    %63 = vector.load %arg10[%c5_45, %c0_46, %c0_47] : memref<8x2x128xf32, #tpu.memory_space<vmem>>, vector<1x2x128xf32>
    %64 = vector.shape_cast %63 : vector<1x2x128xf32> to vector<2x128xf32>
    %65 = vector.shape_cast %62 : vector<2x128xf32> to vector<1x2x128xf32>
    tpu.vector_store %arg10[%c5_45, %c0_46, %c0_47], %65 {strides = array<i32>} : memref<8x2x128xf32, #tpu.memory_space<vmem>>, vector<1x2x128xf32>,
    %c6 = arith.constant 6 : index
    %c0_48 = arith.constant 0 : index
    %c0_49 = arith.constant 0 : index
    %66 = vector.load %arg0[%c6, %c0_48, %c0_49] : memref<8x2x32xbf16, #tpu.memory_space<vmem>>, vector<1x2x32xbf16>
    %67 = vector.shape_cast %66 : vector<1x2x32xbf16> to vector<2x32xbf16>
    %cst_50 = arith.constant dense<0.000000e+00> : vector<2x128xf32>
    %68 = tpu.matmul %67, %13, %cst_50 {dimension_numbers = #tpu.dot_dimension_numbers<[1], [0], [0], [1], [0, 0, 1, 1], [], []>} : vector<2x32xbf16>, vector<32x128xbf16>, vector<2x128xf32> -> vector<2x128xf32>
    %69 = vector.broadcast %17 : vector<1x128xf32> to vector<2x128xf32>
    %70 = arith.addf %68, %69 : vector<2x128xf32>
    %c6_51 = arith.constant 6 : index
    %c0_52 = arith.constant 0 : index
    %c0_53 = arith.constant 0 : index
    %71 = vector.load %arg10[%c6_51, %c0_52, %c0_53] : memref<8x2x128xf32, #tpu.memory_space<vmem>>, vector<1x2x128xf32>
    %72 = vector.shape_cast %71 : vector<1x2x128xf32> to vector<2x128xf32>
    %73 = vector.shape_cast %70 : vector<2x128xf32> to vector<1x2x128xf32>
    tpu.vector_store %arg10[%c6_51, %c0_52, %c0_53], %73 {strides = array<i32>} : memref<8x2x128xf32, #tpu.memory_space<vmem>>, vector<1x2x128xf32>,
    %c7 = arith.constant 7 : index
    %c0_54 = arith.constant 0 : index
    %c0_55 = arith.constant 0 : index
    %74 = vector.load %arg0[%c7, %c0_54, %c0_55] : memref<8x2x32xbf16, #tpu.memory_space<vmem>>, vector<1x2x32xbf16>
    %75 = vector.shape_cast %74 : vector<1x2x32xbf16> to vector<2x32xbf16>
    %cst_56 = arith.constant dense<0.000000e+00> : vector<2x128xf32>
    %76 = tpu.matmul %75, %13, %cst_56 {dimension_numbers = #tpu.dot_dimension_numbers<[1], [0], [0], [1], [0, 0, 1, 1], [], []>} : vector<2x32xbf16>, vector<32x128xbf16>, vector<2x128xf32> -> vector<2x128xf32>
    %77 = vector.broadcast %17 : vector<1x128xf32> to vector<2x128xf32>
    %78 = arith.addf %76, %77 : vector<2x128xf32>
    %c7_57 = arith.constant 7 : index
    %c0_58 = arith.constant 0 : index
    %c0_59 = arith.constant 0 : index
    %79 = vector.load %arg10[%c7_57, %c0_58, %c0_59] : memref<8x2x128xf32, #tpu.memory_space<vmem>>, vector<1x2x128xf32>
    %80 = vector.shape_cast %79 : vector<1x2x128xf32> to vector<2x128xf32>
    %81 = vector.shape_cast %78 : vector<2x128xf32> to vector<1x2x128xf32>
    tpu.vector_store %arg10[%c7_57, %c0_58, %c0_59], %81 {strides = array<i32>} : memref<8x2x128xf32, #tpu.memory_space<vmem>>, vector<1x2x128xf32>,
    %c0_60 = arith.constant 0 : index
    %c0_61 = arith.constant 0 : index
    %c0_62 = arith.constant 0 : index
    %82 = vector.load %arg4[%c0_60, %c0_61, %c0_62] : memref<2x2x32xf32, #tpu.memory_space<vmem>>, vector<1x2x32xf32>
    %83 = vector.shape_cast %82 : vector<1x2x32xf32> to vector<2x32xf32>
    %c0_63 = arith.constant 0 : index
    %c0_64 = arith.constant 0 : index
    %c0_65 = arith.constant 0 : index
    %84 = vector.load %arg5[%c0_63, %c0_64, %c0_65] : memref<2x2x32xf32, #tpu.memory_space<vmem>>, vector<1x2x32xf32>
    %85 = vector.shape_cast %84 : vector<1x2x32xf32> to vector<2x32xf32>
    %c0_i32 = arith.constant 0 : i32
    %86 = arith.index_cast %c0_i32 : i32 to index
    %c0_66 = arith.constant 0 : index
    %c0_67 = arith.constant 0 : index
    %87 = vector.load %arg10[%86, %c0_66, %c0_67] : memref<8x2x128xf32, #tpu.memory_space<vmem>>, vector<1x2x128xf32>
    %88 = vector.shape_cast %87 : vector<1x2x128xf32> to vector<2x128xf32>
    %89 = arith.truncf %83 : vector<2x32xf32> to vector<2x32xbf16>
    %cst_68 = arith.constant dense<0.000000e+00> : vector<2x128xf32>
    %90 = tpu.matmul %89, %15, %cst_68 {dimension_numbers = #tpu.dot_dimension_numbers<[1], [0], [0], [1], [0, 0, 1, 1], [], []>} : vector<2x32xbf16>, vector<32x128xbf16>, vector<2x128xf32> -> vector<2x128xf32>
    %91 = arith.addf %88, %90 : vector<2x128xf32>
    %92 = arith.mulf %91, %8 : vector<2x128xf32>
    %93 = math.tanh %92 : vector<2x128xf32>
    %94 = arith.mulf %93, %8 : vector<2x128xf32>
    %95 = arith.addf %94, %11 : vector<2x128xf32>
    %96 = vector.extract_strided_slice %95 {offsets = [0, 0], sizes = [2, 32], strides = [1, 1]} : vector<2x128xf32> to vector<2x32xf32>
    %97 = vector.extract_strided_slice %95 {offsets = [0, 32], sizes = [2, 32], strides = [1, 1]} : vector<2x128xf32> to vector<2x32xf32>
    %98 = vector.extract_strided_slice %95 {offsets = [0, 64], sizes = [2, 32], strides = [1, 1]} : vector<2x128xf32> to vector<2x32xf32>
    %99 = vector.extract_strided_slice %95 {offsets = [0, 96], sizes = [2, 32], strides = [1, 1]} : vector<2x128xf32> to vector<2x32xf32>
    %100 = arith.mulf %97, %85 : vector<2x32xf32>
    %101 = arith.mulf %96, %98 : vector<2x32xf32>
    %102 = arith.addf %100, %101 : vector<2x32xf32>
    %103 = math.tanh %102 : vector<2x32xf32>
    %104 = arith.mulf %99, %103 : vector<2x32xf32>
    %105 = arith.truncf %104 : vector<2x32xf32> to vector<2x32xbf16>
    %106 = arith.index_cast %c0_i32 : i32 to index
    %c0_69 = arith.constant 0 : index
    %c0_70 = arith.constant 0 : index
    %107 = vector.load %arg9[%106, %c0_69, %c0_70] : memref<8x2x32xbf16, #tpu.memory_space<vmem>>, vector<1x2x32xbf16>
    %108 = vector.shape_cast %107 : vector<1x2x32xbf16> to vector<2x32xbf16>
    %109 = vector.shape_cast %105 : vector<2x32xbf16> to vector<1x2x32xbf16>
    tpu.vector_store %arg9[%106, %c0_69, %c0_70], %109 {strides = array<i32>} : memref<8x2x32xbf16, #tpu.memory_space<vmem>>, vector<1x2x32xbf16>,
    %c1_i32 = arith.constant 1 : i32
    %110 = arith.index_cast %c1_i32 : i32 to index
    %c0_71 = arith.constant 0 : index
    %c0_72 = arith.constant 0 : index
    %111 = vector.load %arg10[%110, %c0_71, %c0_72] : memref<8x2x128xf32, #tpu.memory_space<vmem>>, vector<1x2x128xf32>
    %112 = vector.shape_cast %111 : vector<1x2x128xf32> to vector<2x128xf32>
    %113 = arith.truncf %104 : vector<2x32xf32> to vector<2x32xbf16>
    %cst_73 = arith.constant dense<0.000000e+00> : vector<2x128xf32>
    %114 = tpu.matmul %113, %15, %cst_73 {dimension_numbers = #tpu.dot_dimension_numbers<[1], [0], [0], [1], [0, 0, 1, 1], [], []>} : vector<2x32xbf16>, vector<32x128xbf16>, vector<2x128xf32> -> vector<2x128xf32>
    %115 = arith.addf %112, %114 : vector<2x128xf32>
    %116 = arith.mulf %115, %8 : vector<2x128xf32>
    %117 = math.tanh %116 : vector<2x128xf32>
    %118 = arith.mulf %117, %8 : vector<2x128xf32>
    %119 = arith.addf %118, %11 : vector<2x128xf32>
    %120 = vector.extract_strided_slice %119 {offsets = [0, 0], sizes = [2, 32], strides = [1, 1]} : vector<2x128xf32> to vector<2x32xf32>
    %121 = vector.extract_strided_slice %119 {offsets = [0, 32], sizes = [2, 32], strides = [1, 1]} : vector<2x128xf32> to vector<2x32xf32>
    %122 = vector.extract_strided_slice %119 {offsets = [0, 64], sizes = [2, 32], strides = [1, 1]} : vector<2x128xf32> to vector<2x32xf32>
    %123 = vector.extract_strided_slice %119 {offsets = [0, 96], sizes = [2, 32], strides = [1, 1]} : vector<2x128xf32> to vector<2x32xf32>
    %124 = arith.mulf %121, %102 : vector<2x32xf32>
    %125 = arith.mulf %120, %122 : vector<2x32xf32>
    %126 = arith.addf %124, %125 : vector<2x32xf32>
    %127 = math.tanh %126 : vector<2x32xf32>
    %128 = arith.mulf %123, %127 : vector<2x32xf32>
    %129 = arith.truncf %128 : vector<2x32xf32> to vector<2x32xbf16>
    %130 = arith.index_cast %c1_i32 : i32 to index
    %c0_74 = arith.constant 0 : index
    %c0_75 = arith.constant 0 : index
    %131 = vector.load %arg9[%130, %c0_74, %c0_75] : memref<8x2x32xbf16, #tpu.memory_space<vmem>>, vector<1x2x32xbf16>
    %132 = vector.shape_cast %131 : vector<1x2x32xbf16> to vector<2x32xbf16>
    %133 = vector.shape_cast %129 : vector<2x32xbf16> to vector<1x2x32xbf16>
    tpu.vector_store %arg9[%130, %c0_74, %c0_75], %133 {strides = array<i32>} : memref<8x2x32xbf16, #tpu.memory_space<vmem>>, vector<1x2x32xbf16>,
    %c2_i32 = arith.constant 2 : i32
    %134 = arith.index_cast %c2_i32 : i32 to index
    %c0_76 = arith.constant 0 : index
    %c0_77 = arith.constant 0 : index
    %135 = vector.load %arg10[%134, %c0_76, %c0_77] : memref<8x2x128xf32, #tpu.memory_space<vmem>>, vector<1x2x128xf32>
    %136 = vector.shape_cast %135 : vector<1x2x128xf32> to vector<2x128xf32>
    %137 = arith.truncf %128 : vector<2x32xf32> to vector<2x32xbf16>
    %cst_78 = arith.constant dense<0.000000e+00> : vector<2x128xf32>
    %138 = tpu.matmul %137, %15, %cst_78 {dimension_numbers = #tpu.dot_dimension_numbers<[1], [0], [0], [1], [0, 0, 1, 1], [], []>} : vector<2x32xbf16>, vector<32x128xbf16>, vector<2x128xf32> -> vector<2x128xf32>
    %139 = arith.addf %136, %138 : vector<2x128xf32>
    %140 = arith.mulf %139, %8 : vector<2x128xf32>
    %141 = math.tanh %140 : vector<2x128xf32>
    %142 = arith.mulf %141, %8 : vector<2x128xf32>
    %143 = arith.addf %142, %11 : vector<2x128xf32>
    %144 = vector.extract_strided_slice %143 {offsets = [0, 0], sizes = [2, 32], strides = [1, 1]} : vector<2x128xf32> to vector<2x32xf32>
    %145 = vector.extract_strided_slice %143 {offsets = [0, 32], sizes = [2, 32], strides = [1, 1]} : vector<2x128xf32> to vector<2x32xf32>
    %146 = vector.extract_strided_slice %143 {offsets = [0, 64], sizes = [2, 32], strides = [1, 1]} : vector<2x128xf32> to vector<2x32xf32>
    %147 = vector.extract_strided_slice %143 {offsets = [0, 96], sizes = [2, 32], strides = [1, 1]} : vector<2x128xf32> to vector<2x32xf32>
    %148 = arith.mulf %145, %126 : vector<2x32xf32>
    %149 = arith.mulf %144, %146 : vector<2x32xf32>
    %150 = arith.addf %148, %149 : vector<2x32xf32>
    %151 = math.tanh %150 : vector<2x32xf32>
    %152 = arith.mulf %147, %151 : vector<2x32xf32>
    %153 = arith.truncf %152 : vector<2x32xf32> to vector<2x32xbf16>
    %154 = arith.index_cast %c2_i32 : i32 to index
    %c0_79 = arith.constant 0 : index
    %c0_80 = arith.constant 0 : index
    %155 = vector.load %arg9[%154, %c0_79, %c0_80] : memref<8x2x32xbf16, #tpu.memory_space<vmem>>, vector<1x2x32xbf16>
    %156 = vector.shape_cast %155 : vector<1x2x32xbf16> to vector<2x32xbf16>
    %157 = vector.shape_cast %153 : vector<2x32xbf16> to vector<1x2x32xbf16>
    tpu.vector_store %arg9[%154, %c0_79, %c0_80], %157 {strides = array<i32>} : memref<8x2x32xbf16, #tpu.memory_space<vmem>>, vector<1x2x32xbf16>,
    %c3_i32 = arith.constant 3 : i32
    %158 = arith.index_cast %c3_i32 : i32 to index
    %c0_81 = arith.constant 0 : index
    %c0_82 = arith.constant 0 : index
    %159 = vector.load %arg10[%158, %c0_81, %c0_82] : memref<8x2x128xf32, #tpu.memory_space<vmem>>, vector<1x2x128xf32>
    %160 = vector.shape_cast %159 : vector<1x2x128xf32> to vector<2x128xf32>
    %161 = arith.truncf %152 : vector<2x32xf32> to vector<2x32xbf16>
    %cst_83 = arith.constant dense<0.000000e+00> : vector<2x128xf32>
    %162 = tpu.matmul %161, %15, %cst_83 {dimension_numbers = #tpu.dot_dimension_numbers<[1], [0], [0], [1], [0, 0, 1, 1], [], []>} : vector<2x32xbf16>, vector<32x128xbf16>, vector<2x128xf32> -> vector<2x128xf32>
    %163 = arith.addf %160, %162 : vector<2x128xf32>
    %164 = arith.mulf %163, %8 : vector<2x128xf32>
    %165 = math.tanh %164 : vector<2x128xf32>
    %166 = arith.mulf %165, %8 : vector<2x128xf32>
    %167 = arith.addf %166, %11 : vector<2x128xf32>
    %168 = vector.extract_strided_slice %167 {offsets = [0, 0], sizes = [2, 32], strides = [1, 1]} : vector<2x128xf32> to vector<2x32xf32>
    %169 = vector.extract_strided_slice %167 {offsets = [0, 32], sizes = [2, 32], strides = [1, 1]} : vector<2x128xf32> to vector<2x32xf32>
    %170 = vector.extract_strided_slice %167 {offsets = [0, 64], sizes = [2, 32], strides = [1, 1]} : vector<2x128xf32> to vector<2x32xf32>
    %171 = vector.extract_strided_slice %167 {offsets = [0, 96], sizes = [2, 32], strides = [1, 1]} : vector<2x128xf32> to vector<2x32xf32>
    %172 = arith.mulf %169, %150 : vector<2x32xf32>
    %173 = arith.mulf %168, %170 : vector<2x32xf32>
    %174 = arith.addf %172, %173 : vector<2x32xf32>
    %175 = math.tanh %174 : vector<2x32xf32>
    %176 = arith.mulf %171, %175 : vector<2x32xf32>
    %177 = arith.truncf %176 : vector<2x32xf32> to vector<2x32xbf16>
    %178 = arith.index_cast %c3_i32 : i32 to index
    %c0_84 = arith.constant 0 : index
    %c0_85 = arith.constant 0 : index
    %179 = vector.load %arg9[%178, %c0_84, %c0_85] : memref<8x2x32xbf16, #tpu.memory_space<vmem>>, vector<1x2x32xbf16>
    %180 = vector.shape_cast %179 : vector<1x2x32xbf16> to vector<2x32xbf16>
    %181 = vector.shape_cast %177 : vector<2x32xbf16> to vector<1x2x32xbf16>
    tpu.vector_store %arg9[%178, %c0_84, %c0_85], %181 {strides = array<i32>} : memref<8x2x32xbf16, #tpu.memory_space<vmem>>, vector<1x2x32xbf16>,
    %c4_i32 = arith.constant 4 : i32
    %182 = arith.index_cast %c4_i32 : i32 to index
    %c0_86 = arith.constant 0 : index
    %c0_87 = arith.constant 0 : index
    %183 = vector.load %arg10[%182, %c0_86, %c0_87] : memref<8x2x128xf32, #tpu.memory_space<vmem>>, vector<1x2x128xf32>
    %184 = vector.shape_cast %183 : vector<1x2x128xf32> to vector<2x128xf32>
    %185 = arith.truncf %176 : vector<2x32xf32> to vector<2x32xbf16>
    %cst_88 = arith.constant dense<0.000000e+00> : vector<2x128xf32>
    %186 = tpu.matmul %185, %15, %cst_88 {dimension_numbers = #tpu.dot_dimension_numbers<[1], [0], [0], [1], [0, 0, 1, 1], [], []>} : vector<2x32xbf16>, vector<32x128xbf16>, vector<2x128xf32> -> vector<2x128xf32>
    %187 = arith.addf %184, %186 : vector<2x128xf32>
    %188 = arith.mulf %187, %8 : vector<2x128xf32>
    %189 = math.tanh %188 : vector<2x128xf32>
    %190 = arith.mulf %189, %8 : vector<2x128xf32>
    %191 = arith.addf %190, %11 : vector<2x128xf32>
    %192 = vector.extract_strided_slice %191 {offsets = [0, 0], sizes = [2, 32], strides = [1, 1]} : vector<2x128xf32> to vector<2x32xf32>
    %193 = vector.extract_strided_slice %191 {offsets = [0, 32], sizes = [2, 32], strides = [1, 1]} : vector<2x128xf32> to vector<2x32xf32>
    %194 = vector.extract_strided_slice %191 {offsets = [0, 64], sizes = [2, 32], strides = [1, 1]} : vector<2x128xf32> to vector<2x32xf32>
    %195 = vector.extract_strided_slice %191 {offsets = [0, 96], sizes = [2, 32], strides = [1, 1]} : vector<2x128xf32> to vector<2x32xf32>
    %196 = arith.mulf %193, %174 : vector<2x32xf32>
    %197 = arith.mulf %192, %194 : vector<2x32xf32>
    %198 = arith.addf %196, %197 : vector<2x32xf32>
    %199 = math.tanh %198 : vector<2x32xf32>
    %200 = arith.mulf %195, %199 : vector<2x32xf32>
    %201 = arith.truncf %200 : vector<2x32xf32> to vector<2x32xbf16>
    %202 = arith.index_cast %c4_i32 : i32 to index
    %c0_89 = arith.constant 0 : index
    %c0_90 = arith.constant 0 : index
    %203 = vector.load %arg9[%202, %c0_89, %c0_90] : memref<8x2x32xbf16, #tpu.memory_space<vmem>>, vector<1x2x32xbf16>
    %204 = vector.shape_cast %203 : vector<1x2x32xbf16> to vector<2x32xbf16>
    %205 = vector.shape_cast %201 : vector<2x32xbf16> to vector<1x2x32xbf16>
    tpu.vector_store %arg9[%202, %c0_89, %c0_90], %205 {strides = array<i32>} : memref<8x2x32xbf16, #tpu.memory_space<vmem>>, vector<1x2x32xbf16>,
    %c5_i32 = arith.constant 5 : i32
    %206 = arith.index_cast %c5_i32 : i32 to index
    %c0_91 = arith.constant 0 : index
    %c0_92 = arith.constant 0 : index
    %207 = vector.load %arg10[%206, %c0_91, %c0_92] : memref<8x2x128xf32, #tpu.memory_space<vmem>>, vector<1x2x128xf32>
    %208 = vector.shape_cast %207 : vector<1x2x128xf32> to vector<2x128xf32>
    %209 = arith.truncf %200 : vector<2x32xf32> to vector<2x32xbf16>
    %cst_93 = arith.constant dense<0.000000e+00> : vector<2x128xf32>
    %210 = tpu.matmul %209, %15, %cst_93 {dimension_numbers = #tpu.dot_dimension_numbers<[1], [0], [0], [1], [0, 0, 1, 1], [], []>} : vector<2x32xbf16>, vector<32x128xbf16>, vector<2x128xf32> -> vector<2x128xf32>
    %211 = arith.addf %208, %210 : vector<2x128xf32>
    %212 = arith.mulf %211, %8 : vector<2x128xf32>
    %213 = math.tanh %212 : vector<2x128xf32>
    %214 = arith.mulf %213, %8 : vector<2x128xf32>
    %215 = arith.addf %214, %11 : vector<2x128xf32>
    %216 = vector.extract_strided_slice %215 {offsets = [0, 0], sizes = [2, 32], strides = [1, 1]} : vector<2x128xf32> to vector<2x32xf32>
    %217 = vector.extract_strided_slice %215 {offsets = [0, 32], sizes = [2, 32], strides = [1, 1]} : vector<2x128xf32> to vector<2x32xf32>
    %218 = vector.extract_strided_slice %215 {offsets = [0, 64], sizes = [2, 32], strides = [1, 1]} : vector<2x128xf32> to vector<2x32xf32>
    %219 = vector.extract_strided_slice %215 {offsets = [0, 96], sizes = [2, 32], strides = [1, 1]} : vector<2x128xf32> to vector<2x32xf32>
    %220 = arith.mulf %217, %198 : vector<2x32xf32>
    %221 = arith.mulf %216, %218 : vector<2x32xf32>
    %222 = arith.addf %220, %221 : vector<2x32xf32>
    %223 = math.tanh %222 : vector<2x32xf32>
    %224 = arith.mulf %219, %223 : vector<2x32xf32>
    %225 = arith.truncf %224 : vector<2x32xf32> to vector<2x32xbf16>
    %226 = arith.index_cast %c5_i32 : i32 to index
    %c0_94 = arith.constant 0 : index
    %c0_95 = arith.constant 0 : index
    %227 = vector.load %arg9[%226, %c0_94, %c0_95] : memref<8x2x32xbf16, #tpu.memory_space<vmem>>, vector<1x2x32xbf16>
    %228 = vector.shape_cast %227 : vector<1x2x32xbf16> to vector<2x32xbf16>
    %229 = vector.shape_cast %225 : vector<2x32xbf16> to vector<1x2x32xbf16>
    tpu.vector_store %arg9[%226, %c0_94, %c0_95], %229 {strides = array<i32>} : memref<8x2x32xbf16, #tpu.memory_space<vmem>>, vector<1x2x32xbf16>,
    %c6_i32 = arith.constant 6 : i32
    %230 = arith.index_cast %c6_i32 : i32 to index
    %c0_96 = arith.constant 0 : index
    %c0_97 = arith.constant 0 : index
    %231 = vector.load %arg10[%230, %c0_96, %c0_97] : memref<8x2x128xf32, #tpu.memory_space<vmem>>, vector<1x2x128xf32>
    %232 = vector.shape_cast %231 : vector<1x2x128xf32> to vector<2x128xf32>
    %233 = arith.truncf %224 : vector<2x32xf32> to vector<2x32xbf16>
    %cst_98 = arith.constant dense<0.000000e+00> : vector<2x128xf32>
    %234 = tpu.matmul %233, %15, %cst_98 {dimension_numbers = #tpu.dot_dimension_numbers<[1], [0], [0], [1], [0, 0, 1, 1], [], []>} : vector<2x32xbf16>, vector<32x128xbf16>, vector<2x128xf32> -> vector<2x128xf32>
    %235 = arith.addf %232, %234 : vector<2x128xf32>
    %236 = arith.mulf %235, %8 : vector<2x128xf32>
    %237 = math.tanh %236 : vector<2x128xf32>
    %238 = arith.mulf %237, %8 : vector<2x128xf32>
    %239 = arith.addf %238, %11 : vector<2x128xf32>
    %240 = vector.extract_strided_slice %239 {offsets = [0, 0], sizes = [2, 32], strides = [1, 1]} : vector<2x128xf32> to vector<2x32xf32>
    %241 = vector.extract_strided_slice %239 {offsets = [0, 32], sizes = [2, 32], strides = [1, 1]} : vector<2x128xf32> to vector<2x32xf32>
    %242 = vector.extract_strided_slice %239 {offsets = [0, 64], sizes = [2, 32], strides = [1, 1]} : vector<2x128xf32> to vector<2x32xf32>
    %243 = vector.extract_strided_slice %239 {offsets = [0, 96], sizes = [2, 32], strides = [1, 1]} : vector<2x128xf32> to vector<2x32xf32>
    %244 = arith.mulf %241, %222 : vector<2x32xf32>
    %245 = arith.mulf %240, %242 : vector<2x32xf32>
    %246 = arith.addf %244, %245 : vector<2x32xf32>
    %247 = math.tanh %246 : vector<2x32xf32>
    %248 = arith.mulf %243, %247 : vector<2x32xf32>
    %249 = arith.truncf %248 : vector<2x32xf32> to vector<2x32xbf16>
    %250 = arith.index_cast %c6_i32 : i32 to index
    %c0_99 = arith.constant 0 : index
    %c0_100 = arith.constant 0 : index
    %251 = vector.load %arg9[%250, %c0_99, %c0_100] : memref<8x2x32xbf16, #tpu.memory_space<vmem>>, vector<1x2x32xbf16>
    %252 = vector.shape_cast %251 : vector<1x2x32xbf16> to vector<2x32xbf16>
    %253 = vector.shape_cast %249 : vector<2x32xbf16> to vector<1x2x32xbf16>
    tpu.vector_store %arg9[%250, %c0_99, %c0_100], %253 {strides = array<i32>} : memref<8x2x32xbf16, #tpu.memory_space<vmem>>, vector<1x2x32xbf16>,
    %c7_i32 = arith.constant 7 : i32
    %254 = arith.index_cast %c7_i32 : i32 to index
    %c0_101 = arith.constant 0 : index
    %c0_102 = arith.constant 0 : index
    %255 = vector.load %arg10[%254, %c0_101, %c0_102] : memref<8x2x128xf32, #tpu.memory_space<vmem>>, vector<1x2x128xf32>
    %256 = vector.shape_cast %255 : vector<1x2x128xf32> to vector<2x128xf32>
    %257 = arith.truncf %248 : vector<2x32xf32> to vector<2x32xbf16>
    %cst_103 = arith.constant dense<0.000000e+00> : vector<2x128xf32>
    %258 = tpu.matmul %257, %15, %cst_103 {dimension_numbers = #tpu.dot_dimension_numbers<[1], [0], [0], [1], [0, 0, 1, 1], [], []>} : vector<2x32xbf16>, vector<32x128xbf16>, vector<2x128xf32> -> vector<2x128xf32>
    %259 = arith.addf %256, %258 : vector<2x128xf32>
    %260 = arith.mulf %259, %8 : vector<2x128xf32>
    %261 = math.tanh %260 : vector<2x128xf32>
    %262 = arith.mulf %261, %8 : vector<2x128xf32>
    %263 = arith.addf %262, %11 : vector<2x128xf32>
    %264 = vector.extract_strided_slice %263 {offsets = [0, 0], sizes = [2, 32], strides = [1, 1]} : vector<2x128xf32> to vector<2x32xf32>
    %265 = vector.extract_strided_slice %263 {offsets = [0, 32], sizes = [2, 32], strides = [1, 1]} : vector<2x128xf32> to vector<2x32xf32>
    %266 = vector.extract_strided_slice %263 {offsets = [0, 64], sizes = [2, 32], strides = [1, 1]} : vector<2x128xf32> to vector<2x32xf32>
    %267 = vector.extract_strided_slice %263 {offsets = [0, 96], sizes = [2, 32], strides = [1, 1]} : vector<2x128xf32> to vector<2x32xf32>
    %268 = arith.mulf %265, %246 : vector<2x32xf32>
    %269 = arith.mulf %264, %266 : vector<2x32xf32>
    %270 = arith.addf %268, %269 : vector<2x32xf32>
    %271 = math.tanh %270 : vector<2x32xf32>
    %272 = arith.mulf %267, %271 : vector<2x32xf32>
    %273 = arith.truncf %272 : vector<2x32xf32> to vector<2x32xbf16>
    %274 = arith.index_cast %c7_i32 : i32 to index
    %c0_104 = arith.constant 0 : index
    %c0_105 = arith.constant 0 : index
    %275 = vector.load %arg9[%274, %c0_104, %c0_105] : memref<8x2x32xbf16, #tpu.memory_space<vmem>>, vector<1x2x32xbf16>
    %276 = vector.shape_cast %275 : vector<1x2x32xbf16> to vector<2x32xbf16>
    %277 = vector.shape_cast %273 : vector<2x32xbf16> to vector<1x2x32xbf16>
    tpu.vector_store %arg9[%274, %c0_104, %c0_105], %277 {strides = array<i32>} : memref<8x2x32xbf16, #tpu.memory_space<vmem>>, vector<1x2x32xbf16>,
    %c8_i32 = arith.constant 8 : i32
    %c1_106 = arith.constant 1 : index
    %c0_107 = arith.constant 0 : index
    %c0_108 = arith.constant 0 : index
    %278 = vector.load %arg1[%c1_106, %c0_107, %c0_108] : memref<2x32x128xbf16, #tpu.memory_space<vmem>>, vector<1x32x128xbf16>
    %279 = vector.shape_cast %278 : vector<1x32x128xbf16> to vector<32x128xbf16>
    %c1_109 = arith.constant 1 : index
    %c0_110 = arith.constant 0 : index
    %c0_111 = arith.constant 0 : index
    %280 = vector.load %arg2[%c1_109, %c0_110, %c0_111] : memref<2x32x128xbf16, #tpu.memory_space<vmem>>, vector<1x32x128xbf16>
    %281 = vector.shape_cast %280 : vector<1x32x128xbf16> to vector<32x128xbf16>
    %c1_112 = arith.constant 1 : index
    %c0_113 = arith.constant 0 : index
    %c0_114 = arith.constant 0 : index
    %282 = vector.load %arg3[%c1_112, %c0_113, %c0_114] : memref<2x1x128xf32, #tpu.memory_space<vmem>>, vector<1x1x128xf32>
    %283 = vector.shape_cast %282 : vector<1x1x128xf32> to vector<1x128xf32>
    %c0_115 = arith.constant 0 : index
    %c0_116 = arith.constant 0 : index
    %c0_117 = arith.constant 0 : index
    %284 = vector.load %arg9[%c0_115, %c0_116, %c0_117] : memref<8x2x32xbf16, #tpu.memory_space<vmem>>, vector<1x2x32xbf16>
    %285 = vector.shape_cast %284 : vector<1x2x32xbf16> to vector<2x32xbf16>
    %cst_118 = arith.constant dense<0.000000e+00> : vector<2x128xf32>
    %286 = tpu.matmul %285, %279, %cst_118 {dimension_numbers = #tpu.dot_dimension_numbers<[1], [0], [0], [1], [0, 0, 1, 1], [], []>} : vector<2x32xbf16>, vector<32x128xbf16>, vector<2x128xf32> -> vector<2x128xf32>
    %287 = vector.broadcast %283 : vector<1x128xf32> to vector<2x128xf32>
    %288 = arith.addf %286, %287 : vector<2x128xf32>
    %c0_119 = arith.constant 0 : index
    %c0_120 = arith.constant 0 : index
    %c0_121 = arith.constant 0 : index
    %289 = vector.load %arg10[%c0_119, %c0_120, %c0_121] : memref<8x2x128xf32, #tpu.memory_space<vmem>>, vector<1x2x128xf32>
    %290 = vector.shape_cast %289 : vector<1x2x128xf32> to vector<2x128xf32>
    %291 = vector.shape_cast %288 : vector<2x128xf32> to vector<1x2x128xf32>
    tpu.vector_store %arg10[%c0_119, %c0_120, %c0_121], %291 {strides = array<i32>} : memref<8x2x128xf32, #tpu.memory_space<vmem>>, vector<1x2x128xf32>,
    %c1_122 = arith.constant 1 : index
    %c0_123 = arith.constant 0 : index
    %c0_124 = arith.constant 0 : index
    %292 = vector.load %arg9[%c1_122, %c0_123, %c0_124] : memref<8x2x32xbf16, #tpu.memory_space<vmem>>, vector<1x2x32xbf16>
    %293 = vector.shape_cast %292 : vector<1x2x32xbf16> to vector<2x32xbf16>
    %cst_125 = arith.constant dense<0.000000e+00> : vector<2x128xf32>
    %294 = tpu.matmul %293, %279, %cst_125 {dimension_numbers = #tpu.dot_dimension_numbers<[1], [0], [0], [1], [0, 0, 1, 1], [], []>} : vector<2x32xbf16>, vector<32x128xbf16>, vector<2x128xf32> -> vector<2x128xf32>
    %295 = vector.broadcast %283 : vector<1x128xf32> to vector<2x128xf32>
    %296 = arith.addf %294, %295 : vector<2x128xf32>
    %c1_126 = arith.constant 1 : index
    %c0_127 = arith.constant 0 : index
    %c0_128 = arith.constant 0 : index
    %297 = vector.load %arg10[%c1_126, %c0_127, %c0_128] : memref<8x2x128xf32, #tpu.memory_space<vmem>>, vector<1x2x128xf32>
    %298 = vector.shape_cast %297 : vector<1x2x128xf32> to vector<2x128xf32>
    %299 = vector.shape_cast %296 : vector<2x128xf32> to vector<1x2x128xf32>
    tpu.vector_store %arg10[%c1_126, %c0_127, %c0_128], %299 {strides = array<i32>} : memref<8x2x128xf32, #tpu.memory_space<vmem>>, vector<1x2x128xf32>,
    %c2_129 = arith.constant 2 : index
    %c0_130 = arith.constant 0 : index
    %c0_131 = arith.constant 0 : index
    %300 = vector.load %arg9[%c2_129, %c0_130, %c0_131] : memref<8x2x32xbf16, #tpu.memory_space<vmem>>, vector<1x2x32xbf16>
    %301 = vector.shape_cast %300 : vector<1x2x32xbf16> to vector<2x32xbf16>
    %cst_132 = arith.constant dense<0.000000e+00> : vector<2x128xf32>
    %302 = tpu.matmul %301, %279, %cst_132 {dimension_numbers = #tpu.dot_dimension_numbers<[1], [0], [0], [1], [0, 0, 1, 1], [], []>} : vector<2x32xbf16>, vector<32x128xbf16>, vector<2x128xf32> -> vector<2x128xf32>
    %303 = vector.broadcast %283 : vector<1x128xf32> to vector<2x128xf32>
    %304 = arith.addf %302, %303 : vector<2x128xf32>
    %c2_133 = arith.constant 2 : index
    %c0_134 = arith.constant 0 : index
    %c0_135 = arith.constant 0 : index
    %305 = vector.load %arg10[%c2_133, %c0_134, %c0_135] : memref<8x2x128xf32, #tpu.memory_space<vmem>>, vector<1x2x128xf32>
    %306 = vector.shape_cast %305 : vector<1x2x128xf32> to vector<2x128xf32>
    %307 = vector.shape_cast %304 : vector<2x128xf32> to vector<1x2x128xf32>
    tpu.vector_store %arg10[%c2_133, %c0_134, %c0_135], %307 {strides = array<i32>} : memref<8x2x128xf32, #tpu.memory_space<vmem>>, vector<1x2x128xf32>,
    %c3_136 = arith.constant 3 : index
    %c0_137 = arith.constant 0 : index
    %c0_138 = arith.constant 0 : index
    %308 = vector.load %arg9[%c3_136, %c0_137, %c0_138] : memref<8x2x32xbf16, #tpu.memory_space<vmem>>, vector<1x2x32xbf16>
    %309 = vector.shape_cast %308 : vector<1x2x32xbf16> to vector<2x32xbf16>
    %cst_139 = arith.constant dense<0.000000e+00> : vector<2x128xf32>
    %310 = tpu.matmul %309, %279, %cst_139 {dimension_numbers = #tpu.dot_dimension_numbers<[1], [0], [0], [1], [0, 0, 1, 1], [], []>} : vector<2x32xbf16>, vector<32x128xbf16>, vector<2x128xf32> -> vector<2x128xf32>
    %311 = vector.broadcast %283 : vector<1x128xf32> to vector<2x128xf32>
    %312 = arith.addf %310, %311 : vector<2x128xf32>
    %c3_140 = arith.constant 3 : index
    %c0_141 = arith.constant 0 : index
    %c0_142 = arith.constant 0 : index
    %313 = vector.load %arg10[%c3_140, %c0_141, %c0_142] : memref<8x2x128xf32, #tpu.memory_space<vmem>>, vector<1x2x128xf32>
    %314 = vector.shape_cast %313 : vector<1x2x128xf32> to vector<2x128xf32>
    %315 = vector.shape_cast %312 : vector<2x128xf32> to vector<1x2x128xf32>
    tpu.vector_store %arg10[%c3_140, %c0_141, %c0_142], %315 {strides = array<i32>} : memref<8x2x128xf32, #tpu.memory_space<vmem>>, vector<1x2x128xf32>,
    %c4_143 = arith.constant 4 : index
    %c0_144 = arith.constant 0 : index
    %c0_145 = arith.constant 0 : index
    %316 = vector.load %arg9[%c4_143, %c0_144, %c0_145] : memref<8x2x32xbf16, #tpu.memory_space<vmem>>, vector<1x2x32xbf16>
    %317 = vector.shape_cast %316 : vector<1x2x32xbf16> to vector<2x32xbf16>
    %cst_146 = arith.constant dense<0.000000e+00> : vector<2x128xf32>
    %318 = tpu.matmul %317, %279, %cst_146 {dimension_numbers = #tpu.dot_dimension_numbers<[1], [0], [0], [1], [0, 0, 1, 1], [], []>} : vector<2x32xbf16>, vector<32x128xbf16>, vector<2x128xf32> -> vector<2x128xf32>
    %319 = vector.broadcast %283 : vector<1x128xf32> to vector<2x128xf32>
    %320 = arith.addf %318, %319 : vector<2x128xf32>
    %c4_147 = arith.constant 4 : index
    %c0_148 = arith.constant 0 : index
    %c0_149 = arith.constant 0 : index
    %321 = vector.load %arg10[%c4_147, %c0_148, %c0_149] : memref<8x2x128xf32, #tpu.memory_space<vmem>>, vector<1x2x128xf32>
    %322 = vector.shape_cast %321 : vector<1x2x128xf32> to vector<2x128xf32>
    %323 = vector.shape_cast %320 : vector<2x128xf32> to vector<1x2x128xf32>
    tpu.vector_store %arg10[%c4_147, %c0_148, %c0_149], %323 {strides = array<i32>} : memref<8x2x128xf32, #tpu.memory_space<vmem>>, vector<1x2x128xf32>,
    %c5_150 = arith.constant 5 : index
    %c0_151 = arith.constant 0 : index
    %c0_152 = arith.constant 0 : index
    %324 = vector.load %arg9[%c5_150, %c0_151, %c0_152] : memref<8x2x32xbf16, #tpu.memory_space<vmem>>, vector<1x2x32xbf16>
    %325 = vector.shape_cast %324 : vector<1x2x32xbf16> to vector<2x32xbf16>
    %cst_153 = arith.constant dense<0.000000e+00> : vector<2x128xf32>
    %326 = tpu.matmul %325, %279, %cst_153 {dimension_numbers = #tpu.dot_dimension_numbers<[1], [0], [0], [1], [0, 0, 1, 1], [], []>} : vector<2x32xbf16>, vector<32x128xbf16>, vector<2x128xf32> -> vector<2x128xf32>
    %327 = vector.broadcast %283 : vector<1x128xf32> to vector<2x128xf32>
    %328 = arith.addf %326, %327 : vector<2x128xf32>
    %c5_154 = arith.constant 5 : index
    %c0_155 = arith.constant 0 : index
    %c0_156 = arith.constant 0 : index
    %329 = vector.load %arg10[%c5_154, %c0_155, %c0_156] : memref<8x2x128xf32, #tpu.memory_space<vmem>>, vector<1x2x128xf32>
    %330 = vector.shape_cast %329 : vector<1x2x128xf32> to vector<2x128xf32>
    %331 = vector.shape_cast %328 : vector<2x128xf32> to vector<1x2x128xf32>
    tpu.vector_store %arg10[%c5_154, %c0_155, %c0_156], %331 {strides = array<i32>} : memref<8x2x128xf32, #tpu.memory_space<vmem>>, vector<1x2x128xf32>,
    %c6_157 = arith.constant 6 : index
    %c0_158 = arith.constant 0 : index
    %c0_159 = arith.constant 0 : index
    %332 = vector.load %arg9[%c6_157, %c0_158, %c0_159] : memref<8x2x32xbf16, #tpu.memory_space<vmem>>, vector<1x2x32xbf16>
    %333 = vector.shape_cast %332 : vector<1x2x32xbf16> to vector<2x32xbf16>
    %cst_160 = arith.constant dense<0.000000e+00> : vector<2x128xf32>
    %334 = tpu.matmul %333, %279, %cst_160 {dimension_numbers = #tpu.dot_dimension_numbers<[1], [0], [0], [1], [0, 0, 1, 1], [], []>} : vector<2x32xbf16>, vector<32x128xbf16>, vector<2x128xf32> -> vector<2x128xf32>
    %335 = vector.broadcast %283 : vector<1x128xf32> to vector<2x128xf32>
    %336 = arith.addf %334, %335 : vector<2x128xf32>
    %c6_161 = arith.constant 6 : index
    %c0_162 = arith.constant 0 : index
    %c0_163 = arith.constant 0 : index
    %337 = vector.load %arg10[%c6_161, %c0_162, %c0_163] : memref<8x2x128xf32, #tpu.memory_space<vmem>>, vector<1x2x128xf32>
    %338 = vector.shape_cast %337 : vector<1x2x128xf32> to vector<2x128xf32>
    %339 = vector.shape_cast %336 : vector<2x128xf32> to vector<1x2x128xf32>
    tpu.vector_store %arg10[%c6_161, %c0_162, %c0_163], %339 {strides = array<i32>} : memref<8x2x128xf32, #tpu.memory_space<vmem>>, vector<1x2x128xf32>,
    %c7_164 = arith.constant 7 : index
    %c0_165 = arith.constant 0 : index
    %c0_166 = arith.constant 0 : index
    %340 = vector.load %arg9[%c7_164, %c0_165, %c0_166] : memref<8x2x32xbf16, #tpu.memory_space<vmem>>, vector<1x2x32xbf16>
    %341 = vector.shape_cast %340 : vector<1x2x32xbf16> to vector<2x32xbf16>
    %cst_167 = arith.constant dense<0.000000e+00> : vector<2x128xf32>
    %342 = tpu.matmul %341, %279, %cst_167 {dimension_numbers = #tpu.dot_dimension_numbers<[1], [0], [0], [1], [0, 0, 1, 1], [], []>} : vector<2x32xbf16>, vector<32x128xbf16>, vector<2x128xf32> -> vector<2x128xf32>
    %343 = vector.broadcast %283 : vector<1x128xf32> to vector<2x128xf32>
    %344 = arith.addf %342, %343 : vector<2x128xf32>
    %c7_168 = arith.constant 7 : index
    %c0_169 = arith.constant 0 : index
    %c0_170 = arith.constant 0 : index
    %345 = vector.load %arg10[%c7_168, %c0_169, %c0_170] : memref<8x2x128xf32, #tpu.memory_space<vmem>>, vector<1x2x128xf32>
    %346 = vector.shape_cast %345 : vector<1x2x128xf32> to vector<2x128xf32>
    %347 = vector.shape_cast %344 : vector<2x128xf32> to vector<1x2x128xf32>
    tpu.vector_store %arg10[%c7_168, %c0_169, %c0_170], %347 {strides = array<i32>} : memref<8x2x128xf32, #tpu.memory_space<vmem>>, vector<1x2x128xf32>,
    %c1_171 = arith.constant 1 : index
    %c0_172 = arith.constant 0 : index
    %c0_173 = arith.constant 0 : index
    %348 = vector.load %arg4[%c1_171, %c0_172, %c0_173] : memref<2x2x32xf32, #tpu.memory_space<vmem>>, vector<1x2x32xf32>
    %349 = vector.shape_cast %348 : vector<1x2x32xf32> to vector<2x32xf32>
    %c1_174 = arith.constant 1 : index
    %c0_175 = arith.constant 0 : index
    %c0_176 = arith.constant 0 : index
    %350 = vector.load %arg5[%c1_174, %c0_175, %c0_176] : memref<2x2x32xf32, #tpu.memory_space<vmem>>, vector<1x2x32xf32>
    %351 = vector.shape_cast %350 : vector<1x2x32xf32> to vector<2x32xf32>
    %c0_i32_177 = arith.constant 0 : i32
    %352 = arith.index_cast %c0_i32_177 : i32 to index
    %c0_178 = arith.constant 0 : index
    %c0_179 = arith.constant 0 : index
    %353 = vector.load %arg10[%352, %c0_178, %c0_179] : memref<8x2x128xf32, #tpu.memory_space<vmem>>, vector<1x2x128xf32>
    %354 = vector.shape_cast %353 : vector<1x2x128xf32> to vector<2x128xf32>
    %355 = arith.truncf %349 : vector<2x32xf32> to vector<2x32xbf16>
    %cst_180 = arith.constant dense<0.000000e+00> : vector<2x128xf32>
    %356 = tpu.matmul %355, %281, %cst_180 {dimension_numbers = #tpu.dot_dimension_numbers<[1], [0], [0], [1], [0, 0, 1, 1], [], []>} : vector<2x32xbf16>, vector<32x128xbf16>, vector<2x128xf32> -> vector<2x128xf32>
    %357 = arith.addf %354, %356 : vector<2x128xf32>
    %358 = arith.mulf %357, %8 : vector<2x128xf32>
    %359 = math.tanh %358 : vector<2x128xf32>
    %360 = arith.mulf %359, %8 : vector<2x128xf32>
    %361 = arith.addf %360, %11 : vector<2x128xf32>
    %362 = vector.extract_strided_slice %361 {offsets = [0, 0], sizes = [2, 32], strides = [1, 1]} : vector<2x128xf32> to vector<2x32xf32>
    %363 = vector.extract_strided_slice %361 {offsets = [0, 32], sizes = [2, 32], strides = [1, 1]} : vector<2x128xf32> to vector<2x32xf32>
    %364 = vector.extract_strided_slice %361 {offsets = [0, 64], sizes = [2, 32], strides = [1, 1]} : vector<2x128xf32> to vector<2x32xf32>
    %365 = vector.extract_strided_slice %361 {offsets = [0, 96], sizes = [2, 32], strides = [1, 1]} : vector<2x128xf32> to vector<2x32xf32>
    %366 = arith.mulf %363, %351 : vector<2x32xf32>
    %367 = arith.mulf %362, %364 : vector<2x32xf32>
    %368 = arith.addf %366, %367 : vector<2x32xf32>
    %369 = math.tanh %368 : vector<2x32xf32>
    %370 = arith.mulf %365, %369 : vector<2x32xf32>
    %c1_i32_181 = arith.constant 1 : i32
    %371 = arith.index_cast %c1_i32_181 : i32 to index
    %c0_182 = arith.constant 0 : index
    %c0_183 = arith.constant 0 : index
    %372 = vector.load %arg10[%371, %c0_182, %c0_183] : memref<8x2x128xf32, #tpu.memory_space<vmem>>, vector<1x2x128xf32>
    %373 = vector.shape_cast %372 : vector<1x2x128xf32> to vector<2x128xf32>
    %374 = arith.truncf %370 : vector<2x32xf32> to vector<2x32xbf16>
    %cst_184 = arith.constant dense<0.000000e+00> : vector<2x128xf32>
    %375 = tpu.matmul %374, %281, %cst_184 {dimension_numbers = #tpu.dot_dimension_numbers<[1], [0], [0], [1], [0, 0, 1, 1], [], []>} : vector<2x32xbf16>, vector<32x128xbf16>, vector<2x128xf32> -> vector<2x128xf32>
    %376 = arith.addf %373, %375 : vector<2x128xf32>
    %377 = arith.mulf %376, %8 : vector<2x128xf32>
    %378 = math.tanh %377 : vector<2x128xf32>
    %379 = arith.mulf %378, %8 : vector<2x128xf32>
    %380 = arith.addf %379, %11 : vector<2x128xf32>
    %381 = vector.extract_strided_slice %380 {offsets = [0, 0], sizes = [2, 32], strides = [1, 1]} : vector<2x128xf32> to vector<2x32xf32>
    %382 = vector.extract_strided_slice %380 {offsets = [0, 32], sizes = [2, 32], strides = [1, 1]} : vector<2x128xf32> to vector<2x32xf32>
    %383 = vector.extract_strided_slice %380 {offsets = [0, 64], sizes = [2, 32], strides = [1, 1]} : vector<2x128xf32> to vector<2x32xf32>
    %384 = vector.extract_strided_slice %380 {offsets = [0, 96], sizes = [2, 32], strides = [1, 1]} : vector<2x128xf32> to vector<2x32xf32>
    %385 = arith.mulf %382, %368 : vector<2x32xf32>
    %386 = arith.mulf %381, %383 : vector<2x32xf32>
    %387 = arith.addf %385, %386 : vector<2x32xf32>
    %388 = math.tanh %387 : vector<2x32xf32>
    %389 = arith.mulf %384, %388 : vector<2x32xf32>
    %c2_i32_185 = arith.constant 2 : i32
    %390 = arith.index_cast %c2_i32_185 : i32 to index
    %c0_186 = arith.constant 0 : index
    %c0_187 = arith.constant 0 : index
    %391 = vector.load %arg10[%390, %c0_186, %c0_187] : memref<8x2x128xf32, #tpu.memory_space<vmem>>, vector<1x2x128xf32>
    %392 = vector.shape_cast %391 : vector<1x2x128xf32> to vector<2x128xf32>
    %393 = arith.truncf %389 : vector<2x32xf32> to vector<2x32xbf16>
    %cst_188 = arith.constant dense<0.000000e+00> : vector<2x128xf32>
    %394 = tpu.matmul %393, %281, %cst_188 {dimension_numbers = #tpu.dot_dimension_numbers<[1], [0], [0], [1], [0, 0, 1, 1], [], []>} : vector<2x32xbf16>, vector<32x128xbf16>, vector<2x128xf32> -> vector<2x128xf32>
    %395 = arith.addf %392, %394 : vector<2x128xf32>
    %396 = arith.mulf %395, %8 : vector<2x128xf32>
    %397 = math.tanh %396 : vector<2x128xf32>
    %398 = arith.mulf %397, %8 : vector<2x128xf32>
    %399 = arith.addf %398, %11 : vector<2x128xf32>
    %400 = vector.extract_strided_slice %399 {offsets = [0, 0], sizes = [2, 32], strides = [1, 1]} : vector<2x128xf32> to vector<2x32xf32>
    %401 = vector.extract_strided_slice %399 {offsets = [0, 32], sizes = [2, 32], strides = [1, 1]} : vector<2x128xf32> to vector<2x32xf32>
    %402 = vector.extract_strided_slice %399 {offsets = [0, 64], sizes = [2, 32], strides = [1, 1]} : vector<2x128xf32> to vector<2x32xf32>
    %403 = vector.extract_strided_slice %399 {offsets = [0, 96], sizes = [2, 32], strides = [1, 1]} : vector<2x128xf32> to vector<2x32xf32>
    %404 = arith.mulf %401, %387 : vector<2x32xf32>
    %405 = arith.mulf %400, %402 : vector<2x32xf32>
    %406 = arith.addf %404, %405 : vector<2x32xf32>
    %407 = math.tanh %406 : vector<2x32xf32>
    %408 = arith.mulf %403, %407 : vector<2x32xf32>
    %c3_i32_189 = arith.constant 3 : i32
    %409 = arith.index_cast %c3_i32_189 : i32 to index
    %c0_190 = arith.constant 0 : index
    %c0_191 = arith.constant 0 : index
    %410 = vector.load %arg10[%409, %c0_190, %c0_191] : memref<8x2x128xf32, #tpu.memory_space<vmem>>, vector<1x2x128xf32>
    %411 = vector.shape_cast %410 : vector<1x2x128xf32> to vector<2x128xf32>
    %412 = arith.truncf %408 : vector<2x32xf32> to vector<2x32xbf16>
    %cst_192 = arith.constant dense<0.000000e+00> : vector<2x128xf32>
    %413 = tpu.matmul %412, %281, %cst_192 {dimension_numbers = #tpu.dot_dimension_numbers<[1], [0], [0], [1], [0, 0, 1, 1], [], []>} : vector<2x32xbf16>, vector<32x128xbf16>, vector<2x128xf32> -> vector<2x128xf32>
    %414 = arith.addf %411, %413 : vector<2x128xf32>
    %415 = arith.mulf %414, %8 : vector<2x128xf32>
    %416 = math.tanh %415 : vector<2x128xf32>
    %417 = arith.mulf %416, %8 : vector<2x128xf32>
    %418 = arith.addf %417, %11 : vector<2x128xf32>
    %419 = vector.extract_strided_slice %418 {offsets = [0, 0], sizes = [2, 32], strides = [1, 1]} : vector<2x128xf32> to vector<2x32xf32>
    %420 = vector.extract_strided_slice %418 {offsets = [0, 32], sizes = [2, 32], strides = [1, 1]} : vector<2x128xf32> to vector<2x32xf32>
    %421 = vector.extract_strided_slice %418 {offsets = [0, 64], sizes = [2, 32], strides = [1, 1]} : vector<2x128xf32> to vector<2x32xf32>
    %422 = vector.extract_strided_slice %418 {offsets = [0, 96], sizes = [2, 32], strides = [1, 1]} : vector<2x128xf32> to vector<2x32xf32>
    %423 = arith.mulf %420, %406 : vector<2x32xf32>
    %424 = arith.mulf %419, %421 : vector<2x32xf32>
    %425 = arith.addf %423, %424 : vector<2x32xf32>
    %426 = math.tanh %425 : vector<2x32xf32>
    %427 = arith.mulf %422, %426 : vector<2x32xf32>
    %c4_i32_193 = arith.constant 4 : i32
    %428 = arith.index_cast %c4_i32_193 : i32 to index
    %c0_194 = arith.constant 0 : index
    %c0_195 = arith.constant 0 : index
    %429 = vector.load %arg10[%428, %c0_194, %c0_195] : memref<8x2x128xf32, #tpu.memory_space<vmem>>, vector<1x2x128xf32>
    %430 = vector.shape_cast %429 : vector<1x2x128xf32> to vector<2x128xf32>
    %431 = arith.truncf %427 : vector<2x32xf32> to vector<2x32xbf16>
    %cst_196 = arith.constant dense<0.000000e+00> : vector<2x128xf32>
    %432 = tpu.matmul %431, %281, %cst_196 {dimension_numbers = #tpu.dot_dimension_numbers<[1], [0], [0], [1], [0, 0, 1, 1], [], []>} : vector<2x32xbf16>, vector<32x128xbf16>, vector<2x128xf32> -> vector<2x128xf32>
    %433 = arith.addf %430, %432 : vector<2x128xf32>
    %434 = arith.mulf %433, %8 : vector<2x128xf32>
    %435 = math.tanh %434 : vector<2x128xf32>
    %436 = arith.mulf %435, %8 : vector<2x128xf32>
    %437 = arith.addf %436, %11 : vector<2x128xf32>
    %438 = vector.extract_strided_slice %437 {offsets = [0, 0], sizes = [2, 32], strides = [1, 1]} : vector<2x128xf32> to vector<2x32xf32>
    %439 = vector.extract_strided_slice %437 {offsets = [0, 32], sizes = [2, 32], strides = [1, 1]} : vector<2x128xf32> to vector<2x32xf32>
    %440 = vector.extract_strided_slice %437 {offsets = [0, 64], sizes = [2, 32], strides = [1, 1]} : vector<2x128xf32> to vector<2x32xf32>
    %441 = vector.extract_strided_slice %437 {offsets = [0, 96], sizes = [2, 32], strides = [1, 1]} : vector<2x128xf32> to vector<2x32xf32>
    %442 = arith.mulf %439, %425 : vector<2x32xf32>
    %443 = arith.mulf %438, %440 : vector<2x32xf32>
    %444 = arith.addf %442, %443 : vector<2x32xf32>
    %445 = math.tanh %444 : vector<2x32xf32>
    %446 = arith.mulf %441, %445 : vector<2x32xf32>
    %c5_i32_197 = arith.constant 5 : i32
    %447 = arith.index_cast %c5_i32_197 : i32 to index
    %c0_198 = arith.constant 0 : index
    %c0_199 = arith.constant 0 : index
    %448 = vector.load %arg10[%447, %c0_198, %c0_199] : memref<8x2x128xf32, #tpu.memory_space<vmem>>, vector<1x2x128xf32>
    %449 = vector.shape_cast %448 : vector<1x2x128xf32> to vector<2x128xf32>
    %450 = arith.truncf %446 : vector<2x32xf32> to vector<2x32xbf16>
    %cst_200 = arith.constant dense<0.000000e+00> : vector<2x128xf32>
    %451 = tpu.matmul %450, %281, %cst_200 {dimension_numbers = #tpu.dot_dimension_numbers<[1], [0], [0], [1], [0, 0, 1, 1], [], []>} : vector<2x32xbf16>, vector<32x128xbf16>, vector<2x128xf32> -> vector<2x128xf32>
    %452 = arith.addf %449, %451 : vector<2x128xf32>
    %453 = arith.mulf %452, %8 : vector<2x128xf32>
    %454 = math.tanh %453 : vector<2x128xf32>
    %455 = arith.mulf %454, %8 : vector<2x128xf32>
    %456 = arith.addf %455, %11 : vector<2x128xf32>
    %457 = vector.extract_strided_slice %456 {offsets = [0, 0], sizes = [2, 32], strides = [1, 1]} : vector<2x128xf32> to vector<2x32xf32>
    %458 = vector.extract_strided_slice %456 {offsets = [0, 32], sizes = [2, 32], strides = [1, 1]} : vector<2x128xf32> to vector<2x32xf32>
    %459 = vector.extract_strided_slice %456 {offsets = [0, 64], sizes = [2, 32], strides = [1, 1]} : vector<2x128xf32> to vector<2x32xf32>
    %460 = vector.extract_strided_slice %456 {offsets = [0, 96], sizes = [2, 32], strides = [1, 1]} : vector<2x128xf32> to vector<2x32xf32>
    %461 = arith.mulf %458, %444 : vector<2x32xf32>
    %462 = arith.mulf %457, %459 : vector<2x32xf32>
    %463 = arith.addf %461, %462 : vector<2x32xf32>
    %464 = math.tanh %463 : vector<2x32xf32>
    %465 = arith.mulf %460, %464 : vector<2x32xf32>
    %c6_i32_201 = arith.constant 6 : i32
    %466 = arith.index_cast %c6_i32_201 : i32 to index
    %c0_202 = arith.constant 0 : index
    %c0_203 = arith.constant 0 : index
    %467 = vector.load %arg10[%466, %c0_202, %c0_203] : memref<8x2x128xf32, #tpu.memory_space<vmem>>, vector<1x2x128xf32>
    %468 = vector.shape_cast %467 : vector<1x2x128xf32> to vector<2x128xf32>
    %469 = arith.truncf %465 : vector<2x32xf32> to vector<2x32xbf16>
    %cst_204 = arith.constant dense<0.000000e+00> : vector<2x128xf32>
    %470 = tpu.matmul %469, %281, %cst_204 {dimension_numbers = #tpu.dot_dimension_numbers<[1], [0], [0], [1], [0, 0, 1, 1], [], []>} : vector<2x32xbf16>, vector<32x128xbf16>, vector<2x128xf32> -> vector<2x128xf32>
    %471 = arith.addf %468, %470 : vector<2x128xf32>
    %472 = arith.mulf %471, %8 : vector<2x128xf32>
    %473 = math.tanh %472 : vector<2x128xf32>
    %474 = arith.mulf %473, %8 : vector<2x128xf32>
    %475 = arith.addf %474, %11 : vector<2x128xf32>
    %476 = vector.extract_strided_slice %475 {offsets = [0, 0], sizes = [2, 32], strides = [1, 1]} : vector<2x128xf32> to vector<2x32xf32>
    %477 = vector.extract_strided_slice %475 {offsets = [0, 32], sizes = [2, 32], strides = [1, 1]} : vector<2x128xf32> to vector<2x32xf32>
    %478 = vector.extract_strided_slice %475 {offsets = [0, 64], sizes = [2, 32], strides = [1, 1]} : vector<2x128xf32> to vector<2x32xf32>
    %479 = vector.extract_strided_slice %475 {offsets = [0, 96], sizes = [2, 32], strides = [1, 1]} : vector<2x128xf32> to vector<2x32xf32>
    %480 = arith.mulf %477, %463 : vector<2x32xf32>
    %481 = arith.mulf %476, %478 : vector<2x32xf32>
    %482 = arith.addf %480, %481 : vector<2x32xf32>
    %483 = math.tanh %482 : vector<2x32xf32>
    %484 = arith.mulf %479, %483 : vector<2x32xf32>
    %c7_i32_205 = arith.constant 7 : i32
    %485 = arith.index_cast %c7_i32_205 : i32 to index
    %c0_206 = arith.constant 0 : index
    %c0_207 = arith.constant 0 : index
    %486 = vector.load %arg10[%485, %c0_206, %c0_207] : memref<8x2x128xf32, #tpu.memory_space<vmem>>, vector<1x2x128xf32>
    %487 = vector.shape_cast %486 : vector<1x2x128xf32> to vector<2x128xf32>
    %488 = arith.truncf %484 : vector<2x32xf32> to vector<2x32xbf16>
    %cst_208 = arith.constant dense<0.000000e+00> : vector<2x128xf32>
    %489 = tpu.matmul %488, %281, %cst_208 {dimension_numbers = #tpu.dot_dimension_numbers<[1], [0], [0], [1], [0, 0, 1, 1], [], []>} : vector<2x32xbf16>, vector<32x128xbf16>, vector<2x128xf32> -> vector<2x128xf32>
    %490 = arith.addf %487, %489 : vector<2x128xf32>
    %491 = arith.mulf %490, %8 : vector<2x128xf32>
    %492 = math.tanh %491 : vector<2x128xf32>
    %493 = arith.mulf %492, %8 : vector<2x128xf32>
    %494 = arith.addf %493, %11 : vector<2x128xf32>
    %495 = vector.extract_strided_slice %494 {offsets = [0, 0], sizes = [2, 32], strides = [1, 1]} : vector<2x128xf32> to vector<2x32xf32>
    %496 = vector.extract_strided_slice %494 {offsets = [0, 32], sizes = [2, 32], strides = [1, 1]} : vector<2x128xf32> to vector<2x32xf32>
    %497 = vector.extract_strided_slice %494 {offsets = [0, 64], sizes = [2, 32], strides = [1, 1]} : vector<2x128xf32> to vector<2x32xf32>
    %498 = vector.extract_strided_slice %494 {offsets = [0, 96], sizes = [2, 32], strides = [1, 1]} : vector<2x128xf32> to vector<2x32xf32>
    %499 = arith.mulf %496, %482 : vector<2x32xf32>
    %500 = arith.mulf %495, %497 : vector<2x32xf32>
    %501 = arith.addf %499, %500 : vector<2x32xf32>
    %502 = math.tanh %501 : vector<2x32xf32>
    %503 = arith.mulf %498, %502 : vector<2x32xf32>
    %c8_i32_209 = arith.constant 8 : i32
    %c0_210 = arith.constant 0 : index
    %c0_211 = arith.constant 0 : index
    %504 = vector.load %arg6[%c0_210, %c0_211] : memref<32x4xf32, #tpu.memory_space<vmem>>, vector<32x4xf32>
    %cst_212 = arith.constant dense<0.000000e+00> : vector<2x4xf32>
    %505 = tpu.matmul %503, %504, %cst_212 {dimension_numbers = #tpu.dot_dimension_numbers<[1], [0], [0], [1], [0, 0, 1, 1], [], []>} : vector<2x32xf32>, vector<32x4xf32>, vector<2x4xf32> -> vector<2x4xf32>
    %c0_213 = arith.constant 0 : index
    %c0_214 = arith.constant 0 : index
    %506 = vector.load %arg7[%c0_213, %c0_214] : memref<1x4xf32, #tpu.memory_space<vmem>>, vector<1x4xf32>
    %507 = vector.broadcast %506 : vector<1x4xf32> to vector<2x4xf32>
    %508 = arith.addf %505, %507 : vector<2x4xf32>
    %c0_215 = arith.constant 0 : index
    %c0_216 = arith.constant 0 : index
    %509 = vector.load %arg8[%c0_215, %c0_216] : memref<2x4xf32, #tpu.memory_space<vmem>>, vector<2x4xf32>
    tpu.vector_store %arg8[%c0_215, %c0_216], %508 {strides = array<i32>} : memref<2x4xf32, #tpu.memory_space<vmem>>, vector<2x4xf32>,
    return
  }
}

</mosaic_0001>

<llo_original>
// kernel: lstm_forward.1
$region0: #{lstm_forward.1}
  #allocation0 [shape = 'u32[]', space=smem, size = 0x4, offset = 0x4, fixed_abs, tag = 'smem constant byte address 0x4 - core index']
  #allocation1 [shape = 'u32[144,128]{1,0:T(1,128)}', space=vmem, size = 0x12000, scoped, tag = 'internal scratch']
  #allocation2 [shape = 'bf16[8,2,32]{2,1,0:T(2,128)(2,1)}', space=vmem, size = 0x1000, scoped, tag = 'scratch operand']
  #allocation3 [shape = 'f32[8,2,128]{2,1,0:T(2,128)}', space=vmem, size = 0x2000, scoped, tag = 'scratch operand']
  %s0 = inlined_call_operand.vmem [shape: bf16[8,2,32], index: 0, kind: input, shape index: {}]
  %s1 = inlined_call_operand.vmem [shape: bf16[2,32,128], index: 1, kind: input, shape index: {}]
  %s2 = inlined_call_operand.vmem [shape: bf16[2,32,128], index: 2, kind: input, shape index: {}]
  %s3 = inlined_call_operand.hbm [shape: f32[2,1,128], index: 3, kind: input, shape index: {}]
  %s4 = inlined_call_operand.vmem [shape: f32[2,2,32], index: 4, kind: input, shape index: {}]
  %s5 = inlined_call_operand.vmem [shape: f32[2,2,32], index: 5, kind: input, shape index: {}]
  %s6 = inlined_call_operand.vmem [shape: f32[32,4], index: 6, kind: input, shape index: {}]
  %s7 = inlined_call_operand.vmem [shape: f32[1,4], index: 7, kind: input, shape index: {}]
  %s8 = inlined_call_operand.hbm [shape: f32[2,4], index: 8, kind: output, shape index: {}]
  %s9 = sld [smem:[#allocation0]]
  $region46: #{lstm_forward.1} parent=0
    _
  %s11 = ssub.s32 1, %s9
  %s12 = scalar_select 0, %s11, %s9
  $region1: #{lstm_forward.1} parent=0
    #allocation4 [shape = 'u8[1024]{0}', space=vmem, size = 0x400, scoped, tag = 'input window, operand 3, single buffered']
    #allocation5 [shape = 's32[1]{0}', space=sflag, size = 0x4, scoped, tag = 'scoped memory for lstm_forward.1']
    #allocation6 [shape = 's32[1]{0}', space=sflag, size = 0x4, scoped, tag = 'scoped memory for lstm_forward.1']
    #allocation7 [shape = 'u8[1024]{0}', space=vmem, size = 0x400, scoped, tag = 'output window, operand 0, single buffered']
    %13 = vsyncpa [#allocation5], 0
    %14 = vsyncpa [#allocation6], 0
    // Predicated region
    $region2: #{lstm_forward.1} parent=1 // pred_check
      _
    $region3: #{lstm_forward.1} parent=1 // pred_check_branch
      %16 = sbr.rel (0) target = $region5
    $region4: #{lstm_forward.1} parent=1 // pred_region
      _
    $region5: #{lstm_forward.1} parent=1 // pred_fallthru
      _
    // Predicated region
    $region6: #{lstm_forward.1} parent=1 // pred_check
      _
    $region7: #{lstm_forward.1} parent=1 // pred_check_branch
      %18 = sbr.rel (0) target = $region9
    $region8: #{lstm_forward.1} parent=1 // pred_region
      _
    $region9: #{lstm_forward.1} parent=1 // pred_fallthru
      _
    // Predicated region
    $region10: #{lstm_forward.1} parent=1 // pred_check
      _
    $region11: #{lstm_forward.1} parent=1 // pred_check_branch
      %20 = sbr.rel (0) target = $region13
    $region12: #{lstm_forward.1} parent=1 // pred_region
      _
    $region13: #{lstm_forward.1} parent=1 // pred_fallthru
      _
    // Predicated region
    $region14: #{lstm_forward.1} parent=1 // pred_check
      _
    $region15: #{lstm_forward.1} parent=1 // pred_check_branch
      %22 = sbr.rel (0) target = $region17
    $region16: #{lstm_forward.1} parent=1 // pred_region
      %s24 = ssub.s32 32, 32
      %25 = vsyncadd [#allocation5], %s24
      %s26 = sshll.u32 [#allocation4], 4
      %s27 = int_to_ptr.vmem [resolvable:$true] %s26
      %32 = dma.hbm_to_vmem [thread:$0]  %s3, 32, %s27, [#allocation5], 16, 16, 1
    $region17: #{lstm_forward.1} parent=1 // pred_fallthru
      _
    // Predicated region
    $region18: #{lstm_forward.1} parent=1 // pred_check
      _
    $region19: #{lstm_forward.1} parent=1 // pred_check_branch
      %34 = sbr.rel (0) target = $region21
    $region20: #{lstm_forward.1} parent=1 // pred_region
      _
    $region21: #{lstm_forward.1} parent=1 // pred_fallthru
      _
    // Predicated region
    $region22: #{lstm_forward.1} parent=1 // pred_check
      _
    $region23: #{lstm_forward.1} parent=1 // pred_check_branch
      %36 = sbr.rel (0) target = $region25
    $region24: #{lstm_forward.1} parent=1 // pred_region
      _
    $region25: #{lstm_forward.1} parent=1 // pred_fallthru
      _
    // Predicated region
    $region26: #{lstm_forward.1} parent=1 // pred_check
      _
    $region27: #{lstm_forward.1} parent=1 // pred_check_branch
      %38 = sbr.rel (0) target = $region29
    $region28: #{lstm_forward.1} parent=1 // pred_region
      _
    $region29: #{lstm_forward.1} parent=1 // pred_fallthru
      _
    // Predicated region
    $region30: #{lstm_forward.1} parent=1 // pred_check
      _
    $region31: #{lstm_forward.1} parent=1 // pred_check_branch
      %40 = sbr.rel (0) target = $region33
    $region32: #{lstm_forward.1} parent=1 // pred_region
      _
    $region33: #{lstm_forward.1} parent=1 // pred_fallthru
      _
    // Predicated region
    $region34: #{lstm_forward.1} parent=1 // pred_check
      _
    $region35: #{lstm_forward.1} parent=1 // pred_check_branch
      %42 = sbr.rel (0) target = $region37
    $region36: #{lstm_forward.1} parent=1 // pred_region
      %43 = dma.done [#allocation5], 32
    $region37: #{lstm_forward.1} parent=1 // pred_fallthru
      _
    %v45 = vlaneseq
    %v46 = vand.u32 %v45, 127
    %vm47 = vcmp.ge.s32.totalorder %v46, 64
    %vm48 = vcmp.lt.s32.totalorder %v46, 96
    %vm49 = vmand %vm47, %vm48
    %v50 = vsel %vm49, 1.0, 0.5
    %v51 = vsel %vm49, 0.0, 0.5
    %v52 = vld [vmem:[%s1] sm:$0xf]
    %v53 = vld [vmem:[%s1 + $0x4] sm:$0xf]
    %v54 = vld [vmem:[%s1 + $0x8] sm:$0xf]
    %v55 = vld [vmem:[%s1 + $0xc] sm:$0xf]
    %v56 = vld [vmem:[%s2] sm:$0xf]
    %v57 = vld [vmem:[%s2 + $0x4] sm:$0xf]
    %v58 = vld [vmem:[%s2 + $0x8] sm:$0xf]
    %v59 = vld [vmem:[%s2 + $0xc] sm:$0xf]
    %v60 = vld [vmem:[#allocation4] sm:$0x1]
    %v61 = vld [vmem:[%s0] sm:$0x1]
    %v63 = vlaneseq
    %v64 = vshrl.u32 %v63, 7
    %v65 = vsub.s32 0, %v64
    %v66 = vrot.slane %v60, %v65
    %v72 = vunpack.c.l.b16 %v52
    %v73 = vunpack.c.l.b16 %v53
    %v74 = vunpack.c.l.b16 %v54
    %v75 = vunpack.c.l.b16 %v55
    %v76 = vpack.c.b16 %v73, %v72
    %v77 = vpack.c.b16 %v75, %v74
    %vm80 = vcmask 261120
    %v82 = vsel %vm80, %v61, 0
    %84 = vmatprep.subr.bf16.mxu0 0
    %85 = vmatpush1.bf16.msra.mxu0 0
    %86 = vmatprep.subr.bf16.mxu0 0
    %87 = vmatpush1.bf16.msra.mxu0 0
    %88 = vmatprep.subr.bf16.mxu0 0
    %89 = vmatpush1.bf16.msra.mxu0 0
    %90 = vmatprep.subr.bf16.mxu0 0
    %91 = vmatpush1.bf16.msra.mxu0 0
    %92 = vmatprep.subr.bf16.mxu0 0
    %93 = vmatpush1.bf16.msra.mxu0 0
    %94 = vmatprep.subr.bf16.mxu0 0
    %95 = vmatpush1.bf16.msra.mxu0 0
    %96 = vmatprep.subr.bf16.mxu0 0
    %97 = vmatpush1.bf16.msra.mxu0 %v77
    %98 = vmatprep.subr.bf16.mxu0 0
    %99 = vmatpush1.bf16.msra.mxu0 %v76
    %100 = vmatprep.subr.bf16.mxu0 0
    %101 = vmatpush2.bf16.msra.mxu0 0
    %102 = vmatprep.subr.bf16.mxu0 0
    %103 = vmatpush2.bf16.msra.mxu0 0
    %104 = vmatprep.subr.bf16.mxu0 0
    %105 = vmatpush2.bf16.msra.mxu0 0
    %106 = vmatprep.subr.bf16.mxu0 0
    %107 = vmatpush2.bf16.msra.mxu0 0
    %108 = vmatprep.subr.bf16.mxu0 0
    %109 = vmatpush2.bf16.msra.mxu0 0
    %110 = vmatprep.subr.bf16.mxu0 0
    %111 = vmatpush2.bf16.msra.mxu0 0
    %112 = vmatprep.subr.bf16.mxu0 0
    %113 = vmatpush2.bf16.msra.mxu0 0
    %114 = vmatprep.subr.bf16.mxu0 0
    %115 = vmatpush2.bf16.msra.mxu0 0
    %116 = vmatprep.mubr.bf16.mxu0 0
    %117 = vmatmul.mubr.bf16.gmra.mxu0 %v82
    %v118 = vpop.f32.mrf.mxu0
    %v119 = vadd.f32 %v66, %v118
    %v120 = vpop.f32.mrf.mxu0
    %v121 = vpop.f32.mrf.mxu0
    %v122 = vpop.f32.mrf.mxu0
    %123 = vdwg.mxu0
    %124 = vst [vmem:[#allocation3] sm:$0x3] %v119
    %s125 = scalar_lea.vmem %s0, 1
    %v126 = vld [vmem:[%s125] sm:$0x1]
    %v128 = vsel %vm80, %v126, 0
    %130 = vmatprep.subr.bf16.mxu0 0
    %131 = vmatpush1.bf16.msra.mxu0 0
    %132 = vmatprep.subr.bf16.mxu0 0
    %133 = vmatpush1.bf16.msra.mxu0 0
    %134 = vmatprep.subr.bf16.mxu0 0
    %135 = vmatpush1.bf16.msra.mxu0 0
    %136 = vmatprep.subr.bf16.mxu0 0
    %137 = vmatpush1.bf16.msra.mxu0 0
    %138 = vmatprep.subr.bf16.mxu0 0
    %139 = vmatpush1.bf16.msra.mxu0 0
    %140 = vmatprep.subr.bf16.mxu0 0
    %141 = vmatpush1.bf16.msra.mxu0 0
    %142 = vmatprep.subr.bf16.mxu0 0
    %143 = vmatpush1.bf16.msra.mxu0 %v77
    %144 = vmatprep.subr.bf16.mxu0 0
    %145 = vmatpush1.bf16.msra.mxu0 %v76
    %146 = vmatprep.subr.bf16.mxu0 0
    %147 = vmatpush2.bf16.msra.mxu0 0
    %148 = vmatprep.subr.bf16.mxu0 0
    %149 = vmatpush2.bf16.msra.mxu0 0
    %150 = vmatprep.subr.bf16.mxu0 0
    %151 = vmatpush2.bf16.msra.mxu0 0
    %152 = vmatprep.subr.bf16.mxu0 0
    %153 = vmatpush2.bf16.msra.mxu0 0
    %154 = vmatprep.subr.bf16.mxu0 0
    %155 = vmatpush2.bf16.msra.mxu0 0
    %156 = vmatprep.subr.bf16.mxu0 0
    %157 = vmatpush2.bf16.msra.mxu0 0
    %158 = vmatprep.subr.bf16.mxu0 0
    %159 = vmatpush2.bf16.msra.mxu0 0
    %160 = vmatprep.subr.bf16.mxu0 0
    %161 = vmatpush2.bf16.msra.mxu0 0
    %162 = vmatprep.mubr.bf16.mxu0 0
    %163 = vmatmul.mubr.bf16.gmra.mxu0 %v128
    %v164 = vpop.f32.mrf.mxu0
    %v165 = vadd.f32 %v66, %v164
    %v166 = vpop.f32.mrf.mxu0
    %v167 = vpop.f32.mrf.mxu0
    %v168 = vpop.f32.mrf.mxu0
    %169 = vdwg.mxu0
    %s170 = scalar_lea.vmem [#allocation3], 2
    %171 = vst [vmem:[%s170] sm:$0x3] %v165
    %s172 = scalar_lea.vmem %s0, 2
    %v173 = vld [vmem:[%s172] sm:$0x1]
    %v175 = vsel %vm80, %v173, 0
    %177 = vmatprep.subr.bf16.mxu0 0
    %178 = vmatpush1.bf16.msra.mxu0 0
    %179 = vmatprep.subr.bf16.mxu0 0
    %180 = vmatpush1.bf16.msra.mxu0 0
    %181 = vmatprep.subr.bf16.mxu0 0
    %182 = vmatpush1.bf16.msra.mxu0 0
    %183 = vmatprep.subr.bf16.mxu0 0
    %184 = vmatpush1.bf16.msra.mxu0 0
    %185 = vmatprep.subr.bf16.mxu0 0
    %186 = vmatpush1.bf16.msra.mxu0 0
    %187 = vmatprep.subr.bf16.mxu0 0
    %188 = vmatpush1.bf16.msra.mxu0 0
    %189 = vmatprep.subr.bf16.mxu0 0
    %190 = vmatpush1.bf16.msra.mxu0 %v77
    %191 = vmatprep.subr.bf16.mxu0 0
    %192 = vmatpush1.bf16.msra.mxu0 %v76
    %193 = vmatprep.subr.bf16.mxu0 0
    %194 = vmatpush2.bf16.msra.mxu0 0
    %195 = vmatprep.subr.bf16.mxu0 0
    %196 = vmatpush2.bf16.msra.mxu0 0
    %197 = vmatprep.subr.bf16.mxu0 0
    %198 = vmatpush2.bf16.msra.mxu0 0
    %199 = vmatprep.subr.bf16.mxu0 0
    %200 = vmatpush2.bf16.msra.mxu0 0
    %201 = vmatprep.subr.bf16.mxu0 0
    %202 = vmatpush2.bf16.msra.mxu0 0
    %203 = vmatprep.subr.bf16.mxu0 0
    %204 = vmatpush2.bf16.msra.mxu0 0
    %205 = vmatprep.subr.bf16.mxu0 0
    %206 = vmatpush2.bf16.msra.mxu0 0
    %207 = vmatprep.subr.bf16.mxu0 0
    %208 = vmatpush2.bf16.msra.mxu0 0
    %209 = vmatprep.mubr.bf16.mxu0 0
    %210 = vmatmul.mubr.bf16.gmra.mxu0 %v175
    %v211 = vpop.f32.mrf.mxu0
    %v212 = vadd.f32 %v66, %v211
    %v213 = vpop.f32.mrf.mxu0
    %v214 = vpop.f32.mrf.mxu0
    %v215 = vpop.f32.mrf.mxu0
    %216 = vdwg.mxu0
    %s217 = scalar_lea.vmem [#allocation3], 4
    %218 = vst [vmem:[%s217] sm:$0x3] %v212
    %s219 = scalar_lea.vmem %s0, 3
    %v220 = vld [vmem:[%s219] sm:$0x1]
    %v222 = vsel %vm80, %v220, 0
    %224 = vmatprep.subr.bf16.mxu0 0
    %225 = vmatpush1.bf16.msra.mxu0 0
    %226 = vmatprep.subr.bf16.mxu0 0
    %227 = vmatpush1.bf16.msra.mxu0 0
    %228 = vmatprep.subr.bf16.mxu0 0
    %229 = vmatpush1.bf16.msra.mxu0 0
    %230 = vmatprep.subr.bf16.mxu0 0
    %231 = vmatpush1.bf16.msra.mxu0 0
    %232 = vmatprep.subr.bf16.mxu0 0
    %233 = vmatpush1.bf16.msra.mxu0 0
    %234 = vmatprep.subr.bf16.mxu0 0
    %235 = vmatpush1.bf16.msra.mxu0 0
    %236 = vmatprep.subr.bf16.mxu0 0
    %237 = vmatpush1.bf16.msra.mxu0 %v77
    %238 = vmatprep.subr.bf16.mxu0 0
    %239 = vmatpush1.bf16.msra.mxu0 %v76
    %240 = vmatprep.subr.bf16.mxu0 0
    %241 = vmatpush2.bf16.msra.mxu0 0
    %242 = vmatprep.subr.bf16.mxu0 0
    %243 = vmatpush2.bf16.msra.mxu0 0
    %244 = vmatprep.subr.bf16.mxu0 0
    %245 = vmatpush2.bf16.msra.mxu0 0
    %246 = vmatprep.subr.bf16.mxu0 0
    %247 = vmatpush2.bf16.msra.mxu0 0
    %248 = vmatprep.subr.bf16.mxu0 0
    %249 = vmatpush2.bf16.msra.mxu0 0
    %250 = vmatprep.subr.bf16.mxu0 0
    %251 = vmatpush2.bf16.msra.mxu0 0
    %252 = vmatprep.subr.bf16.mxu0 0
    %253 = vmatpush2.bf16.msra.mxu0 0
    %254 = vmatprep.subr.bf16.mxu0 0
    %255 = vmatpush2.bf16.msra.mxu0 0
    %256 = vmatprep.mubr.bf16.mxu0 0
    %257 = vmatmul.mubr.bf16.gmra.mxu0 %v222
    %v258 = vpop.f32.mrf.mxu0
    %v259 = vadd.f32 %v66, %v258
    %v260 = vpop.f32.mrf.mxu0
    %v261 = vpop.f32.mrf.mxu0
    %v262 = vpop.f32.mrf.mxu0
    %263 = vdwg.mxu0
    %s264 = scalar_lea.vmem [#allocation3], 6
    %265 = vst [vmem:[%s264] sm:$0x3] %v259
    %s266 = scalar_lea.vmem %s0, 4
    %v267 = vld [vmem:[%s266] sm:$0x1]
    %v269 = vsel %vm80, %v267, 0
    %271 = vmatprep.subr.bf16.mxu0 0
    %272 = vmatpush1.bf16.msra.mxu0 0
    %273 = vmatprep.subr.bf16.mxu0 0
    %274 = vmatpush1.bf16.msra.mxu0 0
    %275 = vmatprep.subr.bf16.mxu0 0
    %276 = vmatpush1.bf16.msra.mxu0 0
    %277 = vmatprep.subr.bf16.mxu0 0
    %278 = vmatpush1.bf16.msra.mxu0 0
    %279 = vmatprep.subr.bf16.mxu0 0
    %280 = vmatpush1.bf16.msra.mxu0 0
    %281 = vmatprep.subr.bf16.mxu0 0
    %282 = vmatpush1.bf16.msra.mxu0 0
    %283 = vmatprep.subr.bf16.mxu0 0
    %284 = vmatpush1.bf16.msra.mxu0 %v77
    %285 = vmatprep.subr.bf16.mxu0 0
    %286 = vmatpush1.bf16.msra.mxu0 %v76
    %287 = vmatprep.subr.bf16.mxu0 0
    %288 = vmatpush2.bf16.msra.mxu0 0
    %289 = vmatprep.subr.bf16.mxu0 0
    %290 = vmatpush2.bf16.msra.mxu0 0
    %291 = vmatprep.subr.bf16.mxu0 0
    %292 = vmatpush2.bf16.msra.mxu0 0
    %293 = vmatprep.subr.bf16.mxu0 0
    %294 = vmatpush2.bf16.msra.mxu0 0
    %295 = vmatprep.subr.bf16.mxu0 0
    %296 = vmatpush2.bf16.msra.mxu0 0
    %297 = vmatprep.subr.bf16.mxu0 0
    %298 = vmatpush2.bf16.msra.mxu0 0
    %299 = vmatprep.subr.bf16.mxu0 0
    %300 = vmatpush2.bf16.msra.mxu0 0
    %301 = vmatprep.subr.bf16.mxu0 0
    %302 = vmatpush2.bf16.msra.mxu0 0
    %303 = vmatprep.mubr.bf16.mxu0 0
    %304 = vmatmul.mubr.bf16.gmra.mxu0 %v269
    %v305 = vpop.f32.mrf.mxu0
    %v306 = vadd.f32 %v66, %v305
    %v307 = vpop.f32.mrf.mxu0
    %v308 = vpop.f32.mrf.mxu0
    %v309 = vpop.f32.mrf.mxu0
    %310 = vdwg.mxu0
    %s311 = scalar_lea.vmem [#allocation3], 8
    %312 = vst [vmem:[%s311] sm:$0x3] %v306
    %s313 = scalar_lea.vmem %s0, 5
    %v314 = vld [vmem:[%s313] sm:$0x1]
    %v316 = vsel %vm80, %v314, 0
    %318 = vmatprep.subr.bf16.mxu0 0
    %319 = vmatpush1.bf16.msra.mxu0 0
    %320 = vmatprep.subr.bf16.mxu0 0
    %321 = vmatpush1.bf16.msra.mxu0 0
    %322 = vmatprep.subr.bf16.mxu0 0
    %323 = vmatpush1.bf16.msra.mxu0 0
    %324 = vmatprep.subr.bf16.mxu0 0
    %325 = vmatpush1.bf16.msra.mxu0 0
    %326 = vmatprep.subr.bf16.mxu0 0
    %327 = vmatpush1.bf16.msra.mxu0 0
    %328 = vmatprep.subr.bf16.mxu0 0
    %329 = vmatpush1.bf16.msra.mxu0 0
    %330 = vmatprep.subr.bf16.mxu0 0
    %331 = vmatpush1.bf16.msra.mxu0 %v77
    %332 = vmatprep.subr.bf16.mxu0 0
    %333 = vmatpush1.bf16.msra.mxu0 %v76
    %334 = vmatprep.subr.bf16.mxu0 0
    %335 = vmatpush2.bf16.msra.mxu0 0
    %336 = vmatprep.subr.bf16.mxu0 0
    %337 = vmatpush2.bf16.msra.mxu0 0
    %338 = vmatprep.subr.bf16.mxu0 0
    %339 = vmatpush2.bf16.msra.mxu0 0
    %340 = vmatprep.subr.bf16.mxu0 0
    %341 = vmatpush2.bf16.msra.mxu0 0
    %342 = vmatprep.subr.bf16.mxu0 0
    %343 = vmatpush2.bf16.msra.mxu0 0
    %344 = vmatprep.subr.bf16.mxu0 0
    %345 = vmatpush2.bf16.msra.mxu0 0
    %346 = vmatprep.subr.bf16.mxu0 0
    %347 = vmatpush2.bf16.msra.mxu0 0
    %348 = vmatprep.subr.bf16.mxu0 0
    %349 = vmatpush2.bf16.msra.mxu0 0
    %350 = vmatprep.mubr.bf16.mxu0 0
    %351 = vmatmul.mubr.bf16.gmra.mxu0 %v316
    %v352 = vpop.f32.mrf.mxu0
    %v353 = vadd.f32 %v66, %v352
    %v354 = vpop.f32.mrf.mxu0
    %v355 = vpop.f32.mrf.mxu0
    %v356 = vpop.f32.mrf.mxu0
    %357 = vdwg.mxu0
    %s358 = scalar_lea.vmem [#allocation3], 10
    %359 = vst [vmem:[%s358] sm:$0x3] %v353
    %s360 = scalar_lea.vmem %s0, 6
    %v361 = vld [vmem:[%s360] sm:$0x1]
    %v363 = vsel %vm80, %v361, 0
    %365 = vmatprep.subr.bf16.mxu0 0
    %366 = vmatpush1.bf16.msra.mxu0 0
    %367 = vmatprep.subr.bf16.mxu0 0
    %368 = vmatpush1.bf16.msra.mxu0 0
    %369 = vmatprep.subr.bf16.mxu0 0
    %370 = vmatpush1.bf16.msra.mxu0 0
    %371 = vmatprep.subr.bf16.mxu0 0
    %372 = vmatpush1.bf16.msra.mxu0 0
    %373 = vmatprep.subr.bf16.mxu0 0
    %374 = vmatpush1.bf16.msra.mxu0 0
    %375 = vmatprep.subr.bf16.mxu0 0
    %376 = vmatpush1.bf16.msra.mxu0 0
    %377 = vmatprep.subr.bf16.mxu0 0
    %378 = vmatpush1.bf16.msra.mxu0 %v77
    %379 = vmatprep.subr.bf16.mxu0 0
    %380 = vmatpush1.bf16.msra.mxu0 %v76
    %381 = vmatprep.subr.bf16.mxu0 0
    %382 = vmatpush2.bf16.msra.mxu0 0
    %383 = vmatprep.subr.bf16.mxu0 0
    %384 = vmatpush2.bf16.msra.mxu0 0
    %385 = vmatprep.subr.bf16.mxu0 0
    %386 = vmatpush2.bf16.msra.mxu0 0
    %387 = vmatprep.subr.bf16.mxu0 0
    %388 = vmatpush2.bf16.msra.mxu0 0
    %389 = vmatprep.subr.bf16.mxu0 0
    %390 = vmatpush2.bf16.msra.mxu0 0
    %391 = vmatprep.subr.bf16.mxu0 0
    %392 = vmatpush2.bf16.msra.mxu0 0
    %393 = vmatprep.subr.bf16.mxu0 0
    %394 = vmatpush2.bf16.msra.mxu0 0
    %395 = vmatprep.subr.bf16.mxu0 0
    %396 = vmatpush2.bf16.msra.mxu0 0
    %397 = vmatprep.mubr.bf16.mxu0 0
    %398 = vmatmul.mubr.bf16.gmra.mxu0 %v363
    %v399 = vpop.f32.mrf.mxu0
    %v400 = vadd.f32 %v66, %v399
    %v401 = vpop.f32.mrf.mxu0
    %v402 = vpop.f32.mrf.mxu0
    %v403 = vpop.f32.mrf.mxu0
    %404 = vdwg.mxu0
    %s405 = scalar_lea.vmem [#allocation3], 12
    %406 = vst [vmem:[%s405] sm:$0x3] %v400
    %s407 = scalar_lea.vmem %s0, 7
    %v408 = vld [vmem:[%s407] sm:$0x1]
    %v410 = vsel %vm80, %v408, 0
    %412 = vmatprep.subr.bf16.mxu0 0
    %413 = vmatpush1.bf16.msra.mxu0 0
    %414 = vmatprep.subr.bf16.mxu0 0
    %415 = vmatpush1.bf16.msra.mxu0 0
    %416 = vmatprep.subr.bf16.mxu0 0
    %417 = vmatpush1.bf16.msra.mxu0 0
    %418 = vmatprep.subr.bf16.mxu0 0
    %419 = vmatpush1.bf16.msra.mxu0 0
    %420 = vmatprep.subr.bf16.mxu0 0
    %421 = vmatpush1.bf16.msra.mxu0 0
    %422 = vmatprep.subr.bf16.mxu0 0
    %423 = vmatpush1.bf16.msra.mxu0 0
    %424 = vmatprep.subr.bf16.mxu0 0
    %425 = vmatpush1.bf16.msra.mxu0 %v77
    %426 = vmatprep.subr.bf16.mxu0 0
    %427 = vmatpush1.bf16.msra.mxu0 %v76
    %428 = vmatprep.subr.bf16.mxu0 0
    %429 = vmatpush2.bf16.msra.mxu0 0
    %430 = vmatprep.subr.bf16.mxu0 0
    %431 = vmatpush2.bf16.msra.mxu0 0
    %432 = vmatprep.subr.bf16.mxu0 0
    %433 = vmatpush2.bf16.msra.mxu0 0
    %434 = vmatprep.subr.bf16.mxu0 0
    %435 = vmatpush2.bf16.msra.mxu0 0
    %436 = vmatprep.subr.bf16.mxu0 0
    %437 = vmatpush2.bf16.msra.mxu0 0
    %438 = vmatprep.subr.bf16.mxu0 0
    %439 = vmatpush2.bf16.msra.mxu0 0
    %440 = vmatprep.subr.bf16.mxu0 0
    %441 = vmatpush2.bf16.msra.mxu0 0
    %442 = vmatprep.subr.bf16.mxu0 0
    %443 = vmatpush2.bf16.msra.mxu0 0
    %444 = vmatprep.mubr.bf16.mxu0 0
    %445 = vmatmul.mubr.bf16.gmra.mxu0 %v410
    %v446 = vpop.f32.mrf.mxu0
    %v447 = vadd.f32 %v66, %v446
    %v448 = vpop.f32.mrf.mxu0
    %v449 = vpop.f32.mrf.mxu0
    %v450 = vpop.f32.mrf.mxu0
    %451 = vdwg.mxu0
    %s452 = scalar_lea.vmem [#allocation3], 14
    %453 = vst [vmem:[%s452] sm:$0x3] %v447
    %v454 = vld [vmem:[%s4] sm:$0x3]
    %v455 = vld [vmem:[%s5] sm:$0x3]
    %v456 = vld [vmem:[#allocation3] sm:$0x3]
    %v457 = vpack.c.bf16 %v454, %v454
    %v462 = vunpack.c.l.b16 %v56
    %v463 = vunpack.c.l.b16 %v57
    %v464 = vunpack.c.l.b16 %v58
    %v465 = vunpack.c.l.b16 %v59
    %v466 = vpack.c.b16 %v463, %v462
    %v467 = vpack.c.b16 %v465, %v464
    %v471 = vsel %vm80, %v457, 0
    %473 = vmatprep.subr.bf16.mxu0 0
    %474 = vmatpush1.bf16.msra.mxu0 0
    %475 = vmatprep.subr.bf16.mxu0 0
    %476 = vmatpush1.bf16.msra.mxu0 0
    %477 = vmatprep.subr.bf16.mxu0 0
    %478 = vmatpush1.bf16.msra.mxu0 0
    %479 = vmatprep.subr.bf16.mxu0 0
    %480 = vmatpush1.bf16.msra.mxu0 0
    %481 = vmatprep.subr.bf16.mxu0 0
    %482 = vmatpush1.bf16.msra.mxu0 0
    %483 = vmatprep.subr.bf16.mxu0 0
    %484 = vmatpush1.bf16.msra.mxu0 0
    %485 = vmatprep.subr.bf16.mxu0 0
    %486 = vmatpush1.bf16.msra.mxu0 %v467
    %487 = vmatprep.subr.bf16.mxu0 0
    %488 = vmatpush1.bf16.msra.mxu0 %v466
    %489 = vmatprep.subr.bf16.mxu0 0
    %490 = vmatpush2.bf16.msra.mxu0 0
    %491 = vmatprep.subr.bf16.mxu0 0
    %492 = vmatpush2.bf16.msra.mxu0 0
    %493 = vmatprep.subr.bf16.mxu0 0
    %494 = vmatpush2.bf16.msra.mxu0 0
    %495 = vmatprep.subr.bf16.mxu0 0
    %496 = vmatpush2.bf16.msra.mxu0 0
    %497 = vmatprep.subr.bf16.mxu0 0
    %498 = vmatpush2.bf16.msra.mxu0 0
    %499 = vmatprep.subr.bf16.mxu0 0
    %500 = vmatpush2.bf16.msra.mxu0 0
    %501 = vmatprep.subr.bf16.mxu0 0
    %502 = vmatpush2.bf16.msra.mxu0 0
    %503 = vmatprep.subr.bf16.mxu0 0
    %504 = vmatpush2.bf16.msra.mxu0 0
    %505 = vmatprep.mubr.bf16.mxu0 0
    %506 = vmatmul.mubr.bf16.gmra.mxu0 %v471
    %v507 = vpop.f32.mrf.mxu0
    %v508 = vadd.f32 0.0, %v507
    %v509 = vpop.f32.mrf.mxu0
    %v510 = vpop.f32.mrf.mxu0
    %v511 = vpop.f32.mrf.mxu0
    %512 = vdwg.mxu0
    %v513 = vadd.f32 %v456, %v508
    %v514 = vmul.f32 %v513, %v50
    %v515 = vtanh.pop %v514
    %v516 = vmul.f32 %v515, %v50
    %v517 = vadd.f32 %v516, %v51
    %519 = vrot.lane.b32.xlu0 %v455, 32
    %v520 = vpop.permute.xlu0 %519
    %v522 = vmul.f32 %v517, %v520
    %524 = vrot.lane.b32.xlu0 %v517, 64
    %v525 = vpop.permute.xlu0 %524
    %v527 = vmul.f32 %v517, %v525
    %529 = vrot.lane.b32.xlu0 %v527, 32
    %v530 = vpop.permute.xlu0 %529
    %v532 = vadd.f32 %v522, %v530
    %v533 = vtanh.pop %v532
    %535 = vrot.lane.b32.xlu0 %v533, 64
    %v536 = vpop.permute.xlu0 %535
    %v538 = vmul.f32 %v517, %v536
    %v539 = vpack.c.bf16 %v538, %v538
    %v542 = vunpack.c.l.s4 1966171168
    %v543 = vunpack.c.0.s8 %v542
    %v544 = vlaneseq
    %v545 = vshrl.u32 %v544, 7
    %v546 = vsub.s32 %v543, %v545
    %v547 = vrot.slane %v539, %v546
    %v549 = vunpack.c.l.s4 1966171168
    %v550 = vunpack.c.0.s8 %v549
    %v551 = vlaneseq
    %v552 = vshrl.u32 %v551, 7
    %v553 = vsub.s32 %v550, %v552
    %v554 = vrot.slane %v547, %v553
    %555 = vrot.lane.b32.xlu0 %v554, 32
    %v556 = vpop.permute.xlu0 %555
    %vm558 = vcmask 253952
    %559 = vst.msk [vmem:[#allocation2] sm:$0x1] %vm558, %v556
    %v560 = vld [vmem:[%s170] sm:$0x3]
    %561 = vrot.lane.b32.xlu0 %v539, 32
    %v562 = vpop.permute.xlu0 %561
    %v564 = vsel %vm80, %v562, 0
    %566 = vmatprep.subr.bf16.mxu0 0
    %567 = vmatpush1.bf16.msra.mxu0 0
    %568 = vmatprep.subr.bf16.mxu0 0
    %569 = vmatpush1.bf16.msra.mxu0 0
    %570 = vmatprep.subr.bf16.mxu0 0
    %571 = vmatpush1.bf16.msra.mxu0 0
    %572 = vmatprep.subr.bf16.mxu0 0
    %573 = vmatpush1.bf16.msra.mxu0 0
    %574 = vmatprep.subr.bf16.mxu0 0
    %575 = vmatpush1.bf16.msra.mxu0 0
    %576 = vmatprep.subr.bf16.mxu0 0
    %577 = vmatpush1.bf16.msra.mxu0 0
    %578 = vmatprep.subr.bf16.mxu0 0
    %579 = vmatpush1.bf16.msra.mxu0 %v467
    %580 = vmatprep.subr.bf16.mxu0 0
    %581 = vmatpush1.bf16.msra.mxu0 %v466
    %582 = vmatprep.subr.bf16.mxu0 0
    %583 = vmatpush2.bf16.msra.mxu0 0
    %584 = vmatprep.subr.bf16.mxu0 0
    %585 = vmatpush2.bf16.msra.mxu0 0
    %586 = vmatprep.subr.bf16.mxu0 0
    %587 = vmatpush2.bf16.msra.mxu0 0
    %588 = vmatprep.subr.bf16.mxu0 0
    %589 = vmatpush2.bf16.msra.mxu0 0
    %590 = vmatprep.subr.bf16.mxu0 0
    %591 = vmatpush2.bf16.msra.mxu0 0
    %592 = vmatprep.subr.bf16.mxu0 0
    %593 = vmatpush2.bf16.msra.mxu0 0
    %594 = vmatprep.subr.bf16.mxu0 0
    %595 = vmatpush2.bf16.msra.mxu0 0
    %596 = vmatprep.subr.bf16.mxu0 0
    %597 = vmatpush2.bf16.msra.mxu0 0
    %598 = vmatprep.mubr.bf16.mxu0 0
    %599 = vmatmul.mubr.bf16.gmra.mxu0 %v564
    %v600 = vpop.f32.mrf.mxu0
    %v601 = vadd.f32 0.0, %v600
    %v602 = vpop.f32.mrf.mxu0
    %v603 = vpop.f32.mrf.mxu0
    %v604 = vpop.f32.mrf.mxu0
    %605 = vdwg.mxu0
    %v606 = vadd.f32 %v560, %v601
    %v607 = vmul.f32 %v606, %v50
    %v608 = vtanh.pop %v607
    %v609 = vmul.f32 %v608, %v50
    %v610 = vadd.f32 %v609, %v51
    %v611 = vmul.f32 %v610, %v532
    %613 = vrot.lane.b32.xlu0 %v610, 64
    %v614 = vpop.permute.xlu0 %613
    %v616 = vmul.f32 %v610, %v614
    %618 = vrot.lane.b32.xlu0 %v616, 32
    %v619 = vpop.permute.xlu0 %618
    %v621 = vadd.f32 %v611, %v619
    %v622 = vtanh.pop %v621
    %624 = vrot.lane.b32.xlu0 %v622, 64
    %v625 = vpop.permute.xlu0 %624
    %v627 = vmul.f32 %v610, %v625
    %v628 = vpack.c.bf16 %v627, %v627
    %v631 = vunpack.c.l.s4 1966171168
    %v632 = vunpack.c.0.s8 %v631
    %v633 = vlaneseq
    %v634 = vshrl.u32 %v633, 7
    %v635 = vsub.s32 %v632, %v634
    %v636 = vrot.slane %v628, %v635
    %v638 = vunpack.c.l.s4 1966171168
    %v639 = vunpack.c.0.s8 %v638
    %v640 = vlaneseq
    %v641 = vshrl.u32 %v640, 7
    %v642 = vsub.s32 %v639, %v641
    %v643 = vrot.slane %v636, %v642
    %644 = vrot.lane.b32.xlu0 %v643, 32
    %v645 = vpop.permute.xlu0 %644
    %s647 = scalar_lea.vmem [#allocation2], 1
    %648 = vst.msk [vmem:[%s647] sm:$0x1] %vm558, %v645
    %v649 = vld [vmem:[%s217] sm:$0x3]
    %650 = vrot.lane.b32.xlu0 %v628, 32
    %v651 = vpop.permute.xlu0 %650
    %v653 = vsel %vm80, %v651, 0
    %655 = vmatprep.subr.bf16.mxu0 0
    %656 = vmatpush1.bf16.msra.mxu0 0
    %657 = vmatprep.subr.bf16.mxu0 0
    %658 = vmatpush1.bf16.msra.mxu0 0
    %659 = vmatprep.subr.bf16.mxu0 0
    %660 = vmatpush1.bf16.msra.mxu0 0
    %661 = vmatprep.subr.bf16.mxu0 0
    %662 = vmatpush1.bf16.msra.mxu0 0
    %663 = vmatprep.subr.bf16.mxu0 0
    %664 = vmatpush1.bf16.msra.mxu0 0
    %665 = vmatprep.subr.bf16.mxu0 0
    %666 = vmatpush1.bf16.msra.mxu0 0
    %667 = vmatprep.subr.bf16.mxu0 0
    %668 = vmatpush1.bf16.msra.mxu0 %v467
    %669 = vmatprep.subr.bf16.mxu0 0
    %670 = vmatpush1.bf16.msra.mxu0 %v466
    %671 = vmatprep.subr.bf16.mxu0 0
    %672 = vmatpush2.bf16.msra.mxu0 0
    %673 = vmatprep.subr.bf16.mxu0 0
    %674 = vmatpush2.bf16.msra.mxu0 0
    %675 = vmatprep.subr.bf16.mxu0 0
    %676 = vmatpush2.bf16.msra.mxu0 0
    %677 = vmatprep.subr.bf16.mxu0 0
    %678 = vmatpush2.bf16.msra.mxu0 0
    %679 = vmatprep.subr.bf16.mxu0 0
    %680 = vmatpush2.bf16.msra.mxu0 0
    %681 = vmatprep.subr.bf16.mxu0 0
    %682 = vmatpush2.bf16.msra.mxu0 0
    %683 = vmatprep.subr.bf16.mxu0 0
    %684 = vmatpush2.bf16.msra.mxu0 0
    %685 = vmatprep.subr.bf16.mxu0 0
    %686 = vmatpush2.bf16.msra.mxu0 0
    %687 = vmatprep.mubr.bf16.mxu0 0
    %688 = vmatmul.mubr.bf16.gmra.mxu0 %v653
    %v689 = vpop.f32.mrf.mxu0
    %v690 = vadd.f32 0.0, %v689
    %v691 = vpop.f32.mrf.mxu0
    %v692 = vpop.f32.mrf.mxu0
    %v693 = vpop.f32.mrf.mxu0
    %694 = vdwg.mxu0
    %v695 = vadd.f32 %v649, %v690
    %v696 = vmul.f32 %v695, %v50
    %v697 = vtanh.pop %v696
    %v698 = vmul.f32 %v697, %v50
    %v699 = vadd.f32 %v698, %v51
    %v700 = vmul.f32 %v699, %v621
    %702 = vrot.lane.b32.xlu0 %v699, 64
    %v703 = vpop.permute.xlu0 %702
    %v705 = vmul.f32 %v699, %v703
    %707 = vrot.lane.b32.xlu0 %v705, 32
    %v708 = vpop.permute.xlu0 %707
    %v710 = vadd.f32 %v700, %v708
    %v711 = vtanh.pop %v710
    %713 = vrot.lane.b32.xlu0 %v711, 64
    %v714 = vpop.permute.xlu0 %713
    %v716 = vmul.f32 %v699, %v714
    %v717 = vpack.c.bf16 %v716, %v716
    %v720 = vunpack.c.l.s4 1966171168
    %v721 = vunpack.c.0.s8 %v720
    %v722 = vlaneseq
    %v723 = vshrl.u32 %v722, 7
    %v724 = vsub.s32 %v721, %v723
    %v725 = vrot.slane %v717, %v724
    %v727 = vunpack.c.l.s4 1966171168
    %v728 = vunpack.c.0.s8 %v727
    %v729 = vlaneseq
    %v730 = vshrl.u32 %v729, 7
    %v731 = vsub.s32 %v728, %v730
    %v732 = vrot.slane %v725, %v731
    %733 = vrot.lane.b32.xlu0 %v732, 32
    %v734 = vpop.permute.xlu0 %733
    %s736 = scalar_lea.vmem [#allocation2], 2
    %737 = vst.msk [vmem:[%s736] sm:$0x1] %vm558, %v734
    %v738 = vld [vmem:[%s264] sm:$0x3]
    %739 = vrot.lane.b32.xlu0 %v717, 32
    %v740 = vpop.permute.xlu0 %739
    %v742 = vsel %vm80, %v740, 0
    %744 = vmatprep.subr.bf16.mxu0 0
    %745 = vmatpush1.bf16.msra.mxu0 0
    %746 = vmatprep.subr.bf16.mxu0 0
    %747 = vmatpush1.bf16.msra.mxu0 0
    %748 = vmatprep.subr.bf16.mxu0 0
    %749 = vmatpush1.bf16.msra.mxu0 0
    %750 = vmatprep.subr.bf16.mxu0 0
    %751 = vmatpush1.bf16.msra.mxu0 0
    %752 = vmatprep.subr.bf16.mxu0 0
    %753 = vmatpush1.bf16.msra.mxu0 0
    %754 = vmatprep.subr.bf16.mxu0 0
    %755 = vmatpush1.bf16.msra.mxu0 0
    %756 = vmatprep.subr.bf16.mxu0 0
    %757 = vmatpush1.bf16.msra.mxu0 %v467
    %758 = vmatprep.subr.bf16.mxu0 0
    %759 = vmatpush1.bf16.msra.mxu0 %v466
    %760 = vmatprep.subr.bf16.mxu0 0
    %761 = vmatpush2.bf16.msra.mxu0 0
    %762 = vmatprep.subr.bf16.mxu0 0
    %763 = vmatpush2.bf16.msra.mxu0 0
    %764 = vmatprep.subr.bf16.mxu0 0
    %765 = vmatpush2.bf16.msra.mxu0 0
    %766 = vmatprep.subr.bf16.mxu0 0
    %767 = vmatpush2.bf16.msra.mxu0 0
    %768 = vmatprep.subr.bf16.mxu0 0
    %769 = vmatpush2.bf16.msra.mxu0 0
    %770 = vmatprep.subr.bf16.mxu0 0
    %771 = vmatpush2.bf16.msra.mxu0 0
    %772 = vmatprep.subr.bf16.mxu0 0
    %773 = vmatpush2.bf16.msra.mxu0 0
    %774 = vmatprep.subr.bf16.mxu0 0
    %775 = vmatpush2.bf16.msra.mxu0 0
    %776 = vmatprep.mubr.bf16.mxu0 0
    %777 = vmatmul.mubr.bf16.gmra.mxu0 %v742
    %v778 = vpop.f32.mrf.mxu0
    %v779 = vadd.f32 0.0, %v778
    %v780 = vpop.f32.mrf.mxu0
    %v781 = vpop.f32.mrf.mxu0
    %v782 = vpop.f32.mrf.mxu0
    %783 = vdwg.mxu0
    %v784 = vadd.f32 %v738, %v779
    %v785 = vmul.f32 %v784, %v50
    %v786 = vtanh.pop %v785
    %v787 = vmul.f32 %v786, %v50
    %v788 = vadd.f32 %v787, %v51
    %v789 = vmul.f32 %v788, %v710
    %791 = vrot.lane.b32.xlu0 %v788, 64
    %v792 = vpop.permute.xlu0 %791
    %v794 = vmul.f32 %v788, %v792
    %796 = vrot.lane.b32.xlu0 %v794, 32
    %v797 = vpop.permute.xlu0 %796
    %v799 = vadd.f32 %v789, %v797
    %v800 = vtanh.pop %v799
    %802 = vrot.lane.b32.xlu0 %v800, 64
    %v803 = vpop.permute.xlu0 %802
    %v805 = vmul.f32 %v788, %v803
    %v806 = vpack.c.bf16 %v805, %v805
    %v809 = vunpack.c.l.s4 1966171168
    %v810 = vunpack.c.0.s8 %v809
    %v811 = vlaneseq
    %v812 = vshrl.u32 %v811, 7
    %v813 = vsub.s32 %v810, %v812
    %v814 = vrot.slane %v806, %v813
    %v816 = vunpack.c.l.s4 1966171168
    %v817 = vunpack.c.0.s8 %v816
    %v818 = vlaneseq
    %v819 = vshrl.u32 %v818, 7
    %v820 = vsub.s32 %v817, %v819
    %v821 = vrot.slane %v814, %v820
    %822 = vrot.lane.b32.xlu0 %v821, 32
    %v823 = vpop.permute.xlu0 %822
    %s825 = scalar_lea.vmem [#allocation2], 3
    %826 = vst.msk [vmem:[%s825] sm:$0x1] %vm558, %v823
    %v827 = vld [vmem:[%s311] sm:$0x3]
    %828 = vrot.lane.b32.xlu0 %v806, 32
    %v829 = vpop.permute.xlu0 %828
    %v831 = vsel %vm80, %v829, 0
    %833 = vmatprep.subr.bf16.mxu0 0
    %834 = vmatpush1.bf16.msra.mxu0 0
    %835 = vmatprep.subr.bf16.mxu0 0
    %836 = vmatpush1.bf16.msra.mxu0 0
    %837 = vmatprep.subr.bf16.mxu0 0
    %838 = vmatpush1.bf16.msra.mxu0 0
    %839 = vmatprep.subr.bf16.mxu0 0
    %840 = vmatpush1.bf16.msra.mxu0 0
    %841 = vmatprep.subr.bf16.mxu0 0
    %842 = vmatpush1.bf16.msra.mxu0 0
    %843 = vmatprep.subr.bf16.mxu0 0
    %844 = vmatpush1.bf16.msra.mxu0 0
    %845 = vmatprep.subr.bf16.mxu0 0
    %846 = vmatpush1.bf16.msra.mxu0 %v467
    %847 = vmatprep.subr.bf16.mxu0 0
    %848 = vmatpush1.bf16.msra.mxu0 %v466
    %849 = vmatprep.subr.bf16.mxu0 0
    %850 = vmatpush2.bf16.msra.mxu0 0
    %851 = vmatprep.subr.bf16.mxu0 0
    %852 = vmatpush2.bf16.msra.mxu0 0
    %853 = vmatprep.subr.bf16.mxu0 0
    %854 = vmatpush2.bf16.msra.mxu0 0
    %855 = vmatprep.subr.bf16.mxu0 0
    %856 = vmatpush2.bf16.msra.mxu0 0
    %857 = vmatprep.subr.bf16.mxu0 0
    %858 = vmatpush2.bf16.msra.mxu0 0
    %859 = vmatprep.subr.bf16.mxu0 0
    %860 = vmatpush2.bf16.msra.mxu0 0
    %861 = vmatprep.subr.bf16.mxu0 0
    %862 = vmatpush2.bf16.msra.mxu0 0
    %863 = vmatprep.subr.bf16.mxu0 0
    %864 = vmatpush2.bf16.msra.mxu0 0
    %865 = vmatprep.mubr.bf16.mxu0 0
    %866 = vmatmul.mubr.bf16.gmra.mxu0 %v831
    %v867 = vpop.f32.mrf.mxu0
    %v868 = vadd.f32 0.0, %v867
    %v869 = vpop.f32.mrf.mxu0
    %v870 = vpop.f32.mrf.mxu0
    %v871 = vpop.f32.mrf.mxu0
    %872 = vdwg.mxu0
    %v873 = vadd.f32 %v827, %v868
    %v874 = vmul.f32 %v873, %v50
    %v875 = vtanh.pop %v874
    %v876 = vmul.f32 %v875, %v50
    %v877 = vadd.f32 %v876, %v51
    %v878 = vmul.f32 %v877, %v799
    %880 = vrot.lane.b32.xlu0 %v877, 64
    %v881 = vpop.permute.xlu0 %880
    %v883 = vmul.f32 %v877, %v881
    %885 = vrot.lane.b32.xlu0 %v883, 32
    %v886 = vpop.permute.xlu0 %885
    %v888 = vadd.f32 %v878, %v886
    %v889 = vtanh.pop %v888
    %891 = vrot.lane.b32.xlu0 %v889, 64
    %v892 = vpop.permute.xlu0 %891
    %v894 = vmul.f32 %v877, %v892
    %v895 = vpack.c.bf16 %v894, %v894
    %v898 = vunpack.c.l.s4 1966171168
    %v899 = vunpack.c.0.s8 %v898
    %v900 = vlaneseq
    %v901 = vshrl.u32 %v900, 7
    %v902 = vsub.s32 %v899, %v901
    %v903 = vrot.slane %v895, %v902
    %v905 = vunpack.c.l.s4 1966171168
    %v906 = vunpack.c.0.s8 %v905
    %v907 = vlaneseq
    %v908 = vshrl.u32 %v907, 7
    %v909 = vsub.s32 %v906, %v908
    %v910 = vrot.slane %v903, %v909
    %911 = vrot.lane.b32.xlu0 %v910, 32
    %v912 = vpop.permute.xlu0 %911
    %s914 = scalar_lea.vmem [#allocation2], 4
    %915 = vst.msk [vmem:[%s914] sm:$0x1] %vm558, %v912
    %v916 = vld [vmem:[%s358] sm:$0x3]
    %917 = vrot.lane.b32.xlu0 %v895, 32
    %v918 = vpop.permute.xlu0 %917
    %v920 = vsel %vm80, %v918, 0
    %922 = vmatprep.subr.bf16.mxu0 0
    %923 = vmatpush1.bf16.msra.mxu0 0
    %924 = vmatprep.subr.bf16.mxu0 0
    %925 = vmatpush1.bf16.msra.mxu0 0
    %926 = vmatprep.subr.bf16.mxu0 0
    %927 = vmatpush1.bf16.msra.mxu0 0
    %928 = vmatprep.subr.bf16.mxu0 0
    %929 = vmatpush1.bf16.msra.mxu0 0
    %930 = vmatprep.subr.bf16.mxu0 0
    %931 = vmatpush1.bf16.msra.mxu0 0
    %932 = vmatprep.subr.bf16.mxu0 0
    %933 = vmatpush1.bf16.msra.mxu0 0
    %934 = vmatprep.subr.bf16.mxu0 0
    %935 = vmatpush1.bf16.msra.mxu0 %v467
    %936 = vmatprep.subr.bf16.mxu0 0
    %937 = vmatpush1.bf16.msra.mxu0 %v466
    %938 = vmatprep.subr.bf16.mxu0 0
    %939 = vmatpush2.bf16.msra.mxu0 0
    %940 = vmatprep.subr.bf16.mxu0 0
    %941 = vmatpush2.bf16.msra.mxu0 0
    %942 = vmatprep.subr.bf16.mxu0 0
    %943 = vmatpush2.bf16.msra.mxu0 0
    %944 = vmatprep.subr.bf16.mxu0 0
    %945 = vmatpush2.bf16.msra.mxu0 0
    %946 = vmatprep.subr.bf16.mxu0 0
    %947 = vmatpush2.bf16.msra.mxu0 0
    %948 = vmatprep.subr.bf16.mxu0 0
    %949 = vmatpush2.bf16.msra.mxu0 0
    %950 = vmatprep.subr.bf16.mxu0 0
    %951 = vmatpush2.bf16.msra.mxu0 0
    %952 = vmatprep.subr.bf16.mxu0 0
    %953 = vmatpush2.bf16.msra.mxu0 0
    %954 = vmatprep.mubr.bf16.mxu0 0
    %955 = vmatmul.mubr.bf16.gmra.mxu0 %v920
    %v956 = vpop.f32.mrf.mxu0
    %v957 = vadd.f32 0.0, %v956
    %v958 = vpop.f32.mrf.mxu0
    %v959 = vpop.f32.mrf.mxu0
    %v960 = vpop.f32.mrf.mxu0
    %961 = vdwg.mxu0
    %v962 = vadd.f32 %v916, %v957
    %v963 = vmul.f32 %v962, %v50
    %v964 = vtanh.pop %v963
    %v965 = vmul.f32 %v964, %v50
    %v966 = vadd.f32 %v965, %v51
    %v967 = vmul.f32 %v966, %v888
    %969 = vrot.lane.b32.xlu0 %v966, 64
    %v970 = vpop.permute.xlu0 %969
    %v972 = vmul.f32 %v966, %v970
    %974 = vrot.lane.b32.xlu0 %v972, 32
    %v975 = vpop.permute.xlu0 %974
    %v977 = vadd.f32 %v967, %v975
    %v978 = vtanh.pop %v977
    %980 = vrot.lane.b32.xlu0 %v978, 64
    %v981 = vpop.permute.xlu0 %980
    %v983 = vmul.f32 %v966, %v981
    %v984 = vpack.c.bf16 %v983, %v983
    %v987 = vunpack.c.l.s4 1966171168
    %v988 = vunpack.c.0.s8 %v987
    %v989 = vlaneseq
    %v990 = vshrl.u32 %v989, 7
    %v991 = vsub.s32 %v988, %v990
    %v992 = vrot.slane %v984, %v991
    %v994 = vunpack.c.l.s4 1966171168
    %v995 = vunpack.c.0.s8 %v994
    %v996 = vlaneseq
    %v997 = vshrl.u32 %v996, 7
    %v998 = vsub.s32 %v995, %v997
    %v999 = vrot.slane %v992, %v998
    %1000 = vrot.lane.b32.xlu0 %v999, 32
    %v1001 = vpop.permute.xlu0 %1000
    %s1003 = scalar_lea.vmem [#allocation2], 5
    %1004 = vst.msk [vmem:[%s1003] sm:$0x1] %vm558, %v1001
    %v1005 = vld [vmem:[%s405] sm:$0x3]
    %1006 = vrot.lane.b32.xlu0 %v984, 32
    %v1007 = vpop.permute.xlu0 %1006
    %v1009 = vsel %vm80, %v1007, 0
    %1011 = vmatprep.subr.bf16.mxu0 0
    %1012 = vmatpush1.bf16.msra.mxu0 0
    %1013 = vmatprep.subr.bf16.mxu0 0
    %1014 = vmatpush1.bf16.msra.mxu0 0
    %1015 = vmatprep.subr.bf16.mxu0 0
    %1016 = vmatpush1.bf16.msra.mxu0 0
    %1017 = vmatprep.subr.bf16.mxu0 0
    %1018 = vmatpush1.bf16.msra.mxu0 0
    %1019 = vmatprep.subr.bf16.mxu0 0
    %1020 = vmatpush1.bf16.msra.mxu0 0
    %1021 = vmatprep.subr.bf16.mxu0 0
    %1022 = vmatpush1.bf16.msra.mxu0 0
    %1023 = vmatprep.subr.bf16.mxu0 0
    %1024 = vmatpush1.bf16.msra.mxu0 %v467
    %1025 = vmatprep.subr.bf16.mxu0 0
    %1026 = vmatpush1.bf16.msra.mxu0 %v466
    %1027 = vmatprep.subr.bf16.mxu0 0
    %1028 = vmatpush2.bf16.msra.mxu0 0
    %1029 = vmatprep.subr.bf16.mxu0 0
    %1030 = vmatpush2.bf16.msra.mxu0 0
    %1031 = vmatprep.subr.bf16.mxu0 0
    %1032 = vmatpush2.bf16.msra.mxu0 0
    %1033 = vmatprep.subr.bf16.mxu0 0
    %1034 = vmatpush2.bf16.msra.mxu0 0
    %1035 = vmatprep.subr.bf16.mxu0 0
    %1036 = vmatpush2.bf16.msra.mxu0 0
    %1037 = vmatprep.subr.bf16.mxu0 0
    %1038 = vmatpush2.bf16.msra.mxu0 0
    %1039 = vmatprep.subr.bf16.mxu0 0
    %1040 = vmatpush2.bf16.msra.mxu0 0
    %1041 = vmatprep.subr.bf16.mxu0 0
    %1042 = vmatpush2.bf16.msra.mxu0 0
    %1043 = vmatprep.mubr.bf16.mxu0 0
    %1044 = vmatmul.mubr.bf16.gmra.mxu0 %v1009
    %v1045 = vpop.f32.mrf.mxu0
    %v1046 = vadd.f32 0.0, %v1045
    %v1047 = vpop.f32.mrf.mxu0
    %v1048 = vpop.f32.mrf.mxu0
    %v1049 = vpop.f32.mrf.mxu0
    %1050 = vdwg.mxu0
    %v1051 = vadd.f32 %v1005, %v1046
    %v1052 = vmul.f32 %v1051, %v50
    %v1053 = vtanh.pop %v1052
    %v1054 = vmul.f32 %v1053, %v50
    %v1055 = vadd.f32 %v1054, %v51
    %v1056 = vmul.f32 %v1055, %v977
    %1058 = vrot.lane.b32.xlu0 %v1055, 64
    %v1059 = vpop.permute.xlu0 %1058
    %v1061 = vmul.f32 %v1055, %v1059
    %1063 = vrot.lane.b32.xlu0 %v1061, 32
    %v1064 = vpop.permute.xlu0 %1063
    %v1066 = vadd.f32 %v1056, %v1064
    %v1067 = vtanh.pop %v1066
    %1069 = vrot.lane.b32.xlu0 %v1067, 64
    %v1070 = vpop.permute.xlu0 %1069
    %v1072 = vmul.f32 %v1055, %v1070
    %v1073 = vpack.c.bf16 %v1072, %v1072
    %v1076 = vunpack.c.l.s4 1966171168
    %v1077 = vunpack.c.0.s8 %v1076
    %v1078 = vlaneseq
    %v1079 = vshrl.u32 %v1078, 7
    %v1080 = vsub.s32 %v1077, %v1079
    %v1081 = vrot.slane %v1073, %v1080
    %v1083 = vunpack.c.l.s4 1966171168
    %v1084 = vunpack.c.0.s8 %v1083
    %v1085 = vlaneseq
    %v1086 = vshrl.u32 %v1085, 7
    %v1087 = vsub.s32 %v1084, %v1086
    %v1088 = vrot.slane %v1081, %v1087
    %1089 = vrot.lane.b32.xlu0 %v1088, 32
    %v1090 = vpop.permute.xlu0 %1089
    %s1092 = scalar_lea.vmem [#allocation2], 6
    %1093 = vst.msk [vmem:[%s1092] sm:$0x1] %vm558, %v1090
    %v1094 = vld [vmem:[%s452] sm:$0x3]
    %1095 = vrot.lane.b32.xlu0 %v1073, 32
    %v1096 = vpop.permute.xlu0 %1095
    %v1098 = vsel %vm80, %v1096, 0
    %1100 = vmatprep.subr.bf16.mxu0 0
    %1101 = vmatpush1.bf16.msra.mxu0 0
    %1102 = vmatprep.subr.bf16.mxu0 0
    %1103 = vmatpush1.bf16.msra.mxu0 0
    %1104 = vmatprep.subr.bf16.mxu0 0
    %1105 = vmatpush1.bf16.msra.mxu0 0
    %1106 = vmatprep.subr.bf16.mxu0 0
    %1107 = vmatpush1.bf16.msra.mxu0 0
    %1108 = vmatprep.subr.bf16.mxu0 0
    %1109 = vmatpush1.bf16.msra.mxu0 0
    %1110 = vmatprep.subr.bf16.mxu0 0
    %1111 = vmatpush1.bf16.msra.mxu0 0
    %1112 = vmatprep.subr.bf16.mxu0 0
    %1113 = vmatpush1.bf16.msra.mxu0 %v467
    %1114 = vmatprep.subr.bf16.mxu0 0
    %1115 = vmatpush1.bf16.msra.mxu0 %v466
    %1116 = vmatprep.subr.bf16.mxu0 0
    %1117 = vmatpush2.bf16.msra.mxu0 0
    %1118 = vmatprep.subr.bf16.mxu0 0
    %1119 = vmatpush2.bf16.msra.mxu0 0
    %1120 = vmatprep.subr.bf16.mxu0 0
    %1121 = vmatpush2.bf16.msra.mxu0 0
    %1122 = vmatprep.subr.bf16.mxu0 0
    %1123 = vmatpush2.bf16.msra.mxu0 0
    %1124 = vmatprep.subr.bf16.mxu0 0
    %1125 = vmatpush2.bf16.msra.mxu0 0
    %1126 = vmatprep.subr.bf16.mxu0 0
    %1127 = vmatpush2.bf16.msra.mxu0 0
    %1128 = vmatprep.subr.bf16.mxu0 0
    %1129 = vmatpush2.bf16.msra.mxu0 0
    %1130 = vmatprep.subr.bf16.mxu0 0
    %1131 = vmatpush2.bf16.msra.mxu0 0
    %1132 = vmatprep.mubr.bf16.mxu0 0
    %1133 = vmatmul.mubr.bf16.gmra.mxu0 %v1098
    %v1134 = vpop.f32.mrf.mxu0
    %v1135 = vadd.f32 0.0, %v1134
    %v1136 = vpop.f32.mrf.mxu0
    %v1137 = vpop.f32.mrf.mxu0
    %v1138 = vpop.f32.mrf.mxu0
    %1139 = vdwg.mxu0
    %v1140 = vadd.f32 %v1094, %v1135
    %v1141 = vmul.f32 %v1140, %v50
    %v1142 = vtanh.pop %v1141
    %v1143 = vmul.f32 %v1142, %v50
    %v1144 = vadd.f32 %v1143, %v51
    %v1145 = vmul.f32 %v1144, %v1066
    %1147 = vrot.lane.b32.xlu0 %v1144, 64
    %v1148 = vpop.permute.xlu0 %1147
    %v1150 = vmul.f32 %v1144, %v1148
    %1152 = vrot.lane.b32.xlu0 %v1150, 32
    %v1153 = vpop.permute.xlu0 %1152
    %v1155 = vadd.f32 %v1145, %v1153
    %v1156 = vtanh.pop %v1155
    %1158 = vrot.lane.b32.xlu0 %v1156, 64
    %v1159 = vpop.permute.xlu0 %1158
    %v1161 = vmul.f32 %v1144, %v1159
    %v1162 = vpack.c.bf16 %v1161, %v1161
    %v1165 = vunpack.c.l.s4 1966171168
    %v1166 = vunpack.c.0.s8 %v1165
    %v1167 = vlaneseq
    %v1168 = vshrl.u32 %v1167, 7
    %v1169 = vsub.s32 %v1166, %v1168
    %v1170 = vrot.slane %v1162, %v1169
    %v1172 = vunpack.c.l.s4 1966171168
    %v1173 = vunpack.c.0.s8 %v1172
    %v1174 = vlaneseq
    %v1175 = vshrl.u32 %v1174, 7
    %v1176 = vsub.s32 %v1173, %v1175
    %v1177 = vrot.slane %v1170, %v1176
    %1178 = vrot.lane.b32.xlu0 %v1177, 32
    %v1179 = vpop.permute.xlu0 %1178
    %s1181 = scalar_lea.vmem [#allocation2], 7
    %1182 = vst.msk [vmem:[%s1181] sm:$0x1] %vm558, %v1179
    %s1183 = scalar_lea.vmem %s1, 16
    %v1184 = vld [vmem:[%s1183] sm:$0xf]
    %v1185 = vld [vmem:[%s1183 + $0x4] sm:$0xf]
    %v1186 = vld [vmem:[%s1183 + $0x8] sm:$0xf]
    %v1187 = vld [vmem:[%s1183 + $0xc] sm:$0xf]
    %s1188 = scalar_lea.vmem %s2, 16
    %v1189 = vld [vmem:[%s1188] sm:$0xf]
    %v1190 = vld [vmem:[%s1188 + $0x4] sm:$0xf]
    %v1191 = vld [vmem:[%s1188 + $0x8] sm:$0xf]
    %v1192 = vld [vmem:[%s1188 + $0xc] sm:$0xf]
    %s1193 = scalar_lea.vmem [#allocation4], 1
    %v1194 = vld [vmem:[%s1193] sm:$0x1]
    %v1195 = vld [vmem:[#allocation2] sm:$0x1]
    %v1197 = vlaneseq
    %v1198 = vshrl.u32 %v1197, 7
    %v1199 = vsub.s32 0, %v1198
    %v1200 = vrot.slane %v1194, %v1199
    %v1206 = vunpack.c.l.b16 %v1184
    %v1207 = vunpack.c.l.b16 %v1185
    %v1208 = vunpack.c.l.b16 %v1186
    %v1209 = vunpack.c.l.b16 %v1187
    %v1210 = vpack.c.b16 %v1207, %v1206
    %v1211 = vpack.c.b16 %v1209, %v1208
    %v1215 = vsel %vm80, %v1195, 0
    %1217 = vmatprep.subr.bf16.mxu0 0
    %1218 = vmatpush1.bf16.msra.mxu0 0
    %1219 = vmatprep.subr.bf16.mxu0 0
    %1220 = vmatpush1.bf16.msra.mxu0 0
    %1221 = vmatprep.subr.bf16.mxu0 0
    %1222 = vmatpush1.bf16.msra.mxu0 0
    %1223 = vmatprep.subr.bf16.mxu0 0
    %1224 = vmatpush1.bf16.msra.mxu0 0
    %1225 = vmatprep.subr.bf16.mxu0 0
    %1226 = vmatpush1.bf16.msra.mxu0 0
    %1227 = vmatprep.subr.bf16.mxu0 0
    %1228 = vmatpush1.bf16.msra.mxu0 0
    %1229 = vmatprep.subr.bf16.mxu0 0
    %1230 = vmatpush1.bf16.msra.mxu0 %v1211
    %1231 = vmatprep.subr.bf16.mxu0 0
    %1232 = vmatpush1.bf16.msra.mxu0 %v1210
    %1233 = vmatprep.subr.bf16.mxu0 0
    %1234 = vmatpush2.bf16.msra.mxu0 0
    %1235 = vmatprep.subr.bf16.mxu0 0
    %1236 = vmatpush2.bf16.msra.mxu0 0
    %1237 = vmatprep.subr.bf16.mxu0 0
    %1238 = vmatpush2.bf16.msra.mxu0 0
    %1239 = vmatprep.subr.bf16.mxu0 0
    %1240 = vmatpush2.bf16.msra.mxu0 0
    %1241 = vmatprep.subr.bf16.mxu0 0
    %1242 = vmatpush2.bf16.msra.mxu0 0
    %1243 = vmatprep.subr.bf16.mxu0 0
    %1244 = vmatpush2.bf16.msra.mxu0 0
    %1245 = vmatprep.subr.bf16.mxu0 0
    %1246 = vmatpush2.bf16.msra.mxu0 0
    %1247 = vmatprep.subr.bf16.mxu0 0
    %1248 = vmatpush2.bf16.msra.mxu0 0
    %1249 = vmatprep.mubr.bf16.mxu0 0
    %1250 = vmatmul.mubr.bf16.gmra.mxu0 %v1215
    %v1251 = vpop.f32.mrf.mxu0
    %v1252 = vadd.f32 %v1200, %v1251
    %v1253 = vpop.f32.mrf.mxu0
    %v1254 = vpop.f32.mrf.mxu0
    %v1255 = vpop.f32.mrf.mxu0
    %1256 = vdwg.mxu0
    %1257 = vst [vmem:[#allocation3] sm:$0x3] %v1252
    %v1258 = vld [vmem:[%s647] sm:$0x1]
    %v1260 = vsel %vm80, %v1258, 0
    %1262 = vmatprep.subr.bf16.mxu0 0
    %1263 = vmatpush1.bf16.msra.mxu0 0
    %1264 = vmatprep.subr.bf16.mxu0 0
    %1265 = vmatpush1.bf16.msra.mxu0 0
    %1266 = vmatprep.subr.bf16.mxu0 0
    %1267 = vmatpush1.bf16.msra.mxu0 0
    %1268 = vmatprep.subr.bf16.mxu0 0
    %1269 = vmatpush1.bf16.msra.mxu0 0
    %1270 = vmatprep.subr.bf16.mxu0 0
    %1271 = vmatpush1.bf16.msra.mxu0 0
    %1272 = vmatprep.subr.bf16.mxu0 0
    %1273 = vmatpush1.bf16.msra.mxu0 0
    %1274 = vmatprep.subr.bf16.mxu0 0
    %1275 = vmatpush1.bf16.msra.mxu0 %v1211
    %1276 = vmatprep.subr.bf16.mxu0 0
    %1277 = vmatpush1.bf16.msra.mxu0 %v1210
    %1278 = vmatprep.subr.bf16.mxu0 0
    %1279 = vmatpush2.bf16.msra.mxu0 0
    %1280 = vmatprep.subr.bf16.mxu0 0
    %1281 = vmatpush2.bf16.msra.mxu0 0
    %1282 = vmatprep.subr.bf16.mxu0 0
    %1283 = vmatpush2.bf16.msra.mxu0 0
    %1284 = vmatprep.subr.bf16.mxu0 0
    %1285 = vmatpush2.bf16.msra.mxu0 0
    %1286 = vmatprep.subr.bf16.mxu0 0
    %1287 = vmatpush2.bf16.msra.mxu0 0
    %1288 = vmatprep.subr.bf16.mxu0 0
    %1289 = vmatpush2.bf16.msra.mxu0 0
    %1290 = vmatprep.subr.bf16.mxu0 0
    %1291 = vmatpush2.bf16.msra.mxu0 0
    %1292 = vmatprep.subr.bf16.mxu0 0
    %1293 = vmatpush2.bf16.msra.mxu0 0
    %1294 = vmatprep.mubr.bf16.mxu0 0
    %1295 = vmatmul.mubr.bf16.gmra.mxu0 %v1260
    %v1296 = vpop.f32.mrf.mxu0
    %v1297 = vadd.f32 %v1200, %v1296
    %v1298 = vpop.f32.mrf.mxu0
    %v1299 = vpop.f32.mrf.mxu0
    %v1300 = vpop.f32.mrf.mxu0
    %1301 = vdwg.mxu0
    %1302 = vst [vmem:[%s170] sm:$0x3] %v1297
    %v1303 = vld [vmem:[%s736] sm:$0x1]
    %v1305 = vsel %vm80, %v1303, 0
    %1307 = vmatprep.subr.bf16.mxu0 0
    %1308 = vmatpush1.bf16.msra.mxu0 0
    %1309 = vmatprep.subr.bf16.mxu0 0
    %1310 = vmatpush1.bf16.msra.mxu0 0
    %1311 = vmatprep.subr.bf16.mxu0 0
    %1312 = vmatpush1.bf16.msra.mxu0 0
    %1313 = vmatprep.subr.bf16.mxu0 0
    %1314 = vmatpush1.bf16.msra.mxu0 0
    %1315 = vmatprep.subr.bf16.mxu0 0
    %1316 = vmatpush1.bf16.msra.mxu0 0
    %1317 = vmatprep.subr.bf16.mxu0 0
    %1318 = vmatpush1.bf16.msra.mxu0 0
    %1319 = vmatprep.subr.bf16.mxu0 0
    %1320 = vmatpush1.bf16.msra.mxu0 %v1211
    %1321 = vmatprep.subr.bf16.mxu0 0
    %1322 = vmatpush1.bf16.msra.mxu0 %v1210
    %1323 = vmatprep.subr.bf16.mxu0 0
    %1324 = vmatpush2.bf16.msra.mxu0 0
    %1325 = vmatprep.subr.bf16.mxu0 0
    %1326 = vmatpush2.bf16.msra.mxu0 0
    %1327 = vmatprep.subr.bf16.mxu0 0
    %1328 = vmatpush2.bf16.msra.mxu0 0
    %1329 = vmatprep.subr.bf16.mxu0 0
    %1330 = vmatpush2.bf16.msra.mxu0 0
    %1331 = vmatprep.subr.bf16.mxu0 0
    %1332 = vmatpush2.bf16.msra.mxu0 0
    %1333 = vmatprep.subr.bf16.mxu0 0
    %1334 = vmatpush2.bf16.msra.mxu0 0
    %1335 = vmatprep.subr.bf16.mxu0 0
    %1336 = vmatpush2.bf16.msra.mxu0 0
    %1337 = vmatprep.subr.bf16.mxu0 0
    %1338 = vmatpush2.bf16.msra.mxu0 0
    %1339 = vmatprep.mubr.bf16.mxu0 0
    %1340 = vmatmul.mubr.bf16.gmra.mxu0 %v1305
    %v1341 = vpop.f32.mrf.mxu0
    %v1342 = vadd.f32 %v1200, %v1341
    %v1343 = vpop.f32.mrf.mxu0
    %v1344 = vpop.f32.mrf.mxu0
    %v1345 = vpop.f32.mrf.mxu0
    %1346 = vdwg.mxu0
    %1347 = vst [vmem:[%s217] sm:$0x3] %v1342
    %v1348 = vld [vmem:[%s825] sm:$0x1]
    %v1350 = vsel %vm80, %v1348, 0
    %1352 = vmatprep.subr.bf16.mxu0 0
    %1353 = vmatpush1.bf16.msra.mxu0 0
    %1354 = vmatprep.subr.bf16.mxu0 0
    %1355 = vmatpush1.bf16.msra.mxu0 0
    %1356 = vmatprep.subr.bf16.mxu0 0
    %1357 = vmatpush1.bf16.msra.mxu0 0
    %1358 = vmatprep.subr.bf16.mxu0 0
    %1359 = vmatpush1.bf16.msra.mxu0 0
    %1360 = vmatprep.subr.bf16.mxu0 0
    %1361 = vmatpush1.bf16.msra.mxu0 0
    %1362 = vmatprep.subr.bf16.mxu0 0
    %1363 = vmatpush1.bf16.msra.mxu0 0
    %1364 = vmatprep.subr.bf16.mxu0 0
    %1365 = vmatpush1.bf16.msra.mxu0 %v1211
    %1366 = vmatprep.subr.bf16.mxu0 0
    %1367 = vmatpush1.bf16.msra.mxu0 %v1210
    %1368 = vmatprep.subr.bf16.mxu0 0
    %1369 = vmatpush2.bf16.msra.mxu0 0
    %1370 = vmatprep.subr.bf16.mxu0 0
    %1371 = vmatpush2.bf16.msra.mxu0 0
    %1372 = vmatprep.subr.bf16.mxu0 0
    %1373 = vmatpush2.bf16.msra.mxu0 0
    %1374 = vmatprep.subr.bf16.mxu0 0
    %1375 = vmatpush2.bf16.msra.mxu0 0
    %1376 = vmatprep.subr.bf16.mxu0 0
    %1377 = vmatpush2.bf16.msra.mxu0 0
    %1378 = vmatprep.subr.bf16.mxu0 0
    %1379 = vmatpush2.bf16.msra.mxu0 0
    %1380 = vmatprep.subr.bf16.mxu0 0
    %1381 = vmatpush2.bf16.msra.mxu0 0
    %1382 = vmatprep.subr.bf16.mxu0 0
    %1383 = vmatpush2.bf16.msra.mxu0 0
    %1384 = vmatprep.mubr.bf16.mxu0 0
    %1385 = vmatmul.mubr.bf16.gmra.mxu0 %v1350
    %v1386 = vpop.f32.mrf.mxu0
    %v1387 = vadd.f32 %v1200, %v1386
    %v1388 = vpop.f32.mrf.mxu0
    %v1389 = vpop.f32.mrf.mxu0
    %v1390 = vpop.f32.mrf.mxu0
    %1391 = vdwg.mxu0
    %1392 = vst [vmem:[%s264] sm:$0x3] %v1387
    %v1393 = vld [vmem:[%s914] sm:$0x1]
    %v1395 = vsel %vm80, %v1393, 0
    %1397 = vmatprep.subr.bf16.mxu0 0
    %1398 = vmatpush1.bf16.msra.mxu0 0
    %1399 = vmatprep.subr.bf16.mxu0 0
    %1400 = vmatpush1.bf16.msra.mxu0 0
    %1401 = vmatprep.subr.bf16.mxu0 0
    %1402 = vmatpush1.bf16.msra.mxu0 0
    %1403 = vmatprep.subr.bf16.mxu0 0
    %1404 = vmatpush1.bf16.msra.mxu0 0
    %1405 = vmatprep.subr.bf16.mxu0 0
    %1406 = vmatpush1.bf16.msra.mxu0 0
    %1407 = vmatprep.subr.bf16.mxu0 0
    %1408 = vmatpush1.bf16.msra.mxu0 0
    %1409 = vmatprep.subr.bf16.mxu0 0
    %1410 = vmatpush1.bf16.msra.mxu0 %v1211
    %1411 = vmatprep.subr.bf16.mxu0 0
    %1412 = vmatpush1.bf16.msra.mxu0 %v1210
    %1413 = vmatprep.subr.bf16.mxu0 0
    %1414 = vmatpush2.bf16.msra.mxu0 0
    %1415 = vmatprep.subr.bf16.mxu0 0
    %1416 = vmatpush2.bf16.msra.mxu0 0
    %1417 = vmatprep.subr.bf16.mxu0 0
    %1418 = vmatpush2.bf16.msra.mxu0 0
    %1419 = vmatprep.subr.bf16.mxu0 0
    %1420 = vmatpush2.bf16.msra.mxu0 0
    %1421 = vmatprep.subr.bf16.mxu0 0
    %1422 = vmatpush2.bf16.msra.mxu0 0
    %1423 = vmatprep.subr.bf16.mxu0 0
    %1424 = vmatpush2.bf16.msra.mxu0 0
    %1425 = vmatprep.subr.bf16.mxu0 0
    %1426 = vmatpush2.bf16.msra.mxu0 0
    %1427 = vmatprep.subr.bf16.mxu0 0
    %1428 = vmatpush2.bf16.msra.mxu0 0
    %1429 = vmatprep.mubr.bf16.mxu0 0
    %1430 = vmatmul.mubr.bf16.gmra.mxu0 %v1395
    %v1431 = vpop.f32.mrf.mxu0
    %v1432 = vadd.f32 %v1200, %v1431
    %v1433 = vpop.f32.mrf.mxu0
    %v1434 = vpop.f32.mrf.mxu0
    %v1435 = vpop.f32.mrf.mxu0
    %1436 = vdwg.mxu0
    %1437 = vst [vmem:[%s311] sm:$0x3] %v1432
    %v1438 = vld [vmem:[%s1003] sm:$0x1]
    %v1440 = vsel %vm80, %v1438, 0
    %1442 = vmatprep.subr.bf16.mxu0 0
    %1443 = vmatpush1.bf16.msra.mxu0 0
    %1444 = vmatprep.subr.bf16.mxu0 0
    %1445 = vmatpush1.bf16.msra.mxu0 0
    %1446 = vmatprep.subr.bf16.mxu0 0
    %1447 = vmatpush1.bf16.msra.mxu0 0
    %1448 = vmatprep.subr.bf16.mxu0 0
    %1449 = vmatpush1.bf16.msra.mxu0 0
    %1450 = vmatprep.subr.bf16.mxu0 0
    %1451 = vmatpush1.bf16.msra.mxu0 0
    %1452 = vmatprep.subr.bf16.mxu0 0
    %1453 = vmatpush1.bf16.msra.mxu0 0
    %1454 = vmatprep.subr.bf16.mxu0 0
    %1455 = vmatpush1.bf16.msra.mxu0 %v1211
    %1456 = vmatprep.subr.bf16.mxu0 0
    %1457 = vmatpush1.bf16.msra.mxu0 %v1210
    %1458 = vmatprep.subr.bf16.mxu0 0
    %1459 = vmatpush2.bf16.msra.mxu0 0
    %1460 = vmatprep.subr.bf16.mxu0 0
    %1461 = vmatpush2.bf16.msra.mxu0 0
    %1462 = vmatprep.subr.bf16.mxu0 0
    %1463 = vmatpush2.bf16.msra.mxu0 0
    %1464 = vmatprep.subr.bf16.mxu0 0
    %1465 = vmatpush2.bf16.msra.mxu0 0
    %1466 = vmatprep.subr.bf16.mxu0 0
    %1467 = vmatpush2.bf16.msra.mxu0 0
    %1468 = vmatprep.subr.bf16.mxu0 0
    %1469 = vmatpush2.bf16.msra.mxu0 0
    %1470 = vmatprep.subr.bf16.mxu0 0
    %1471 = vmatpush2.bf16.msra.mxu0 0
    %1472 = vmatprep.subr.bf16.mxu0 0
    %1473 = vmatpush2.bf16.msra.mxu0 0
    %1474 = vmatprep.mubr.bf16.mxu0 0
    %1475 = vmatmul.mubr.bf16.gmra.mxu0 %v1440
    %v1476 = vpop.f32.mrf.mxu0
    %v1477 = vadd.f32 %v1200, %v1476
    %v1478 = vpop.f32.mrf.mxu0
    %v1479 = vpop.f32.mrf.mxu0
    %v1480 = vpop.f32.mrf.mxu0
    %1481 = vdwg.mxu0
    %1482 = vst [vmem:[%s358] sm:$0x3] %v1477
    %v1483 = vld [vmem:[%s1092] sm:$0x1]
    %v1485 = vsel %vm80, %v1483, 0
    %1487 = vmatprep.subr.bf16.mxu0 0
    %1488 = vmatpush1.bf16.msra.mxu0 0
    %1489 = vmatprep.subr.bf16.mxu0 0
    %1490 = vmatpush1.bf16.msra.mxu0 0
    %1491 = vmatprep.subr.bf16.mxu0 0
    %1492 = vmatpush1.bf16.msra.mxu0 0
    %1493 = vmatprep.subr.bf16.mxu0 0
    %1494 = vmatpush1.bf16.msra.mxu0 0
    %1495 = vmatprep.subr.bf16.mxu0 0
    %1496 = vmatpush1.bf16.msra.mxu0 0
    %1497 = vmatprep.subr.bf16.mxu0 0
    %1498 = vmatpush1.bf16.msra.mxu0 0
    %1499 = vmatprep.subr.bf16.mxu0 0
    %1500 = vmatpush1.bf16.msra.mxu0 %v1211
    %1501 = vmatprep.subr.bf16.mxu0 0
    %1502 = vmatpush1.bf16.msra.mxu0 %v1210
    %1503 = vmatprep.subr.bf16.mxu0 0
    %1504 = vmatpush2.bf16.msra.mxu0 0
    %1505 = vmatprep.subr.bf16.mxu0 0
    %1506 = vmatpush2.bf16.msra.mxu0 0
    %1507 = vmatprep.subr.bf16.mxu0 0
    %1508 = vmatpush2.bf16.msra.mxu0 0
    %1509 = vmatprep.subr.bf16.mxu0 0
    %1510 = vmatpush2.bf16.msra.mxu0 0
    %1511 = vmatprep.subr.bf16.mxu0 0
    %1512 = vmatpush2.bf16.msra.mxu0 0
    %1513 = vmatprep.subr.bf16.mxu0 0
    %1514 = vmatpush2.bf16.msra.mxu0 0
    %1515 = vmatprep.subr.bf16.mxu0 0
    %1516 = vmatpush2.bf16.msra.mxu0 0
    %1517 = vmatprep.subr.bf16.mxu0 0
    %1518 = vmatpush2.bf16.msra.mxu0 0
    %1519 = vmatprep.mubr.bf16.mxu0 0
    %1520 = vmatmul.mubr.bf16.gmra.mxu0 %v1485
    %v1521 = vpop.f32.mrf.mxu0
    %v1522 = vadd.f32 %v1200, %v1521
    %v1523 = vpop.f32.mrf.mxu0
    %v1524 = vpop.f32.mrf.mxu0
    %v1525 = vpop.f32.mrf.mxu0
    %1526 = vdwg.mxu0
    %1527 = vst [vmem:[%s405] sm:$0x3] %v1522
    %v1528 = vld [vmem:[%s1181] sm:$0x1]
    %v1530 = vsel %vm80, %v1528, 0
    %1532 = vmatprep.subr.bf16.mxu0 0
    %1533 = vmatpush1.bf16.msra.mxu0 0
    %1534 = vmatprep.subr.bf16.mxu0 0
    %1535 = vmatpush1.bf16.msra.mxu0 0
    %1536 = vmatprep.subr.bf16.mxu0 0
    %1537 = vmatpush1.bf16.msra.mxu0 0
    %1538 = vmatprep.subr.bf16.mxu0 0
    %1539 = vmatpush1.bf16.msra.mxu0 0
    %1540 = vmatprep.subr.bf16.mxu0 0
    %1541 = vmatpush1.bf16.msra.mxu0 0
    %1542 = vmatprep.subr.bf16.mxu0 0
    %1543 = vmatpush1.bf16.msra.mxu0 0
    %1544 = vmatprep.subr.bf16.mxu0 0
    %1545 = vmatpush1.bf16.msra.mxu0 %v1211
    %1546 = vmatprep.subr.bf16.mxu0 0
    %1547 = vmatpush1.bf16.msra.mxu0 %v1210
    %1548 = vmatprep.subr.bf16.mxu0 0
    %1549 = vmatpush2.bf16.msra.mxu0 0
    %1550 = vmatprep.subr.bf16.mxu0 0
    %1551 = vmatpush2.bf16.msra.mxu0 0
    %1552 = vmatprep.subr.bf16.mxu0 0
    %1553 = vmatpush2.bf16.msra.mxu0 0
    %1554 = vmatprep.subr.bf16.mxu0 0
    %1555 = vmatpush2.bf16.msra.mxu0 0
    %1556 = vmatprep.subr.bf16.mxu0 0
    %1557 = vmatpush2.bf16.msra.mxu0 0
    %1558 = vmatprep.subr.bf16.mxu0 0
    %1559 = vmatpush2.bf16.msra.mxu0 0
    %1560 = vmatprep.subr.bf16.mxu0 0
    %1561 = vmatpush2.bf16.msra.mxu0 0
    %1562 = vmatprep.subr.bf16.mxu0 0
    %1563 = vmatpush2.bf16.msra.mxu0 0
    %1564 = vmatprep.mubr.bf16.mxu0 0
    %1565 = vmatmul.mubr.bf16.gmra.mxu0 %v1530
    %v1566 = vpop.f32.mrf.mxu0
    %v1567 = vadd.f32 %v1200, %v1566
    %v1568 = vpop.f32.mrf.mxu0
    %v1569 = vpop.f32.mrf.mxu0
    %v1570 = vpop.f32.mrf.mxu0
    %1571 = vdwg.mxu0
    %1572 = vst [vmem:[%s452] sm:$0x3] %v1567
    %s1573 = scalar_lea.vmem %s4, 2
    %v1574 = vld [vmem:[%s1573] sm:$0x3]
    %s1575 = scalar_lea.vmem %s5, 2
    %v1576 = vld [vmem:[%s1575] sm:$0x3]
    %v1577 = vld [vmem:[#allocation3] sm:$0x3]
    %v1578 = vpack.c.bf16 %v1574, %v1574
    %v1583 = vunpack.c.l.b16 %v1189
    %v1584 = vunpack.c.l.b16 %v1190
    %v1585 = vunpack.c.l.b16 %v1191
    %v1586 = vunpack.c.l.b16 %v1192
    %v1587 = vpack.c.b16 %v1584, %v1583
    %v1588 = vpack.c.b16 %v1586, %v1585
    %v1592 = vsel %vm80, %v1578, 0
    %1594 = vmatprep.subr.bf16.mxu0 0
    %1595 = vmatpush1.bf16.msra.mxu0 0
    %1596 = vmatprep.subr.bf16.mxu0 0
    %1597 = vmatpush1.bf16.msra.mxu0 0
    %1598 = vmatprep.subr.bf16.mxu0 0
    %1599 = vmatpush1.bf16.msra.mxu0 0
    %1600 = vmatprep.subr.bf16.mxu0 0
    %1601 = vmatpush1.bf16.msra.mxu0 0
    %1602 = vmatprep.subr.bf16.mxu0 0
    %1603 = vmatpush1.bf16.msra.mxu0 0
    %1604 = vmatprep.subr.bf16.mxu0 0
    %1605 = vmatpush1.bf16.msra.mxu0 0
    %1606 = vmatprep.subr.bf16.mxu0 0
    %1607 = vmatpush1.bf16.msra.mxu0 %v1588
    %1608 = vmatprep.subr.bf16.mxu0 0
    %1609 = vmatpush1.bf16.msra.mxu0 %v1587
    %1610 = vmatprep.subr.bf16.mxu0 0
    %1611 = vmatpush2.bf16.msra.mxu0 0
    %1612 = vmatprep.subr.bf16.mxu0 0
    %1613 = vmatpush2.bf16.msra.mxu0 0
    %1614 = vmatprep.subr.bf16.mxu0 0
    %1615 = vmatpush2.bf16.msra.mxu0 0
    %1616 = vmatprep.subr.bf16.mxu0 0
    %1617 = vmatpush2.bf16.msra.mxu0 0
    %1618 = vmatprep.subr.bf16.mxu0 0
    %1619 = vmatpush2.bf16.msra.mxu0 0
    %1620 = vmatprep.subr.bf16.mxu0 0
    %1621 = vmatpush2.bf16.msra.mxu0 0
    %1622 = vmatprep.subr.bf16.mxu0 0
    %1623 = vmatpush2.bf16.msra.mxu0 0
    %1624 = vmatprep.subr.bf16.mxu0 0
    %1625 = vmatpush2.bf16.msra.mxu0 0
    %1626 = vmatprep.mubr.bf16.mxu0 0
    %1627 = vmatmul.mubr.bf16.gmra.mxu0 %v1592
    %v1628 = vpop.f32.mrf.mxu0
    %v1629 = vadd.f32 0.0, %v1628
    %v1630 = vpop.f32.mrf.mxu0
    %v1631 = vpop.f32.mrf.mxu0
    %v1632 = vpop.f32.mrf.mxu0
    %1633 = vdwg.mxu0
    %v1634 = vadd.f32 %v1577, %v1629
    %v1635 = vmul.f32 %v1634, %v50
    %v1636 = vtanh.pop %v1635
    %v1637 = vmul.f32 %v1636, %v50
    %v1638 = vadd.f32 %v1637, %v51
    %1640 = vrot.lane.b32.xlu0 %v1576, 32
    %v1641 = vpop.permute.xlu0 %1640
    %v1643 = vmul.f32 %v1638, %v1641
    %1645 = vrot.lane.b32.xlu0 %v1638, 64
    %v1646 = vpop.permute.xlu0 %1645
    %v1648 = vmul.f32 %v1638, %v1646
    %1650 = vrot.lane.b32.xlu0 %v1648, 32
    %v1651 = vpop.permute.xlu0 %1650
    %v1653 = vadd.f32 %v1643, %v1651
    %v1654 = vtanh.pop %v1653
    %1656 = vrot.lane.b32.xlu0 %v1654, 64
    %v1657 = vpop.permute.xlu0 %1656
    %v1659 = vmul.f32 %v1638, %v1657
    %v1660 = vld [vmem:[%s170] sm:$0x3]
    %v1661 = vpack.c.bf16 %v1659, %v1659
    %1663 = vrot.lane.b32.xlu0 %v1661, 32
    %v1664 = vpop.permute.xlu0 %1663
    %v1666 = vsel %vm80, %v1664, 0
    %1668 = vmatprep.subr.bf16.mxu0 0
    %1669 = vmatpush1.bf16.msra.mxu0 0
    %1670 = vmatprep.subr.bf16.mxu0 0
    %1671 = vmatpush1.bf16.msra.mxu0 0
    %1672 = vmatprep.subr.bf16.mxu0 0
    %1673 = vmatpush1.bf16.msra.mxu0 0
    %1674 = vmatprep.subr.bf16.mxu0 0
    %1675 = vmatpush1.bf16.msra.mxu0 0
    %1676 = vmatprep.subr.bf16.mxu0 0
    %1677 = vmatpush1.bf16.msra.mxu0 0
    %1678 = vmatprep.subr.bf16.mxu0 0
    %1679 = vmatpush1.bf16.msra.mxu0 0
    %1680 = vmatprep.subr.bf16.mxu0 0
    %1681 = vmatpush1.bf16.msra.mxu0 %v1588
    %1682 = vmatprep.subr.bf16.mxu0 0
    %1683 = vmatpush1.bf16.msra.mxu0 %v1587
    %1684 = vmatprep.subr.bf16.mxu0 0
    %1685 = vmatpush2.bf16.msra.mxu0 0
    %1686 = vmatprep.subr.bf16.mxu0 0
    %1687 = vmatpush2.bf16.msra.mxu0 0
    %1688 = vmatprep.subr.bf16.mxu0 0
    %1689 = vmatpush2.bf16.msra.mxu0 0
    %1690 = vmatprep.subr.bf16.mxu0 0
    %1691 = vmatpush2.bf16.msra.mxu0 0
    %1692 = vmatprep.subr.bf16.mxu0 0
    %1693 = vmatpush2.bf16.msra.mxu0 0
    %1694 = vmatprep.subr.bf16.mxu0 0
    %1695 = vmatpush2.bf16.msra.mxu0 0
    %1696 = vmatprep.subr.bf16.mxu0 0
    %1697 = vmatpush2.bf16.msra.mxu0 0
    %1698 = vmatprep.subr.bf16.mxu0 0
    %1699 = vmatpush2.bf16.msra.mxu0 0
    %1700 = vmatprep.mubr.bf16.mxu0 0
    %1701 = vmatmul.mubr.bf16.gmra.mxu0 %v1666
    %v1702 = vpop.f32.mrf.mxu0
    %v1703 = vadd.f32 0.0, %v1702
    %v1704 = vpop.f32.mrf.mxu0
    %v1705 = vpop.f32.mrf.mxu0
    %v1706 = vpop.f32.mrf.mxu0
    %1707 = vdwg.mxu0
    %v1708 = vadd.f32 %v1660, %v1703
    %v1709 = vmul.f32 %v1708, %v50
    %v1710 = vtanh.pop %v1709
    %v1711 = vmul.f32 %v1710, %v50
    %v1712 = vadd.f32 %v1711, %v51
    %v1713 = vmul.f32 %v1712, %v1653
    %1715 = vrot.lane.b32.xlu0 %v1712, 64
    %v1716 = vpop.permute.xlu0 %1715
    %v1718 = vmul.f32 %v1712, %v1716
    %1720 = vrot.lane.b32.xlu0 %v1718, 32
    %v1721 = vpop.permute.xlu0 %1720
    %v1723 = vadd.f32 %v1713, %v1721
    %v1724 = vtanh.pop %v1723
    %1726 = vrot.lane.b32.xlu0 %v1724, 64
    %v1727 = vpop.permute.xlu0 %1726
    %v1729 = vmul.f32 %v1712, %v1727
    %v1730 = vld [vmem:[%s217] sm:$0x3]
    %v1731 = vpack.c.bf16 %v1729, %v1729
    %1733 = vrot.lane.b32.xlu0 %v1731, 32
    %v1734 = vpop.permute.xlu0 %1733
    %v1736 = vsel %vm80, %v1734, 0
    %1738 = vmatprep.subr.bf16.mxu0 0
    %1739 = vmatpush1.bf16.msra.mxu0 0
    %1740 = vmatprep.subr.bf16.mxu0 0
    %1741 = vmatpush1.bf16.msra.mxu0 0
    %1742 = vmatprep.subr.bf16.mxu0 0
    %1743 = vmatpush1.bf16.msra.mxu0 0
    %1744 = vmatprep.subr.bf16.mxu0 0
    %1745 = vmatpush1.bf16.msra.mxu0 0
    %1746 = vmatprep.subr.bf16.mxu0 0
    %1747 = vmatpush1.bf16.msra.mxu0 0
    %1748 = vmatprep.subr.bf16.mxu0 0
    %1749 = vmatpush1.bf16.msra.mxu0 0
    %1750 = vmatprep.subr.bf16.mxu0 0
    %1751 = vmatpush1.bf16.msra.mxu0 %v1588
    %1752 = vmatprep.subr.bf16.mxu0 0
    %1753 = vmatpush1.bf16.msra.mxu0 %v1587
    %1754 = vmatprep.subr.bf16.mxu0 0
    %1755 = vmatpush2.bf16.msra.mxu0 0
    %1756 = vmatprep.subr.bf16.mxu0 0
    %1757 = vmatpush2.bf16.msra.mxu0 0
    %1758 = vmatprep.subr.bf16.mxu0 0
    %1759 = vmatpush2.bf16.msra.mxu0 0
    %1760 = vmatprep.subr.bf16.mxu0 0
    %1761 = vmatpush2.bf16.msra.mxu0 0
    %1762 = vmatprep.subr.bf16.mxu0 0
    %1763 = vmatpush2.bf16.msra.mxu0 0
    %1764 = vmatprep.subr.bf16.mxu0 0
    %1765 = vmatpush2.bf16.msra.mxu0 0
    %1766 = vmatprep.subr.bf16.mxu0 0
    %1767 = vmatpush2.bf16.msra.mxu0 0
    %1768 = vmatprep.subr.bf16.mxu0 0
    %1769 = vmatpush2.bf16.msra.mxu0 0
    %1770 = vmatprep.mubr.bf16.mxu0 0
    %1771 = vmatmul.mubr.bf16.gmra.mxu0 %v1736
    %v1772 = vpop.f32.mrf.mxu0
    %v1773 = vadd.f32 0.0, %v1772
    %v1774 = vpop.f32.mrf.mxu0
    %v1775 = vpop.f32.mrf.mxu0
    %v1776 = vpop.f32.mrf.mxu0
    %1777 = vdwg.mxu0
    %v1778 = vadd.f32 %v1730, %v1773
    %v1779 = vmul.f32 %v1778, %v50
    %v1780 = vtanh.pop %v1779
    %v1781 = vmul.f32 %v1780, %v50
    %v1782 = vadd.f32 %v1781, %v51
    %v1783 = vmul.f32 %v1782, %v1723
    %1785 = vrot.lane.b32.xlu0 %v1782, 64
    %v1786 = vpop.permute.xlu0 %1785
    %v1788 = vmul.f32 %v1782, %v1786
    %1790 = vrot.lane.b32.xlu0 %v1788, 32
    %v1791 = vpop.permute.xlu0 %1790
    %v1793 = vadd.f32 %v1783, %v1791
    %v1794 = vtanh.pop %v1793
    %1796 = vrot.lane.b32.xlu0 %v1794, 64
    %v1797 = vpop.permute.xlu0 %1796
    %v1799 = vmul.f32 %v1782, %v1797
    %v1800 = vld [vmem:[%s264] sm:$0x3]
    %v1801 = vpack.c.bf16 %v1799, %v1799
    %1803 = vrot.lane.b32.xlu0 %v1801, 32
    %v1804 = vpop.permute.xlu0 %1803
    %v1806 = vsel %vm80, %v1804, 0
    %1808 = vmatprep.subr.bf16.mxu0 0
    %1809 = vmatpush1.bf16.msra.mxu0 0
    %1810 = vmatprep.subr.bf16.mxu0 0
    %1811 = vmatpush1.bf16.msra.mxu0 0
    %1812 = vmatprep.subr.bf16.mxu0 0
    %1813 = vmatpush1.bf16.msra.mxu0 0
    %1814 = vmatprep.subr.bf16.mxu0 0
    %1815 = vmatpush1.bf16.msra.mxu0 0
    %1816 = vmatprep.subr.bf16.mxu0 0
    %1817 = vmatpush1.bf16.msra.mxu0 0
    %1818 = vmatprep.subr.bf16.mxu0 0
    %1819 = vmatpush1.bf16.msra.mxu0 0
    %1820 = vmatprep.subr.bf16.mxu0 0
    %1821 = vmatpush1.bf16.msra.mxu0 %v1588
    %1822 = vmatprep.subr.bf16.mxu0 0
    %1823 = vmatpush1.bf16.msra.mxu0 %v1587
    %1824 = vmatprep.subr.bf16.mxu0 0
    %1825 = vmatpush2.bf16.msra.mxu0 0
    %1826 = vmatprep.subr.bf16.mxu0 0
    %1827 = vmatpush2.bf16.msra.mxu0 0
    %1828 = vmatprep.subr.bf16.mxu0 0
    %1829 = vmatpush2.bf16.msra.mxu0 0
    %1830 = vmatprep.subr.bf16.mxu0 0
    %1831 = vmatpush2.bf16.msra.mxu0 0
    %1832 = vmatprep.subr.bf16.mxu0 0
    %1833 = vmatpush2.bf16.msra.mxu0 0
    %1834 = vmatprep.subr.bf16.mxu0 0
    %1835 = vmatpush2.bf16.msra.mxu0 0
    %1836 = vmatprep.subr.bf16.mxu0 0
    %1837 = vmatpush2.bf16.msra.mxu0 0
    %1838 = vmatprep.subr.bf16.mxu0 0
    %1839 = vmatpush2.bf16.msra.mxu0 0
    %1840 = vmatprep.mubr.bf16.mxu0 0
    %1841 = vmatmul.mubr.bf16.gmra.mxu0 %v1806
    %v1842 = vpop.f32.mrf.mxu0
    %v1843 = vadd.f32 0.0, %v1842
    %v1844 = vpop.f32.mrf.mxu0
    %v1845 = vpop.f32.mrf.mxu0
    %v1846 = vpop.f32.mrf.mxu0
    %1847 = vdwg.mxu0
    %v1848 = vadd.f32 %v1800, %v1843
    %v1849 = vmul.f32 %v1848, %v50
    %v1850 = vtanh.pop %v1849
    %v1851 = vmul.f32 %v1850, %v50
    %v1852 = vadd.f32 %v1851, %v51
    %v1853 = vmul.f32 %v1852, %v1793
    %1855 = vrot.lane.b32.xlu0 %v1852, 64
    %v1856 = vpop.permute.xlu0 %1855
    %v1858 = vmul.f32 %v1852, %v1856
    %1860 = vrot.lane.b32.xlu0 %v1858, 32
    %v1861 = vpop.permute.xlu0 %1860
    %v1863 = vadd.f32 %v1853, %v1861
    %v1864 = vtanh.pop %v1863
    %1866 = vrot.lane.b32.xlu0 %v1864, 64
    %v1867 = vpop.permute.xlu0 %1866
    %v1869 = vmul.f32 %v1852, %v1867
    %v1870 = vld [vmem:[%s311] sm:$0x3]
    %v1871 = vpack.c.bf16 %v1869, %v1869
    %1873 = vrot.lane.b32.xlu0 %v1871, 32
    %v1874 = vpop.permute.xlu0 %1873
    %v1876 = vsel %vm80, %v1874, 0
    %1878 = vmatprep.subr.bf16.mxu0 0
    %1879 = vmatpush1.bf16.msra.mxu0 0
    %1880 = vmatprep.subr.bf16.mxu0 0
    %1881 = vmatpush1.bf16.msra.mxu0 0
    %1882 = vmatprep.subr.bf16.mxu0 0
    %1883 = vmatpush1.bf16.msra.mxu0 0
    %1884 = vmatprep.subr.bf16.mxu0 0
    %1885 = vmatpush1.bf16.msra.mxu0 0
    %1886 = vmatprep.subr.bf16.mxu0 0
    %1887 = vmatpush1.bf16.msra.mxu0 0
    %1888 = vmatprep.subr.bf16.mxu0 0
    %1889 = vmatpush1.bf16.msra.mxu0 0
    %1890 = vmatprep.subr.bf16.mxu0 0
    %1891 = vmatpush1.bf16.msra.mxu0 %v1588
    %1892 = vmatprep.subr.bf16.mxu0 0
    %1893 = vmatpush1.bf16.msra.mxu0 %v1587
    %1894 = vmatprep.subr.bf16.mxu0 0
    %1895 = vmatpush2.bf16.msra.mxu0 0
    %1896 = vmatprep.subr.bf16.mxu0 0
    %1897 = vmatpush2.bf16.msra.mxu0 0
    %1898 = vmatprep.subr.bf16.mxu0 0
    %1899 = vmatpush2.bf16.msra.mxu0 0
    %1900 = vmatprep.subr.bf16.mxu0 0
    %1901 = vmatpush2.bf16.msra.mxu0 0
    %1902 = vmatprep.subr.bf16.mxu0 0
    %1903 = vmatpush2.bf16.msra.mxu0 0
    %1904 = vmatprep.subr.bf16.mxu0 0
    %1905 = vmatpush2.bf16.msra.mxu0 0
    %1906 = vmatprep.subr.bf16.mxu0 0
    %1907 = vmatpush2.bf16.msra.mxu0 0
    %1908 = vmatprep.subr.bf16.mxu0 0
    %1909 = vmatpush2.bf16.msra.mxu0 0
    %1910 = vmatprep.mubr.bf16.mxu0 0
    %1911 = vmatmul.mubr.bf16.gmra.mxu0 %v1876
    %v1912 = vpop.f32.mrf.mxu0
    %v1913 = vadd.f32 0.0, %v1912
    %v1914 = vpop.f32.mrf.mxu0
    %v1915 = vpop.f32.mrf.mxu0
    %v1916 = vpop.f32.mrf.mxu0
    %1917 = vdwg.mxu0
    %v1918 = vadd.f32 %v1870, %v1913
    %v1919 = vmul.f32 %v1918, %v50
    %v1920 = vtanh.pop %v1919
    %v1921 = vmul.f32 %v1920, %v50
    %v1922 = vadd.f32 %v1921, %v51
    %v1923 = vmul.f32 %v1922, %v1863
    %1925 = vrot.lane.b32.xlu0 %v1922, 64
    %v1926 = vpop.permute.xlu0 %1925
    %v1928 = vmul.f32 %v1922, %v1926
    %1930 = vrot.lane.b32.xlu0 %v1928, 32
    %v1931 = vpop.permute.xlu0 %1930
    %v1933 = vadd.f32 %v1923, %v1931
    %v1934 = vtanh.pop %v1933
    %1936 = vrot.lane.b32.xlu0 %v1934, 64
    %v1937 = vpop.permute.xlu0 %1936
    %v1939 = vmul.f32 %v1922, %v1937
    %v1940 = vld [vmem:[%s358] sm:$0x3]
    %v1941 = vpack.c.bf16 %v1939, %v1939
    %1943 = vrot.lane.b32.xlu0 %v1941, 32
    %v1944 = vpop.permute.xlu0 %1943
    %v1946 = vsel %vm80, %v1944, 0
    %1948 = vmatprep.subr.bf16.mxu0 0
    %1949 = vmatpush1.bf16.msra.mxu0 0
    %1950 = vmatprep.subr.bf16.mxu0 0
    %1951 = vmatpush1.bf16.msra.mxu0 0
    %1952 = vmatprep.subr.bf16.mxu0 0
    %1953 = vmatpush1.bf16.msra.mxu0 0
    %1954 = vmatprep.subr.bf16.mxu0 0
    %1955 = vmatpush1.bf16.msra.mxu0 0
    %1956 = vmatprep.subr.bf16.mxu0 0
    %1957 = vmatpush1.bf16.msra.mxu0 0
    %1958 = vmatprep.subr.bf16.mxu0 0
    %1959 = vmatpush1.bf16.msra.mxu0 0
    %1960 = vmatprep.subr.bf16.mxu0 0
    %1961 = vmatpush1.bf16.msra.mxu0 %v1588
    %1962 = vmatprep.subr.bf16.mxu0 0
    %1963 = vmatpush1.bf16.msra.mxu0 %v1587
    %1964 = vmatprep.subr.bf16.mxu0 0
    %1965 = vmatpush2.bf16.msra.mxu0 0
    %1966 = vmatprep.subr.bf16.mxu0 0
    %1967 = vmatpush2.bf16.msra.mxu0 0
    %1968 = vmatprep.subr.bf16.mxu0 0
    %1969 = vmatpush2.bf16.msra.mxu0 0
    %1970 = vmatprep.subr.bf16.mxu0 0
    %1971 = vmatpush2.bf16.msra.mxu0 0
    %1972 = vmatprep.subr.bf16.mxu0 0
    %1973 = vmatpush2.bf16.msra.mxu0 0
    %1974 = vmatprep.subr.bf16.mxu0 0
    %1975 = vmatpush2.bf16.msra.mxu0 0
    %1976 = vmatprep.subr.bf16.mxu0 0
    %1977 = vmatpush2.bf16.msra.mxu0 0
    %1978 = vmatprep.subr.bf16.mxu0 0
    %1979 = vmatpush2.bf16.msra.mxu0 0
    %1980 = vmatprep.mubr.bf16.mxu0 0
    %1981 = vmatmul.mubr.bf16.gmra.mxu0 %v1946
    %v1982 = vpop.f32.mrf.mxu0
    %v1983 = vadd.f32 0.0, %v1982
    %v1984 = vpop.f32.mrf.mxu0
    %v1985 = vpop.f32.mrf.mxu0
    %v1986 = vpop.f32.mrf.mxu0
    %1987 = vdwg.mxu0
    %v1988 = vadd.f32 %v1940, %v1983
    %v1989 = vmul.f32 %v1988, %v50
    %v1990 = vtanh.pop %v1989
    %v1991 = vmul.f32 %v1990, %v50
    %v1992 = vadd.f32 %v1991, %v51
    %v1993 = vmul.f32 %v1992, %v1933
    %1995 = vrot.lane.b32.xlu0 %v1992, 64
    %v1996 = vpop.permute.xlu0 %1995
    %v1998 = vmul.f32 %v1992, %v1996
    %2000 = vrot.lane.b32.xlu0 %v1998, 32
    %v2001 = vpop.permute.xlu0 %2000
    %v2003 = vadd.f32 %v1993, %v2001
    %v2004 = vtanh.pop %v2003
    %2006 = vrot.lane.b32.xlu0 %v2004, 64
    %v2007 = vpop.permute.xlu0 %2006
    %v2009 = vmul.f32 %v1992, %v2007
    %v2010 = vld [vmem:[%s405] sm:$0x3]
    %v2011 = vpack.c.bf16 %v2009, %v2009
    %2013 = vrot.lane.b32.xlu0 %v2011, 32
    %v2014 = vpop.permute.xlu0 %2013
    %v2016 = vsel %vm80, %v2014, 0
    %2018 = vmatprep.subr.bf16.mxu0 0
    %2019 = vmatpush1.bf16.msra.mxu0 0
    %2020 = vmatprep.subr.bf16.mxu0 0
    %2021 = vmatpush1.bf16.msra.mxu0 0
    %2022 = vmatprep.subr.bf16.mxu0 0
    %2023 = vmatpush1.bf16.msra.mxu0 0
    %2024 = vmatprep.subr.bf16.mxu0 0
    %2025 = vmatpush1.bf16.msra.mxu0 0
    %2026 = vmatprep.subr.bf16.mxu0 0
    %2027 = vmatpush1.bf16.msra.mxu0 0
    %2028 = vmatprep.subr.bf16.mxu0 0
    %2029 = vmatpush1.bf16.msra.mxu0 0
    %2030 = vmatprep.subr.bf16.mxu0 0
    %2031 = vmatpush1.bf16.msra.mxu0 %v1588
    %2032 = vmatprep.subr.bf16.mxu0 0
    %2033 = vmatpush1.bf16.msra.mxu0 %v1587
    %2034 = vmatprep.subr.bf16.mxu0 0
    %2035 = vmatpush2.bf16.msra.mxu0 0
    %2036 = vmatprep.subr.bf16.mxu0 0
    %2037 = vmatpush2.bf16.msra.mxu0 0
    %2038 = vmatprep.subr.bf16.mxu0 0
    %2039 = vmatpush2.bf16.msra.mxu0 0
    %2040 = vmatprep.subr.bf16.mxu0 0
    %2041 = vmatpush2.bf16.msra.mxu0 0
    %2042 = vmatprep.subr.bf16.mxu0 0
    %2043 = vmatpush2.bf16.msra.mxu0 0
    %2044 = vmatprep.subr.bf16.mxu0 0
    %2045 = vmatpush2.bf16.msra.mxu0 0
    %2046 = vmatprep.subr.bf16.mxu0 0
    %2047 = vmatpush2.bf16.msra.mxu0 0
    %2048 = vmatprep.subr.bf16.mxu0 0
    %2049 = vmatpush2.bf16.msra.mxu0 0
    %2050 = vmatprep.mubr.bf16.mxu0 0
    %2051 = vmatmul.mubr.bf16.gmra.mxu0 %v2016
    %v2052 = vpop.f32.mrf.mxu0
    %v2053 = vadd.f32 0.0, %v2052
    %v2054 = vpop.f32.mrf.mxu0
    %v2055 = vpop.f32.mrf.mxu0
    %v2056 = vpop.f32.mrf.mxu0
    %2057 = vdwg.mxu0
    %v2058 = vadd.f32 %v2010, %v2053
    %v2059 = vmul.f32 %v2058, %v50
    %v2060 = vtanh.pop %v2059
    %v2061 = vmul.f32 %v2060, %v50
    %v2062 = vadd.f32 %v2061, %v51
    %v2063 = vmul.f32 %v2062, %v2003
    %2065 = vrot.lane.b32.xlu0 %v2062, 64
    %v2066 = vpop.permute.xlu0 %2065
    %v2068 = vmul.f32 %v2062, %v2066
    %2070 = vrot.lane.b32.xlu0 %v2068, 32
    %v2071 = vpop.permute.xlu0 %2070
    %v2073 = vadd.f32 %v2063, %v2071
    %v2074 = vtanh.pop %v2073
    %2076 = vrot.lane.b32.xlu0 %v2074, 64
    %v2077 = vpop.permute.xlu0 %2076
    %v2079 = vmul.f32 %v2062, %v2077
    %v2080 = vld [vmem:[%s452] sm:$0x3]
    %v2081 = vpack.c.bf16 %v2079, %v2079
    %2083 = vrot.lane.b32.xlu0 %v2081, 32
    %v2084 = vpop.permute.xlu0 %2083
    %v2086 = vsel %vm80, %v2084, 0
    %2088 = vmatprep.subr.bf16.mxu0 0
    %2089 = vmatpush1.bf16.msra.mxu0 0
    %2090 = vmatprep.subr.bf16.mxu0 0
    %2091 = vmatpush1.bf16.msra.mxu0 0
    %2092 = vmatprep.subr.bf16.mxu0 0
    %2093 = vmatpush1.bf16.msra.mxu0 0
    %2094 = vmatprep.subr.bf16.mxu0 0
    %2095 = vmatpush1.bf16.msra.mxu0 0
    %2096 = vmatprep.subr.bf16.mxu0 0
    %2097 = vmatpush1.bf16.msra.mxu0 0
    %2098 = vmatprep.subr.bf16.mxu0 0
    %2099 = vmatpush1.bf16.msra.mxu0 0
    %2100 = vmatprep.subr.bf16.mxu0 0
    %2101 = vmatpush1.bf16.msra.mxu0 %v1588
    %2102 = vmatprep.subr.bf16.mxu0 0
    %2103 = vmatpush1.bf16.msra.mxu0 %v1587
    %2104 = vmatprep.subr.bf16.mxu0 0
    %2105 = vmatpush2.bf16.msra.mxu0 0
    %2106 = vmatprep.subr.bf16.mxu0 0
    %2107 = vmatpush2.bf16.msra.mxu0 0
    %2108 = vmatprep.subr.bf16.mxu0 0
    %2109 = vmatpush2.bf16.msra.mxu0 0
    %2110 = vmatprep.subr.bf16.mxu0 0
    %2111 = vmatpush2.bf16.msra.mxu0 0
    %2112 = vmatprep.subr.bf16.mxu0 0
    %2113 = vmatpush2.bf16.msra.mxu0 0
    %2114 = vmatprep.subr.bf16.mxu0 0
    %2115 = vmatpush2.bf16.msra.mxu0 0
    %2116 = vmatprep.subr.bf16.mxu0 0
    %2117 = vmatpush2.bf16.msra.mxu0 0
    %2118 = vmatprep.subr.bf16.mxu0 0
    %2119 = vmatpush2.bf16.msra.mxu0 0
    %2120 = vmatprep.mubr.bf16.mxu0 0
    %2121 = vmatmul.mubr.bf16.gmra.mxu0 %v2086
    %v2122 = vpop.f32.mrf.mxu0
    %v2123 = vadd.f32 0.0, %v2122
    %v2124 = vpop.f32.mrf.mxu0
    %v2125 = vpop.f32.mrf.mxu0
    %v2126 = vpop.f32.mrf.mxu0
    %2127 = vdwg.mxu0
    %v2128 = vadd.f32 %v2080, %v2123
    %v2129 = vmul.f32 %v2128, %v50
    %v2130 = vtanh.pop %v2129
    %v2131 = vmul.f32 %v2130, %v50
    %v2132 = vadd.f32 %v2131, %v51
    %v2133 = vmul.f32 %v2132, %v2073
    %2135 = vrot.lane.b32.xlu0 %v2132, 64
    %v2136 = vpop.permute.xlu0 %2135
    %v2138 = vmul.f32 %v2132, %v2136
    %2140 = vrot.lane.b32.xlu0 %v2138, 32
    %v2141 = vpop.permute.xlu0 %2140
    %v2143 = vadd.f32 %v2133, %v2141
    %v2144 = vtanh.pop %v2143
    %2146 = vrot.lane.b32.xlu0 %v2144, 64
    %v2147 = vpop.permute.xlu0 %2146
    %v2149 = vmul.f32 %v2132, %v2147
    %v2150 = vld [vmem:[%s6] sm:$0xff]
    %v2151 = vld [vmem:[%s6 + $0x8] sm:$0xff]
    %v2152 = vld [vmem:[%s6 + $0x10] sm:$0xff]
    %v2153 = vld [vmem:[%s6 + $0x18] sm:$0xff]
    %v2154 = vld [vmem:[%s7] sm:$0x1]
    %v2156 = vlaneseq
    %v2157 = vshrl.u32 %v2156, 7
    %v2158 = vsub.s32 0, %v2157
    %v2159 = vrot.slane %v2154, %v2158
    %2162 = vrot.lane.b32.xlu0 %v2149, 32
    %v2163 = vpop.permute.xlu0 %2162
    %v2164 = vsel %vm80, %v2163, 0
    %2166 = vmatprep.subr.mxu0 0.0
    %2167 = vmatpush1.msra.mxu0 0.0
    %2168 = vmatprep.subr.mxu0 0.0
    %2169 = vmatpush1.msra.mxu0 0.0
    %2170 = vmatprep.subr.mxu0 0.0
    %2171 = vmatpush1.msra.mxu0 0.0
    %2172 = vmatprep.subr.mxu0 0.0
    %2173 = vmatpush1.msra.mxu0 0.0
    %2174 = vmatprep.subr.mxu0 0.0
    %2175 = vmatpush1.msra.mxu0 0.0
    %2176 = vmatprep.subr.mxu0 0.0
    %2177 = vmatpush1.msra.mxu0 0.0
    %2178 = vmatprep.subr.mxu0 0.0
    %2179 = vmatpush1.msra.mxu0 0.0
    %2180 = vmatprep.subr.mxu0 0.0
    %2181 = vmatpush1.msra.mxu0 0.0
    %2182 = vmatprep.subr.mxu0 0.0
    %2183 = vmatpush1.msra.mxu0 0.0
    %2184 = vmatprep.subr.mxu0 0.0
    %2185 = vmatpush1.msra.mxu0 0.0
    %2186 = vmatprep.subr.mxu0 0.0
    %2187 = vmatpush1.msra.mxu0 0.0
    %2188 = vmatprep.subr.mxu0 0.0
    %2189 = vmatpush1.msra.mxu0 0.0
    %2190 = vmatprep.subr.mxu0 0.0
    %2191 = vmatpush1.msra.mxu0 %v2153
    %2192 = vmatprep.subr.mxu0 0.0
    %2193 = vmatpush1.msra.mxu0 %v2152
    %2194 = vmatprep.subr.mxu0 0.0
    %2195 = vmatpush1.msra.mxu0 %v2151
    %2196 = vmatprep.subr.mxu0 0.0
    %2197 = vmatpush1.msra.mxu0 %v2150
    %2198 = vmatprep.subr.mxu0 0.0
    %2199 = vmatpush2.msra.mxu0 0.0
    %2200 = vmatprep.subr.mxu0 0.0
    %2201 = vmatpush2.msra.mxu0 0.0
    %2202 = vmatprep.subr.mxu0 0.0
    %2203 = vmatpush2.msra.mxu0 0.0
    %2204 = vmatprep.subr.mxu0 0.0
    %2205 = vmatpush2.msra.mxu0 0.0
    %2206 = vmatprep.subr.mxu0 0.0
    %2207 = vmatpush2.msra.mxu0 0.0
    %2208 = vmatprep.subr.mxu0 0.0
    %2209 = vmatpush2.msra.mxu0 0.0
    %2210 = vmatprep.subr.mxu0 0.0
    %2211 = vmatpush2.msra.mxu0 0.0
    %2212 = vmatprep.subr.mxu0 0.0
    %2213 = vmatpush2.msra.mxu0 0.0
    %2214 = vmatprep.subr.mxu0 0.0
    %2215 = vmatpush2.msra.mxu0 0.0
    %2216 = vmatprep.subr.mxu0 0.0
    %2217 = vmatpush2.msra.mxu0 0.0
    %2218 = vmatprep.subr.mxu0 0.0
    %2219 = vmatpush2.msra.mxu0 0.0
    %2220 = vmatprep.subr.mxu0 0.0
    %2221 = vmatpush2.msra.mxu0 0.0
    %2222 = vmatprep.subr.mxu0 0.0
    %2223 = vmatpush2.msra.mxu0 0.0
    %2224 = vmatprep.subr.mxu0 0.0
    %2225 = vmatpush2.msra.mxu0 0.0
    %2226 = vmatprep.subr.mxu0 0.0
    %2227 = vmatpush2.msra.mxu0 0.0
    %2228 = vmatprep.subr.mxu0 0.0
    %2229 = vmatpush2.msra.mxu0 0.0
    %2230 = vmatprep.mubr.f32.mxu0 0.0
    %2231 = vmatmul.mubr.f32.gmra.mxu0 %v2164
    %v2232 = vpop.f32.mrf.mxu0
    %v2233 = vadd.f32 %v2159, %v2232
    %v2234 = vpop.f32.mrf.mxu0
    %2235 = vdwg.mxu0
    %vm2236 = vcmask 25600
    %2237 = vst.msk [vmem:[#allocation7] sm:$0x3] %vm2236, %v2233
    // Predicated region
    $region38: #{lstm_forward.1} parent=1 // pred_check
      _
    $region39: #{lstm_forward.1} parent=1 // pred_check_branch
      %2239 = sbr.rel (0) target = $region41
    $region40: #{lstm_forward.1} parent=1 // pred_region
      %s2241 = ssub.s32 32, 32
      %2242 = vsyncadd [#allocation6], %s2241
      %s2244 = sshll.u32 [#allocation7], 4
      %s2245 = int_to_ptr.vmem [resolvable:$true] %s2244
      %2247 = dma.vmem_to_hbm [thread:$0]  %s2245, 32, %s8, [#allocation6]
    $region41: #{lstm_forward.1} parent=1 // pred_fallthru
      _
    // Predicated region
    $region42: #{lstm_forward.1} parent=1 // pred_check
      _
    $region43: #{lstm_forward.1} parent=1 // pred_check_branch
      %2249 = sbr.rel (0) target = $region45
    $region44: #{lstm_forward.1} parent=1 // pred_region
      %2250 = dma.done [#allocation6], 32
    $region45: #{lstm_forward.1} parent=1 // pred_fallthru
      _
    %2251 = vsyncpa [#allocation5], 1
    %2252 = vsyncpa [#allocation6], 1

</llo_original>
